<compile_context>
chip_gen: v5e
topology: v5e:2x2
jax: 0.10.0
libtpu: 0.0.40
codegen_flags: <defaults>
</compile_context>

<pallas_src>
import jax
import jax.numpy as jnp
from jax import lax
from jax.experimental import pallas as pl
from jax.experimental.pallas import tpu as pltpu

ANN_DIM = 64                 # input_size - 31
SEQ_LEN = 31
VOCAB = 21
BATCH = 4
CP = 128                     # padded channel width (one lane tile)
ROWS_PER = SEQ_LEN + 1       # 31 data rows + 1 zero guard row per batch element

# lane offsets of the conv-path channels (keeps PyTorch channel order:
# c3 @ [0:10), c2 @ [10:20), c1 @ [20:30), emb @ [30:51))
EMB_OFF, C1_OFF, C2_OFF, C3_OFF, HID_OFF = 30, 20, 10, 0, 0


def _kernel(tok_ref, x_ref, table_ref, convb_ref, bias_ref,
            convw_hbm, fc1w_hbm, fc2w_hbm, fcmw_hbm,
            out_ref,
            convw, fc1w, fc2w, fcmw, pool, sem):
    f32, bf16 = jnp.float32, jnp.bfloat16
    R1 = tok_ref.shape[0]                       # B * 32 stacked rows
    B = R1 // ROWS_PER

    # ---- 0. kick off every weight DMA up front; each stage waits only on its slice ----
    def start_copy(src, dst, i):
        cp = pltpu.make_async_copy(src, dst, sem.at[i])
        cp.start()
        return cp

    conv_cps = [start_copy(convw_hbm.at[s], convw.at[s], s) for s in range(7)]
    fc1_cp = start_copy(fc1w_hbm, fc1w, 7)
    fc2_cp = start_copy(fc2w_hbm, fc2w, 8)
    fcm_cp = start_copy(fcmw_hbm, fcmw, 9)

    relu = lambda v: jnp.maximum(v, 0.0)

    def keep_mask(rows, period):
        # True on data rows, False on each element's zero guard row (row % period == period-1).
        r = lax.broadcasted_iota(jnp.int32, (rows, CP), 0)
        return (r & (period - 1)) != (period - 1)

    def conv3(x, slot):
        # Conv1d(kernel_size=3, padding=1) over the stacked row axis.  Using
        # dot(shift(x), W) == shift(dot(x, W)): the three taps are computed on x
        # directly and the OUTPUTS are shifted by +/-1 row before summing, so only
        # x and the accumulators stay live (no xm1/xp1 copies of the input).
        xb = x.astype(bf16)
        y0 = jnp.dot(xb, convw[slot, 0], preferred_element_type=f32)   # tap for x[l-1]
        y1 = jnp.dot(xb, convw[slot, 1], preferred_element_type=f32)   # tap for x[l]
        y2 = jnp.dot(xb, convw[slot, 2], preferred_element_type=f32)   # tap for x[l+1]
        z = jnp.zeros((1, CP), f32)
        return (jnp.concatenate([z, y0[:-1, :]], axis=0) + y1
                + jnp.concatenate([y2[1:, :], z], axis=0)
                + convb_ref[slot:slot + 1, :])

    def res_block(x, slot, keep):
        # conv1 writes hidden channels to lanes [0:10); conv2's weight columns land
        # directly in this block's residual lane band, so torch.cat((out, residual), 1)
        # is a plain add (disjoint lane bands, x is zero in the target band).
        conv_cps[slot].wait()
        h1 = jnp.where(keep, relu(conv3(x, slot)), 0.0)        # re-zero guard rows
        conv_cps[slot + 1].wait()
        h2 = jnp.where(keep, relu(conv3(h1, slot + 1)), 0.0)   # keep guard rows clean
        return x + h2

    def store_pair_max(x):
        # pool[l] <- max(x[l], x[l+1]); even rows are the MaxPool1d(2) outputs.
        # Per-element row counts are even at every stage, so pairs never cross
        # batch elements; the dropped odd-length tail row only ever reaches a
        # guard row (re-zeroed) or a never-read flatten position.
        rows = x.shape[0]
        z = jnp.zeros((1, CP), f32)
        pool[0:rows, :] = jnp.maximum(x, jnp.concatenate([x[1:, :], z], axis=0))
        return rows

    def maxpool2(x, keep):
        rows = store_pair_max(x)
        return jnp.where(keep, pool[pl.ds(0, rows // 2, stride=2), :], 0.0)

    keep32 = keep_mask(R1, 32)
    keep16 = keep_mask(R1 // 2, 16)
    keep8 = keep_mask(R1 // 4, 8)

    # ---- 1. embedding lookup: one-hot(token) @ zero-padded table (fused in-kernel) ----
    lane = lax.broadcasted_iota(jnp.int32, (R1, CP), 1)
    onehot = jnp.where(lane == tok_ref[...], 1.0, 0.0).astype(bf16)
    x0 = jnp.dot(onehot, table_ref[...], preferred_element_type=f32)   # emb @ lanes [30:51)

    # ---- 2. conv path (whole batch stacked along rows) ----
    x1 = res_block(x0, 0, keep32)                        # + c1 @ lanes [20:30)
    x2 = res_block(maxpool2(x1, keep16), 2, keep16)      # + c2 @ lanes [10:20)
    x3 = res_block(maxpool2(x2, keep8), 4, keep8)        # + c3 @ lanes [ 0:10)

    # final pool + flatten + fc_conv1 (+ folded bn_conv1): pooled position l of
    # element b is pair-max row 8*b + 2*l -> read it directly with stride 8.
    store_pair_max(x3)
    conv_cps[6].wait()
    h = convb_ref[6:7, :]
    for l in range(3):
        xl = pool[pl.ds(2 * l, B, stride=8), :]
        h = h + jnp.dot(xl.astype(bf16), convw[6, l], preferred_element_type=f32)
    xc = relu(h)                                         # (B,128), real lanes [0:32)

    # ---- 3. ann path (eval BatchNorm folded into the packed weights) ----
    fc1_cp.wait()
    a1 = relu(jnp.dot(x_ref[:, 0:ANN_DIM].astype(bf16), fc1w[...],
                      preferred_element_type=f32) + bias_ref[0:1, :])
    fc2_cp.wait()
    a2 = relu(jnp.dot(a1.astype(bf16), fc2w[...],
                      preferred_element_type=f32) + bias_ref[1:2, 0:256])

    # ---- 4. combined head: fc_combined1 split in two to avoid a lane concat ----
    fcm_cp.wait()
    hc = relu(jnp.dot(xc.astype(bf16), fcmw[0:CP, :], preferred_element_type=f32)
              + jnp.dot(a2.astype(bf16), fcmw[CP:CP + 256, :], preferred_element_type=f32)
              + bias_ref[2:3, 0:CP])

    # fc_output (128 -> 1) as VPU multiply + XLU lane reduce (no 1-column matmul).
    logits = (jnp.sum(hc * bias_ref[3:4, 0:CP], axis=-1, keepdims=True)
              + bias_ref[4:5, 0:1])                      # (B, 1)

    # numerically stable sigmoid
    ez = jnp.exp(-jnp.abs(logits))
    probs = jnp.where(logits >= 0.0, 1.0, ez) / (1.0 + ez)

    # single lane-dense (2B,128) = (8,128) store: rows [0:B) logits, [B:2B) probs
    out_ref[...] = jnp.concatenate([jnp.broadcast_to(logits, (B, CP)),
                                    jnp.broadcast_to(probs, (B, CP))], axis=0)


def init_params(key):
    """PyTorch-layout parameters (Conv1d: (Cout,Cin,3), Linear: (out,in), BN eval stats)."""
    keys = iter(jax.random.split(key, 40))

    def w(shape, scale=0.1):
        return scale * jax.random.normal(next(keys), shape, jnp.float32)

    def bn(n):
        return {'gamma': 1.0 + 0.1 * jax.random.normal(next(keys), (n,), jnp.float32),
                'beta': 0.1 * jax.random.normal(next(keys), (n,), jnp.float32),
                'mean': 0.1 * jax.random.normal(next(keys), (n,), jnp.float32),
                'var': jax.random.uniform(next(keys), (n,), jnp.float32, 0.5, 1.5)}

    p = {'emb': jax.random.normal(next(keys), (VOCAB, VOCAB), jnp.float32)}
    p['rb1_c1_w'], p['rb1_c1_b'] = w((10, 21, 3)), w((10,), 0.05)
    p['rb1_c2_w'], p['rb1_c2_b'] = w((10, 10, 3)), w((10,), 0.05)
    p['rb2_c1_w'], p['rb2_c1_b'] = w((10, 31, 3)), w((10,), 0.05)
    p['rb2_c2_w'], p['rb2_c2_b'] = w((10, 10, 3)), w((10,), 0.05)
    p['rb3_c1_w'], p['rb3_c1_b'] = w((10, 41, 3)), w((10,), 0.05)
    p['rb3_c2_w'], p['rb3_c2_b'] = w((10, 10, 3)), w((10,), 0.05)
    p['fc_conv1_w'], p['fc_conv1_b'] = w((32, 51 * 3)), w((32,), 0.05)
    p['bn_conv1'] = bn(32)
    p['fc1_w'], p['fc1_b'] = w((512, ANN_DIM)), w((512,), 0.05)
    p['bn1'] = bn(512)
    p['fc2_w'], p['fc2_b'] = w((256, 512)), w((256,), 0.05)
    p['bn2'] = bn(256)
    p['fcm_w'], p['fcm_b'] = w((128, 256 + 32)), w((128,), 0.05)
    p['bnm'] = bn(128)
    p['fco_w'], p['fco_b'] = w((1, 128)), w((1,), 0.05)
    return p


def pack_params(p):
    """One-time repack: fold eval-mode BatchNorm into weights/biases in f32, place
    everything at its lane offsets, and cast MXU operands to bf16 at the very end."""
    f32, bf16 = jnp.float32, jnp.bfloat16

    def bn_fold(w_t, b, bn, eps=1e-5):      # w_t: (in, out)
        scale = bn['gamma'] / jnp.sqrt(bn['var'] + eps)
        shift = bn['beta'] - bn['mean'] * scale
        return w_t * scale[None, :], b * scale + shift

    def conv_taps(w_pt, b_pt, in_off, out_off):
        # torch Conv1d weight (Cout,Cin,3) -> 3 padded (CP,CP) taps; tap k multiplies x[l+k-1].
        cout, cin, _ = w_pt.shape
        wt = jnp.transpose(w_pt, (2, 1, 0))                 # (3, Cin, Cout)
        taps = jnp.zeros((3, CP, CP), f32)
        taps = taps.at[:, in_off:in_off + cin, out_off:out_off + cout].set(wt)
        brow = jnp.zeros((CP,), f32).at[out_off:out_off + cout].set(b_pt)
        return taps, brow

    taps, brows = [], []
    for (wp, bp, i_off, o_off) in (
            (p['rb1_c1_w'], p['rb1_c1_b'], EMB_OFF, HID_OFF),
            (p['rb1_c2_w'], p['rb1_c2_b'], HID_OFF, C1_OFF),
            (p['rb2_c1_w'], p['rb2_c1_b'], C1_OFF, HID_OFF),
            (p['rb2_c2_w'], p['rb2_c2_b'], HID_OFF, C2_OFF),
            (p['rb3_c1_w'], p['rb3_c1_b'], C2_OFF, HID_OFF),
            (p['rb3_c2_w'], p['rb3_c2_b'], HID_OFF, C3_OFF)):
        t, br = conv_taps(wp, bp, i_off, o_off)
        taps.append(t)
        brows.append(br)

    # fc_conv1 (+ folded bn_conv1) as 3 per-position weights in conv slot 6.
    # torch flattens (B, 51 channels, 3 positions) channel-major: weight column
    # c*3 + l acts on (channel c, position l); channel c sits exactly at lane c.
    fcc_t, fcc_b = bn_fold(p['fc_conv1_w'].T, p['fc_conv1_b'], p['bn_conv1'])
    taps6 = jnp.zeros((3, CP, CP), f32)
    for l in range(3):
        taps6 = taps6.at[l, 0:51, 0:32].set(fcc_t[l::3, :])
    taps.append(taps6)
    brows.append(jnp.zeros((CP,), f32).at[0:32].set(fcc_b))

    fc1_w, fc1_b = bn_fold(p['fc1_w'].T, p['fc1_b'], p['bn1'])       # (64,512)
    fc2_w, fc2_b = bn_fold(p['fc2_w'].T, p['fc2_b'], p['bn2'])       # (512,256)
    fcm_w, fcm_b = bn_fold(p['fcm_w'].T, p['fcm_b'], p['bnm'])       # (288,128)
    fcm_conv = jnp.zeros((CP, CP), f32).at[0:32, :].set(fcm_w[0:32])
    fcmw = jnp.concatenate([fcm_conv, fcm_w[32:288]], axis=0)        # (384,128)

    # embedding table padded to (128,128): row t = embedding(t) at lanes [30:51),
    # rows >= VOCAB are zero (the guard token maps there).
    table = jnp.zeros((CP, CP), f32).at[0:VOCAB, EMB_OFF:EMB_OFF + VOCAB].set(p['emb'])

    bias = jnp.zeros((5, 512), f32)
    bias = bias.at[0, :].set(fc1_b)
    bias = bias.at[1, 0:256].set(fc2_b)
    bias = bias.at[2, 0:CP].set(fcm_b)
    bias = bias.at[3, 0:CP].set(p['fco_w'][0])           # fc_output weight as a lane row
    bias = bias.at[4, 0].set(p['fco_b'][0])

    return {'table': table.astype(bf16),
            'convw': jnp.stack(taps).astype(bf16),       # (7,3,128,128) bf16
            'convb': jnp.stack(brows),                   # (7,128) f32
            'fc1w': fc1_w.astype(bf16),
            'fc2w': fc2_w.astype(bf16),
            'fcmw': fcmw.astype(bf16),
            'bias': bias}


@jax.jit
def binary_classifier_forward(x, packed):
    B = x.shape[0]
    tok = x[:, -SEQ_LEN:].astype(jnp.int32)                          # x[:, -31:].int()
    # append the guard-row token (VOCAB -> zero row of the padded table)
    tok = jnp.concatenate([tok, jnp.full((B, 1), VOCAB, jnp.int32)], axis=1)
    tokcol = tok.reshape(B * ROWS_PER, 1)

    vmem = pltpu.MemorySpace.VMEM
    out = pl.pallas_call(
        _kernel,
        out_shape=jax.ShapeDtypeStruct((2 * B, CP), jnp.float32),
        in_specs=[pl.BlockSpec(memory_space=vmem),          # token column
                  pl.BlockSpec(memory_space=vmem),          # x (ann lanes read in kernel)
                  pl.BlockSpec(memory_space=vmem),          # padded embedding table
                  pl.BlockSpec(memory_space=vmem),          # conv / fc_conv1 biases
                  pl.BlockSpec(memory_space=vmem),          # fc biases + fc_output row
                  pl.BlockSpec(memory_space=pl.ANY),        # conv taps     (HBM, manual DMA)
                  pl.BlockSpec(memory_space=pl.ANY),        # fc1 weights   (HBM, manual DMA)
                  pl.BlockSpec(memory_space=pl.ANY),        # fc2 weights   (HBM, manual DMA)
                  pl.BlockSpec(memory_space=pl.ANY)],       # fc_combined1  (HBM, manual DMA)
        out_specs=pl.BlockSpec(memory_space=vmem),
        scratch_shapes=[pltpu.VMEM((7, 3, CP, CP), jnp.bfloat16),    # conv taps landing buffer
                        pltpu.VMEM((ANN_DIM, 512), jnp.bfloat16),    # fc1
                        pltpu.VMEM((512, 256), jnp.bfloat16),        # fc2
                        pltpu.VMEM((CP + 256, CP), jnp.bfloat16),    # fc_combined1
                        pltpu.VMEM((B * ROWS_PER, CP), jnp.float32),  # maxpool scratch
                        pltpu.SemaphoreType.DMA((10,))],
    )(tokcol, x.astype(jnp.float32), packed['table'], packed['convb'], packed['bias'],
      packed['convw'], packed['fc1w'], packed['fc2w'], packed['fcmw'])

    return out[0:B, 0:1], out[B:2 * B, 0:1]                  # (logits, sigmoid(logits))


def reference_forward(x, p, eps=1e-5):
    """Pure-JAX f32 re-implementation of the PyTorch eval-mode forward (ground truth)."""
    tok = x[:, -SEQ_LEN:].astype(jnp.int32)
    ann = x[:, :-SEQ_LEN].astype(jnp.float32)
    h = jnp.transpose(jnp.take(p['emb'], tok, axis=0), (0, 2, 1))    # (B,21,31)

    def conv1d(h, w, b):                                 # w: (Cout,Cin,3), padding=1
        hp = jnp.pad(h, ((0, 0), (0, 0), (1, 1)))
        L = h.shape[-1]
        out = b[None, :, None]
        for k in range(3):
            out = out + jnp.einsum('oc,bcl->bol', w[:, :, k], hp[:, :, k:k + L])
        return out

    def res_block(h, w1, b1, w2, b2):
        o = jax.nn.relu(conv1d(h, w1, b1))
        o = jax.nn.relu(conv1d(o, w2, b2))
        return jnp.concatenate([o, h], axis=1)

    def maxpool(h):
        L = h.shape[-1] // 2
        return jnp.max(h[:, :, :2 * L].reshape(h.shape[0], h.shape[1], L, 2), axis=-1)

    def bn(v, s):
        return (v - s['mean']) / jnp.sqrt(s['var'] + eps) * s['gamma'] + s['beta']

    h = maxpool(res_block(h, p['rb1_c1_w'], p['rb1_c1_b'], p['rb1_c2_w'], p['rb1_c2_b']))
    h = maxpool(res_block(h, p['rb2_c1_w'], p['rb2_c1_b'], p['rb2_c2_w'], p['rb2_c2_b']))
    h = maxpool(res_block(h, p['rb3_c1_w'], p['rb3_c1_b'], p['rb3_c2_w'], p['rb3_c2_b']))
    xc = jax.nn.relu(bn(h.reshape(h.shape[0], -1) @ p['fc_conv1_w'].T + p['fc_conv1_b'],
                        p['bn_conv1']))
    a = jax.nn.relu(bn(ann @ p['fc1_w'].T + p['fc1_b'], p['bn1']))
    a = jax.nn.relu(bn(a @ p['fc2_w'].T + p['fc2_b'], p['bn2']))
    comb = jnp.concatenate([xc, a], axis=1)
    hc = jax.nn.relu(bn(comb @ p['fcm_w'].T + p['fcm_b'], p['bnm']))
    logit = hc @ p['fco_w'].T + p['fco_b']
    return logit, jax.nn.sigmoid(logit)


if __name__ == "__main__":
    key = jax.random.PRNGKey(0)
    kp, ka, kt = jax.random.split(key, 3)
    params = init_params(kp)
    packed = pack_params(params)                             # one-time weight prep

    ann_part = jax.random.normal(ka, (BATCH, ANN_DIM), jnp.float32)
    tok_part = jax.random.randint(kt, (BATCH, SEQ_LEN), 0, VOCAB).astype(jnp.float32)
    x = jnp.concatenate([ann_part, tok_part], axis=1)        # (BATCH, 95)

    logits, probs = binary_classifier_forward(x, packed)
    jax.block_until_ready((logits, probs))

    assert logits.shape == (BATCH, 1) and probs.shape == (BATCH, 1)
    assert bool(jnp.all(jnp.isfinite(logits))) and bool(jnp.all(jnp.isfinite(probs)))
    assert bool(jnp.all((probs >= 0.0) & (probs <= 1.0)))

    # validate the bf16-operand kernel against the f32 pure-JAX reference
    ref_logits, ref_probs = reference_forward(x, params)
    err_l = float(jnp.max(jnp.abs(logits - ref_logits)))
    err_p = float(jnp.max(jnp.abs(probs - ref_probs)))
    assert err_l < 1e-1 and err_p < 5e-2, (err_l, err_p)
    print("KERNEL_OK")
</pallas_src>

<mosaic_0001>
module attributes {stable_mosaic.version = 11 : i64} {
  func.func @_kernel(%arg0: memref<128x1xi32, #tpu.memory_space<vmem>>, %arg1: memref<4x95xf32, #tpu.memory_space<vmem>>, %arg2: memref<128x128xbf16, #tpu.memory_space<vmem>>, %arg3: memref<7x128xf32, #tpu.memory_space<vmem>>, %arg4: memref<5x512xf32, #tpu.memory_space<vmem>>, %arg5: memref<7x3x128x128xbf16, #tpu.memory_space<any>>, %arg6: memref<64x512xbf16, #tpu.memory_space<any>>, %arg7: memref<512x256xbf16, #tpu.memory_space<any>>, %arg8: memref<384x128xbf16, #tpu.memory_space<any>>, %arg9: memref<8x128xf32, #tpu.memory_space<vmem>>, %arg10: memref<7x3x128x128xbf16, #tpu.memory_space<vmem>>, %arg11: memref<64x512xbf16, #tpu.memory_space<vmem>>, %arg12: memref<512x256xbf16, #tpu.memory_space<vmem>>, %arg13: memref<384x128xbf16, #tpu.memory_space<vmem>>, %arg14: memref<128x128xf32, #tpu.memory_space<vmem>>, %arg15: memref<10x!tpu.dma_semaphore, #tpu.memory_space<semaphore_mem>>) attributes {dimension_semantics = [], scalar_prefetch = 0 : i64, scratch_operands = 6 : i64, tpu.core_type = #tpu.core_type<tc>} {
    %c0_i32 = arith.constant 0 : i32
    %c0_i32_0 = arith.constant 0 : i32
    %c0_i32_1 = arith.constant 0 : i32
    %c0_i32_2 = arith.constant 0 : i32
    %c0_i32_3 = arith.constant 0 : i32
    %c0_i32_4 = arith.constant 0 : i32
    %0 = tpu.memref_slice %arg5[%c0_i32, %c0_i32_2, %c0_i32_3, %c0_i32_4] : memref<7x3x128x128xbf16, #tpu.memory_space<any>> -> memref<1x3x128x128xbf16, #tpu.memory_space<any>>
    %1 = tpu.memref_squeeze %0 : memref<1x3x128x128xbf16, #tpu.memory_space<any>> -> memref<3x128x128xbf16, #tpu.memory_space<any>>
    %c0_i32_5 = arith.constant 0 : i32
    %c0_i32_6 = arith.constant 0 : i32
    %c0_i32_7 = arith.constant 0 : i32
    %2 = tpu.memref_slice %arg10[%c0_i32_0, %c0_i32_5, %c0_i32_6, %c0_i32_7] : memref<7x3x128x128xbf16, #tpu.memory_space<vmem>> -> memref<1x3x128x128xbf16, #tpu.memory_space<vmem>>
    %3 = tpu.memref_squeeze %2 : memref<1x3x128x128xbf16, #tpu.memory_space<vmem>> -> memref<3x128x128xbf16, #tpu.memory_space<vmem>>
    %4 = tpu.memref_slice %arg15[%c0_i32_1] : memref<10x!tpu.dma_semaphore, #tpu.memory_space<semaphore_mem>> -> memref<1x!tpu.dma_semaphore, #tpu.memory_space<semaphore_mem>>
    %5 = tpu.memref_squeeze %4 : memref<1x!tpu.dma_semaphore, #tpu.memory_space<semaphore_mem>> -> memref<!tpu.dma_semaphore, #tpu.memory_space<semaphore_mem>>
    tpu.enqueue_dma source(%1 : memref<3x128x128xbf16, #tpu.memory_space<any>>) target(%3 : memref<3x128x128xbf16, #tpu.memory_space<vmem>>) target_semaphore(%5 : memref<!tpu.dma_semaphore, #tpu.memory_space<semaphore_mem>>)
    %c1_i32 = arith.constant 1 : i32
    %c1_i32_8 = arith.constant 1 : i32
    %c1_i32_9 = arith.constant 1 : i32
    %c0_i32_10 = arith.constant 0 : i32
    %c0_i32_11 = arith.constant 0 : i32
    %c0_i32_12 = arith.constant 0 : i32
    %6 = tpu.memref_slice %arg5[%c1_i32, %c0_i32_10, %c0_i32_11, %c0_i32_12] : memref<7x3x128x128xbf16, #tpu.memory_space<any>> -> memref<1x3x128x128xbf16, #tpu.memory_space<any>>
    %7 = tpu.memref_squeeze %6 : memref<1x3x128x128xbf16, #tpu.memory_space<any>> -> memref<3x128x128xbf16, #tpu.memory_space<any>>
    %c0_i32_13 = arith.constant 0 : i32
    %c0_i32_14 = arith.constant 0 : i32
    %c0_i32_15 = arith.constant 0 : i32
    %8 = tpu.memref_slice %arg10[%c1_i32_8, %c0_i32_13, %c0_i32_14, %c0_i32_15] : memref<7x3x128x128xbf16, #tpu.memory_space<vmem>> -> memref<1x3x128x128xbf16, #tpu.memory_space<vmem>>
    %9 = tpu.memref_squeeze %8 : memref<1x3x128x128xbf16, #tpu.memory_space<vmem>> -> memref<3x128x128xbf16, #tpu.memory_space<vmem>>
    %10 = tpu.memref_slice %arg15[%c1_i32_9] : memref<10x!tpu.dma_semaphore, #tpu.memory_space<semaphore_mem>> -> memref<1x!tpu.dma_semaphore, #tpu.memory_space<semaphore_mem>>
    %11 = tpu.memref_squeeze %10 : memref<1x!tpu.dma_semaphore, #tpu.memory_space<semaphore_mem>> -> memref<!tpu.dma_semaphore, #tpu.memory_space<semaphore_mem>>
    tpu.enqueue_dma source(%7 : memref<3x128x128xbf16, #tpu.memory_space<any>>) target(%9 : memref<3x128x128xbf16, #tpu.memory_space<vmem>>) target_semaphore(%11 : memref<!tpu.dma_semaphore, #tpu.memory_space<semaphore_mem>>)
    %c2_i32 = arith.constant 2 : i32
    %c2_i32_16 = arith.constant 2 : i32
    %c2_i32_17 = arith.constant 2 : i32
    %c0_i32_18 = arith.constant 0 : i32
    %c0_i32_19 = arith.constant 0 : i32
    %c0_i32_20 = arith.constant 0 : i32
    %12 = tpu.memref_slice %arg5[%c2_i32, %c0_i32_18, %c0_i32_19, %c0_i32_20] : memref<7x3x128x128xbf16, #tpu.memory_space<any>> -> memref<1x3x128x128xbf16, #tpu.memory_space<any>>
    %13 = tpu.memref_squeeze %12 : memref<1x3x128x128xbf16, #tpu.memory_space<any>> -> memref<3x128x128xbf16, #tpu.memory_space<any>>
    %c0_i32_21 = arith.constant 0 : i32
    %c0_i32_22 = arith.constant 0 : i32
    %c0_i32_23 = arith.constant 0 : i32
    %14 = tpu.memref_slice %arg10[%c2_i32_16, %c0_i32_21, %c0_i32_22, %c0_i32_23] : memref<7x3x128x128xbf16, #tpu.memory_space<vmem>> -> memref<1x3x128x128xbf16, #tpu.memory_space<vmem>>
    %15 = tpu.memref_squeeze %14 : memref<1x3x128x128xbf16, #tpu.memory_space<vmem>> -> memref<3x128x128xbf16, #tpu.memory_space<vmem>>
    %16 = tpu.memref_slice %arg15[%c2_i32_17] : memref<10x!tpu.dma_semaphore, #tpu.memory_space<semaphore_mem>> -> memref<1x!tpu.dma_semaphore, #tpu.memory_space<semaphore_mem>>
    %17 = tpu.memref_squeeze %16 : memref<1x!tpu.dma_semaphore, #tpu.memory_space<semaphore_mem>> -> memref<!tpu.dma_semaphore, #tpu.memory_space<semaphore_mem>>
    tpu.enqueue_dma source(%13 : memref<3x128x128xbf16, #tpu.memory_space<any>>) target(%15 : memref<3x128x128xbf16, #tpu.memory_space<vmem>>) target_semaphore(%17 : memref<!tpu.dma_semaphore, #tpu.memory_space<semaphore_mem>>)
    %c3_i32 = arith.constant 3 : i32
    %c3_i32_24 = arith.constant 3 : i32
    %c3_i32_25 = arith.constant 3 : i32
    %c0_i32_26 = arith.constant 0 : i32
    %c0_i32_27 = arith.constant 0 : i32
    %c0_i32_28 = arith.constant 0 : i32
    %18 = tpu.memref_slice %arg5[%c3_i32, %c0_i32_26, %c0_i32_27, %c0_i32_28] : memref<7x3x128x128xbf16, #tpu.memory_space<any>> -> memref<1x3x128x128xbf16, #tpu.memory_space<any>>
    %19 = tpu.memref_squeeze %18 : memref<1x3x128x128xbf16, #tpu.memory_space<any>> -> memref<3x128x128xbf16, #tpu.memory_space<any>>
    %c0_i32_29 = arith.constant 0 : i32
    %c0_i32_30 = arith.constant 0 : i32
    %c0_i32_31 = arith.constant 0 : i32
    %20 = tpu.memref_slice %arg10[%c3_i32_24, %c0_i32_29, %c0_i32_30, %c0_i32_31] : memref<7x3x128x128xbf16, #tpu.memory_space<vmem>> -> memref<1x3x128x128xbf16, #tpu.memory_space<vmem>>
    %21 = tpu.memref_squeeze %20 : memref<1x3x128x128xbf16, #tpu.memory_space<vmem>> -> memref<3x128x128xbf16, #tpu.memory_space<vmem>>
    %22 = tpu.memref_slice %arg15[%c3_i32_25] : memref<10x!tpu.dma_semaphore, #tpu.memory_space<semaphore_mem>> -> memref<1x!tpu.dma_semaphore, #tpu.memory_space<semaphore_mem>>
    %23 = tpu.memref_squeeze %22 : memref<1x!tpu.dma_semaphore, #tpu.memory_space<semaphore_mem>> -> memref<!tpu.dma_semaphore, #tpu.memory_space<semaphore_mem>>
    tpu.enqueue_dma source(%19 : memref<3x128x128xbf16, #tpu.memory_space<any>>) target(%21 : memref<3x128x128xbf16, #tpu.memory_space<vmem>>) target_semaphore(%23 : memref<!tpu.dma_semaphore, #tpu.memory_space<semaphore_mem>>)
    %c4_i32 = arith.constant 4 : i32
    %c4_i32_32 = arith.constant 4 : i32
    %c4_i32_33 = arith.constant 4 : i32
    %c0_i32_34 = arith.constant 0 : i32
    %c0_i32_35 = arith.constant 0 : i32
    %c0_i32_36 = arith.constant 0 : i32
    %24 = tpu.memref_slice %arg5[%c4_i32, %c0_i32_34, %c0_i32_35, %c0_i32_36] : memref<7x3x128x128xbf16, #tpu.memory_space<any>> -> memref<1x3x128x128xbf16, #tpu.memory_space<any>>
    %25 = tpu.memref_squeeze %24 : memref<1x3x128x128xbf16, #tpu.memory_space<any>> -> memref<3x128x128xbf16, #tpu.memory_space<any>>
    %c0_i32_37 = arith.constant 0 : i32
    %c0_i32_38 = arith.constant 0 : i32
    %c0_i32_39 = arith.constant 0 : i32
    %26 = tpu.memref_slice %arg10[%c4_i32_32, %c0_i32_37, %c0_i32_38, %c0_i32_39] : memref<7x3x128x128xbf16, #tpu.memory_space<vmem>> -> memref<1x3x128x128xbf16, #tpu.memory_space<vmem>>
    %27 = tpu.memref_squeeze %26 : memref<1x3x128x128xbf16, #tpu.memory_space<vmem>> -> memref<3x128x128xbf16, #tpu.memory_space<vmem>>
    %28 = tpu.memref_slice %arg15[%c4_i32_33] : memref<10x!tpu.dma_semaphore, #tpu.memory_space<semaphore_mem>> -> memref<1x!tpu.dma_semaphore, #tpu.memory_space<semaphore_mem>>
    %29 = tpu.memref_squeeze %28 : memref<1x!tpu.dma_semaphore, #tpu.memory_space<semaphore_mem>> -> memref<!tpu.dma_semaphore, #tpu.memory_space<semaphore_mem>>
    tpu.enqueue_dma source(%25 : memref<3x128x128xbf16, #tpu.memory_space<any>>) target(%27 : memref<3x128x128xbf16, #tpu.memory_space<vmem>>) target_semaphore(%29 : memref<!tpu.dma_semaphore, #tpu.memory_space<semaphore_mem>>)
    %c5_i32 = arith.constant 5 : i32
    %c5_i32_40 = arith.constant 5 : i32
    %c5_i32_41 = arith.constant 5 : i32
    %c0_i32_42 = arith.constant 0 : i32
    %c0_i32_43 = arith.constant 0 : i32
    %c0_i32_44 = arith.constant 0 : i32
    %30 = tpu.memref_slice %arg5[%c5_i32, %c0_i32_42, %c0_i32_43, %c0_i32_44] : memref<7x3x128x128xbf16, #tpu.memory_space<any>> -> memref<1x3x128x128xbf16, #tpu.memory_space<any>>
    %31 = tpu.memref_squeeze %30 : memref<1x3x128x128xbf16, #tpu.memory_space<any>> -> memref<3x128x128xbf16, #tpu.memory_space<any>>
    %c0_i32_45 = arith.constant 0 : i32
    %c0_i32_46 = arith.constant 0 : i32
    %c0_i32_47 = arith.constant 0 : i32
    %32 = tpu.memref_slice %arg10[%c5_i32_40, %c0_i32_45, %c0_i32_46, %c0_i32_47] : memref<7x3x128x128xbf16, #tpu.memory_space<vmem>> -> memref<1x3x128x128xbf16, #tpu.memory_space<vmem>>
    %33 = tpu.memref_squeeze %32 : memref<1x3x128x128xbf16, #tpu.memory_space<vmem>> -> memref<3x128x128xbf16, #tpu.memory_space<vmem>>
    %34 = tpu.memref_slice %arg15[%c5_i32_41] : memref<10x!tpu.dma_semaphore, #tpu.memory_space<semaphore_mem>> -> memref<1x!tpu.dma_semaphore, #tpu.memory_space<semaphore_mem>>
    %35 = tpu.memref_squeeze %34 : memref<1x!tpu.dma_semaphore, #tpu.memory_space<semaphore_mem>> -> memref<!tpu.dma_semaphore, #tpu.memory_space<semaphore_mem>>
    tpu.enqueue_dma source(%31 : memref<3x128x128xbf16, #tpu.memory_space<any>>) target(%33 : memref<3x128x128xbf16, #tpu.memory_space<vmem>>) target_semaphore(%35 : memref<!tpu.dma_semaphore, #tpu.memory_space<semaphore_mem>>)
    %c6_i32 = arith.constant 6 : i32
    %c6_i32_48 = arith.constant 6 : i32
    %c6_i32_49 = arith.constant 6 : i32
    %c0_i32_50 = arith.constant 0 : i32
    %c0_i32_51 = arith.constant 0 : i32
    %c0_i32_52 = arith.constant 0 : i32
    %36 = tpu.memref_slice %arg5[%c6_i32, %c0_i32_50, %c0_i32_51, %c0_i32_52] : memref<7x3x128x128xbf16, #tpu.memory_space<any>> -> memref<1x3x128x128xbf16, #tpu.memory_space<any>>
    %37 = tpu.memref_squeeze %36 : memref<1x3x128x128xbf16, #tpu.memory_space<any>> -> memref<3x128x128xbf16, #tpu.memory_space<any>>
    %c0_i32_53 = arith.constant 0 : i32
    %c0_i32_54 = arith.constant 0 : i32
    %c0_i32_55 = arith.constant 0 : i32
    %38 = tpu.memref_slice %arg10[%c6_i32_48, %c0_i32_53, %c0_i32_54, %c0_i32_55] : memref<7x3x128x128xbf16, #tpu.memory_space<vmem>> -> memref<1x3x128x128xbf16, #tpu.memory_space<vmem>>
    %39 = tpu.memref_squeeze %38 : memref<1x3x128x128xbf16, #tpu.memory_space<vmem>> -> memref<3x128x128xbf16, #tpu.memory_space<vmem>>
    %40 = tpu.memref_slice %arg15[%c6_i32_49] : memref<10x!tpu.dma_semaphore, #tpu.memory_space<semaphore_mem>> -> memref<1x!tpu.dma_semaphore, #tpu.memory_space<semaphore_mem>>
    %41 = tpu.memref_squeeze %40 : memref<1x!tpu.dma_semaphore, #tpu.memory_space<semaphore_mem>> -> memref<!tpu.dma_semaphore, #tpu.memory_space<semaphore_mem>>
    tpu.enqueue_dma source(%37 : memref<3x128x128xbf16, #tpu.memory_space<any>>) target(%39 : memref<3x128x128xbf16, #tpu.memory_space<vmem>>) target_semaphore(%41 : memref<!tpu.dma_semaphore, #tpu.memory_space<semaphore_mem>>)
    %c7_i32 = arith.constant 7 : i32
    %42 = tpu.memref_slice %arg15[%c7_i32] : memref<10x!tpu.dma_semaphore, #tpu.memory_space<semaphore_mem>> -> memref<1x!tpu.dma_semaphore, #tpu.memory_space<semaphore_mem>>
    %43 = tpu.memref_squeeze %42 : memref<1x!tpu.dma_semaphore, #tpu.memory_space<semaphore_mem>> -> memref<!tpu.dma_semaphore, #tpu.memory_space<semaphore_mem>>
    tpu.enqueue_dma source(%arg6 : memref<64x512xbf16, #tpu.memory_space<any>>) target(%arg11 : memref<64x512xbf16, #tpu.memory_space<vmem>>) target_semaphore(%43 : memref<!tpu.dma_semaphore, #tpu.memory_space<semaphore_mem>>)
    %c8_i32 = arith.constant 8 : i32
    %44 = tpu.memref_slice %arg15[%c8_i32] : memref<10x!tpu.dma_semaphore, #tpu.memory_space<semaphore_mem>> -> memref<1x!tpu.dma_semaphore, #tpu.memory_space<semaphore_mem>>
    %45 = tpu.memref_squeeze %44 : memref<1x!tpu.dma_semaphore, #tpu.memory_space<semaphore_mem>> -> memref<!tpu.dma_semaphore, #tpu.memory_space<semaphore_mem>>
    tpu.enqueue_dma source(%arg7 : memref<512x256xbf16, #tpu.memory_space<any>>) target(%arg12 : memref<512x256xbf16, #tpu.memory_space<vmem>>) target_semaphore(%45 : memref<!tpu.dma_semaphore, #tpu.memory_space<semaphore_mem>>)
    %c9_i32 = arith.constant 9 : i32
    %46 = tpu.memref_slice %arg15[%c9_i32] : memref<10x!tpu.dma_semaphore, #tpu.memory_space<semaphore_mem>> -> memref<1x!tpu.dma_semaphore, #tpu.memory_space<semaphore_mem>>
    %47 = tpu.memref_squeeze %46 : memref<1x!tpu.dma_semaphore, #tpu.memory_space<semaphore_mem>> -> memref<!tpu.dma_semaphore, #tpu.memory_space<semaphore_mem>>
    tpu.enqueue_dma source(%arg8 : memref<384x128xbf16, #tpu.memory_space<any>>) target(%arg13 : memref<384x128xbf16, #tpu.memory_space<vmem>>) target_semaphore(%47 : memref<!tpu.dma_semaphore, #tpu.memory_space<semaphore_mem>>)
    %48 = tpu.iota {dimensions = array<i32: 0>} : vector<128x128xi32>
    %c31_i32 = arith.constant 31 : i32
    %49 = vector.broadcast %c31_i32 : i32 to vector<128x128xi32>
    %50 = arith.andi %48, %49 : vector<128x128xi32>
    %c31_i32_56 = arith.constant 31 : i32
    %51 = vector.broadcast %c31_i32_56 : i32 to vector<128x128xi32>
    %52 = arith.cmpi ne, %50, %51 : vector<128x128xi32>
    %53 = tpu.iota {dimensions = array<i32: 0>} : vector<64x128xi32>
    %c15_i32 = arith.constant 15 : i32
    %54 = vector.broadcast %c15_i32 : i32 to vector<64x128xi32>
    %55 = arith.andi %53, %54 : vector<64x128xi32>
    %c15_i32_57 = arith.constant 15 : i32
    %56 = vector.broadcast %c15_i32_57 : i32 to vector<64x128xi32>
    %57 = arith.cmpi ne, %55, %56 : vector<64x128xi32>
    %58 = tpu.iota {dimensions = array<i32: 0>} : vector<32x128xi32>
    %c7_i32_58 = arith.constant 7 : i32
    %59 = vector.broadcast %c7_i32_58 : i32 to vector<32x128xi32>
    %60 = arith.andi %58, %59 : vector<32x128xi32>
    %c7_i32_59 = arith.constant 7 : i32
    %61 = vector.broadcast %c7_i32_59 : i32 to vector<32x128xi32>
    %62 = arith.cmpi ne, %60, %61 : vector<32x128xi32>
    %63 = tpu.iota {dimensions = array<i32: 1>} : vector<128x128xi32>
    %c0 = arith.constant 0 : index
    %c0_60 = arith.constant 0 : index
    %64 = vector.load %arg0[%c0, %c0_60] : memref<128x1xi32, #tpu.memory_space<vmem>>, vector<128x1xi32>
    %65 = vector.broadcast %64 : vector<128x1xi32> to vector<128x128xi32>
    %66 = arith.cmpi eq, %63, %65 : vector<128x128xi32>
    %cst = arith.constant 1.000000e+00 : f32
    %cst_61 = arith.constant 0.000000e+00 : f32
    %67 = vector.broadcast %cst : f32 to vector<128x128xf32>
    %68 = vector.broadcast %cst_61 : f32 to vector<128x128xf32>
    %69 = arith.select %66, %67, %68 : vector<128x128xi1>, vector<128x128xf32>
    %70 = arith.truncf %69 : vector<128x128xf32> to vector<128x128xbf16>
    %c0_62 = arith.constant 0 : index
    %c0_63 = arith.constant 0 : index
    %71 = vector.load %arg2[%c0_62, %c0_63] : memref<128x128xbf16, #tpu.memory_space<vmem>>, vector<128x128xbf16>
    %cst_64 = arith.constant dense<0.000000e+00> : vector<128x128xf32>
    %72 = tpu.matmul %70, %71, %cst_64 {dimension_numbers = #tpu.dot_dimension_numbers<[1], [0], [0], [1], [0, 0, 1, 1], [], []>} : vector<128x128xbf16>, vector<128x128xbf16>, vector<128x128xf32> -> vector<128x128xf32>
    %c0_i32_65 = arith.constant 0 : i32
    %c0_i32_66 = arith.constant 0 : i32
    %c0_i32_67 = arith.constant 0 : i32
    %c0_i32_68 = arith.constant 0 : i32
    %c0_i32_69 = arith.constant 0 : i32
    %c0_i32_70 = arith.constant 0 : i32
    %73 = tpu.memref_slice %arg5[%c0_i32_65, %c0_i32_68, %c0_i32_69, %c0_i32_70] : memref<7x3x128x128xbf16, #tpu.memory_space<any>> -> memref<1x3x128x128xbf16, #tpu.memory_space<any>>
    %74 = tpu.memref_squeeze %73 : memref<1x3x128x128xbf16, #tpu.memory_space<any>> -> memref<3x128x128xbf16, #tpu.memory_space<any>>
    %c0_i32_71 = arith.constant 0 : i32
    %c0_i32_72 = arith.constant 0 : i32
    %c0_i32_73 = arith.constant 0 : i32
    %75 = tpu.memref_slice %arg10[%c0_i32_66, %c0_i32_71, %c0_i32_72, %c0_i32_73] : memref<7x3x128x128xbf16, #tpu.memory_space<vmem>> -> memref<1x3x128x128xbf16, #tpu.memory_space<vmem>>
    %76 = tpu.memref_squeeze %75 : memref<1x3x128x128xbf16, #tpu.memory_space<vmem>> -> memref<3x128x128xbf16, #tpu.memory_space<vmem>>
    %77 = tpu.memref_slice %arg15[%c0_i32_67] : memref<10x!tpu.dma_semaphore, #tpu.memory_space<semaphore_mem>> -> memref<1x!tpu.dma_semaphore, #tpu.memory_space<semaphore_mem>>
    %78 = tpu.memref_squeeze %77 : memref<1x!tpu.dma_semaphore, #tpu.memory_space<semaphore_mem>> -> memref<!tpu.dma_semaphore, #tpu.memory_space<semaphore_mem>>
    tpu.wait_dma2 semaphore(%78 : memref<!tpu.dma_semaphore, #tpu.memory_space<semaphore_mem>>) src(%74 : memref<3x128x128xbf16, #tpu.memory_space<any>>) dst(%76 : memref<3x128x128xbf16, #tpu.memory_space<vmem>>)
    %79 = arith.truncf %72 : vector<128x128xf32> to vector<128x128xbf16>
    %c0_74 = arith.constant 0 : index
    %c0_75 = arith.constant 0 : index
    %c0_76 = arith.constant 0 : index
    %c0_77 = arith.constant 0 : index
    %80 = vector.load %arg10[%c0_74, %c0_75, %c0_76, %c0_77] : memref<7x3x128x128xbf16, #tpu.memory_space<vmem>>, vector<1x1x128x128xbf16>
    %81 = vector.shape_cast %80 : vector<1x1x128x128xbf16> to vector<128x128xbf16>
    %cst_78 = arith.constant dense<0.000000e+00> : vector<128x128xf32>
    %82 = tpu.matmul %79, %81, %cst_78 {dimension_numbers = #tpu.dot_dimension_numbers<[1], [0], [0], [1], [0, 0, 1, 1], [], []>} : vector<128x128xbf16>, vector<128x128xbf16>, vector<128x128xf32> -> vector<128x128xf32>
    %c0_79 = arith.constant 0 : index
    %c1 = arith.constant 1 : index
    %c0_80 = arith.constant 0 : index
    %c0_81 = arith.constant 0 : index
    %83 = vector.load %arg10[%c0_79, %c1, %c0_80, %c0_81] : memref<7x3x128x128xbf16, #tpu.memory_space<vmem>>, vector<1x1x128x128xbf16>
    %84 = vector.shape_cast %83 : vector<1x1x128x128xbf16> to vector<128x128xbf16>
    %cst_82 = arith.constant dense<0.000000e+00> : vector<128x128xf32>
    %85 = tpu.matmul %79, %84, %cst_82 {dimension_numbers = #tpu.dot_dimension_numbers<[1], [0], [0], [1], [0, 0, 1, 1], [], []>} : vector<128x128xbf16>, vector<128x128xbf16>, vector<128x128xf32> -> vector<128x128xf32>
    %c0_83 = arith.constant 0 : index
    %c2 = arith.constant 2 : index
    %c0_84 = arith.constant 0 : index
    %c0_85 = arith.constant 0 : index
    %86 = vector.load %arg10[%c0_83, %c2, %c0_84, %c0_85] : memref<7x3x128x128xbf16, #tpu.memory_space<vmem>>, vector<1x1x128x128xbf16>
    %87 = vector.shape_cast %86 : vector<1x1x128x128xbf16> to vector<128x128xbf16>
    %cst_86 = arith.constant dense<0.000000e+00> : vector<128x128xf32>
    %88 = tpu.matmul %79, %87, %cst_86 {dimension_numbers = #tpu.dot_dimension_numbers<[1], [0], [0], [1], [0, 0, 1, 1], [], []>} : vector<128x128xbf16>, vector<128x128xbf16>, vector<128x128xf32> -> vector<128x128xf32>
    %cst_87 = arith.constant 0.000000e+00 : f32
    %89 = vector.broadcast %cst_87 : f32 to vector<1x128xf32>
    %90 = vector.extract_strided_slice %82 {offsets = [0, 0], sizes = [127, 128], strides = [1, 1]} : vector<128x128xf32> to vector<127x128xf32>
    %91 = tpu.concatenate %89, %90 in 0 : vector<1x128xf32>, vector<127x128xf32> -> vector<128x128xf32>
    %92 = arith.addf %91, %85 : vector<128x128xf32>
    %93 = vector.extract_strided_slice %88 {offsets = [1, 0], sizes = [127, 128], strides = [1, 1]} : vector<128x128xf32> to vector<127x128xf32>
    %94 = tpu.concatenate %93, %89 in 0 : vector<127x128xf32>, vector<1x128xf32> -> vector<128x128xf32>
    %95 = arith.addf %92, %94 : vector<128x128xf32>
    %c0_88 = arith.constant 0 : index
    %c0_89 = arith.constant 0 : index
    %96 = vector.load %arg3[%c0_88, %c0_89] : memref<7x128xf32, #tpu.memory_space<vmem>>, vector<1x128xf32>
    %97 = vector.broadcast %96 : vector<1x128xf32> to vector<128x128xf32>
    %98 = arith.addf %95, %97 : vector<128x128xf32>
    %cst_90 = arith.constant 0.000000e+00 : f32
    %99 = vector.broadcast %cst_90 : f32 to vector<128x128xf32>
    %100 = arith.maximumf %98, %99 : vector<128x128xf32>
    %cst_91 = arith.constant 0.000000e+00 : f32
    %101 = vector.broadcast %cst_91 : f32 to vector<128x128xf32>
    %102 = arith.select %52, %100, %101 : vector<128x128xi1>, vector<128x128xf32>
    %c1_i32_92 = arith.constant 1 : i32
    %c1_i32_93 = arith.constant 1 : i32
    %c1_i32_94 = arith.constant 1 : i32
    %c0_i32_95 = arith.constant 0 : i32
    %c0_i32_96 = arith.constant 0 : i32
    %c0_i32_97 = arith.constant 0 : i32
    %103 = tpu.memref_slice %arg5[%c1_i32_92, %c0_i32_95, %c0_i32_96, %c0_i32_97] : memref<7x3x128x128xbf16, #tpu.memory_space<any>> -> memref<1x3x128x128xbf16, #tpu.memory_space<any>>
    %104 = tpu.memref_squeeze %103 : memref<1x3x128x128xbf16, #tpu.memory_space<any>> -> memref<3x128x128xbf16, #tpu.memory_space<any>>
    %c0_i32_98 = arith.constant 0 : i32
    %c0_i32_99 = arith.constant 0 : i32
    %c0_i32_100 = arith.constant 0 : i32
    %105 = tpu.memref_slice %arg10[%c1_i32_93, %c0_i32_98, %c0_i32_99, %c0_i32_100] : memref<7x3x128x128xbf16, #tpu.memory_space<vmem>> -> memref<1x3x128x128xbf16, #tpu.memory_space<vmem>>
    %106 = tpu.memref_squeeze %105 : memref<1x3x128x128xbf16, #tpu.memory_space<vmem>> -> memref<3x128x128xbf16, #tpu.memory_space<vmem>>
    %107 = tpu.memref_slice %arg15[%c1_i32_94] : memref<10x!tpu.dma_semaphore, #tpu.memory_space<semaphore_mem>> -> memref<1x!tpu.dma_semaphore, #tpu.memory_space<semaphore_mem>>
    %108 = tpu.memref_squeeze %107 : memref<1x!tpu.dma_semaphore, #tpu.memory_space<semaphore_mem>> -> memref<!tpu.dma_semaphore, #tpu.memory_space<semaphore_mem>>
    tpu.wait_dma2 semaphore(%108 : memref<!tpu.dma_semaphore, #tpu.memory_space<semaphore_mem>>) src(%104 : memref<3x128x128xbf16, #tpu.memory_space<any>>) dst(%106 : memref<3x128x128xbf16, #tpu.memory_space<vmem>>)
    %109 = arith.truncf %102 : vector<128x128xf32> to vector<128x128xbf16>
    %c1_101 = arith.constant 1 : index
    %c0_102 = arith.constant 0 : index
    %c0_103 = arith.constant 0 : index
    %c0_104 = arith.constant 0 : index
    %110 = vector.load %arg10[%c1_101, %c0_102, %c0_103, %c0_104] : memref<7x3x128x128xbf16, #tpu.memory_space<vmem>>, vector<1x1x128x128xbf16>
    %111 = vector.shape_cast %110 : vector<1x1x128x128xbf16> to vector<128x128xbf16>
    %cst_105 = arith.constant dense<0.000000e+00> : vector<128x128xf32>
    %112 = tpu.matmul %109, %111, %cst_105 {dimension_numbers = #tpu.dot_dimension_numbers<[1], [0], [0], [1], [0, 0, 1, 1], [], []>} : vector<128x128xbf16>, vector<128x128xbf16>, vector<128x128xf32> -> vector<128x128xf32>
    %c1_106 = arith.constant 1 : index
    %c1_107 = arith.constant 1 : index
    %c0_108 = arith.constant 0 : index
    %c0_109 = arith.constant 0 : index
    %113 = vector.load %arg10[%c1_106, %c1_107, %c0_108, %c0_109] : memref<7x3x128x128xbf16, #tpu.memory_space<vmem>>, vector<1x1x128x128xbf16>
    %114 = vector.shape_cast %113 : vector<1x1x128x128xbf16> to vector<128x128xbf16>
    %cst_110 = arith.constant dense<0.000000e+00> : vector<128x128xf32>
    %115 = tpu.matmul %109, %114, %cst_110 {dimension_numbers = #tpu.dot_dimension_numbers<[1], [0], [0], [1], [0, 0, 1, 1], [], []>} : vector<128x128xbf16>, vector<128x128xbf16>, vector<128x128xf32> -> vector<128x128xf32>
    %c1_111 = arith.constant 1 : index
    %c2_112 = arith.constant 2 : index
    %c0_113 = arith.constant 0 : index
    %c0_114 = arith.constant 0 : index
    %116 = vector.load %arg10[%c1_111, %c2_112, %c0_113, %c0_114] : memref<7x3x128x128xbf16, #tpu.memory_space<vmem>>, vector<1x1x128x128xbf16>
    %117 = vector.shape_cast %116 : vector<1x1x128x128xbf16> to vector<128x128xbf16>
    %cst_115 = arith.constant dense<0.000000e+00> : vector<128x128xf32>
    %118 = tpu.matmul %109, %117, %cst_115 {dimension_numbers = #tpu.dot_dimension_numbers<[1], [0], [0], [1], [0, 0, 1, 1], [], []>} : vector<128x128xbf16>, vector<128x128xbf16>, vector<128x128xf32> -> vector<128x128xf32>
    %cst_116 = arith.constant 0.000000e+00 : f32
    %119 = vector.broadcast %cst_116 : f32 to vector<1x128xf32>
    %120 = vector.extract_strided_slice %112 {offsets = [0, 0], sizes = [127, 128], strides = [1, 1]} : vector<128x128xf32> to vector<127x128xf32>
    %121 = tpu.concatenate %119, %120 in 0 : vector<1x128xf32>, vector<127x128xf32> -> vector<128x128xf32>
    %122 = arith.addf %121, %115 : vector<128x128xf32>
    %123 = vector.extract_strided_slice %118 {offsets = [1, 0], sizes = [127, 128], strides = [1, 1]} : vector<128x128xf32> to vector<127x128xf32>
    %124 = tpu.concatenate %123, %119 in 0 : vector<127x128xf32>, vector<1x128xf32> -> vector<128x128xf32>
    %125 = arith.addf %122, %124 : vector<128x128xf32>
    %c1_117 = arith.constant 1 : index
    %c0_118 = arith.constant 0 : index
    %126 = vector.load %arg3[%c1_117, %c0_118] : memref<7x128xf32, #tpu.memory_space<vmem>>, vector<1x128xf32>
    %127 = vector.broadcast %126 : vector<1x128xf32> to vector<128x128xf32>
    %128 = arith.addf %125, %127 : vector<128x128xf32>
    %cst_119 = arith.constant 0.000000e+00 : f32
    %129 = vector.broadcast %cst_119 : f32 to vector<128x128xf32>
    %130 = arith.maximumf %128, %129 : vector<128x128xf32>
    %cst_120 = arith.constant 0.000000e+00 : f32
    %131 = vector.broadcast %cst_120 : f32 to vector<128x128xf32>
    %132 = arith.select %52, %130, %131 : vector<128x128xi1>, vector<128x128xf32>
    %133 = arith.addf %72, %132 : vector<128x128xf32>
    %cst_121 = arith.constant 0.000000e+00 : f32
    %134 = vector.broadcast %cst_121 : f32 to vector<1x128xf32>
    %135 = vector.extract_strided_slice %133 {offsets = [1, 0], sizes = [127, 128], strides = [1, 1]} : vector<128x128xf32> to vector<127x128xf32>
    %136 = tpu.concatenate %135, %134 in 0 : vector<127x128xf32>, vector<1x128xf32> -> vector<128x128xf32>
    %137 = arith.maximumf %133, %136 : vector<128x128xf32>
    %c0_122 = arith.constant 0 : index
    %c0_123 = arith.constant 0 : index
    %138 = vector.load %arg14[%c0_122, %c0_123] : memref<128x128xf32, #tpu.memory_space<vmem>>, vector<128x128xf32>
    tpu.vector_store %arg14[%c0_122, %c0_123], %137 {strides = array<i32>} : memref<128x128xf32, #tpu.memory_space<vmem>>, vector<128x128xf32>,
    %c0_124 = arith.constant 0 : index
    %c0_125 = arith.constant 0 : index
    %139 = tpu.strided_load %arg14[%c0_124, %c0_125] {strides = array<i32: 2, 1>} : memref<128x128xf32, #tpu.memory_space<vmem>>, vector<64x128xf32>
    %cst_126 = arith.constant 0.000000e+00 : f32
    %140 = vector.broadcast %cst_126 : f32 to vector<64x128xf32>
    %141 = arith.select %57, %139, %140 : vector<64x128xi1>, vector<64x128xf32>
    %c2_i32_127 = arith.constant 2 : i32
    %c2_i32_128 = arith.constant 2 : i32
    %c2_i32_129 = arith.constant 2 : i32
    %c0_i32_130 = arith.constant 0 : i32
    %c0_i32_131 = arith.constant 0 : i32
    %c0_i32_132 = arith.constant 0 : i32
    %142 = tpu.memref_slice %arg5[%c2_i32_127, %c0_i32_130, %c0_i32_131, %c0_i32_132] : memref<7x3x128x128xbf16, #tpu.memory_space<any>> -> memref<1x3x128x128xbf16, #tpu.memory_space<any>>
    %143 = tpu.memref_squeeze %142 : memref<1x3x128x128xbf16, #tpu.memory_space<any>> -> memref<3x128x128xbf16, #tpu.memory_space<any>>
    %c0_i32_133 = arith.constant 0 : i32
    %c0_i32_134 = arith.constant 0 : i32
    %c0_i32_135 = arith.constant 0 : i32
    %144 = tpu.memref_slice %arg10[%c2_i32_128, %c0_i32_133, %c0_i32_134, %c0_i32_135] : memref<7x3x128x128xbf16, #tpu.memory_space<vmem>> -> memref<1x3x128x128xbf16, #tpu.memory_space<vmem>>
    %145 = tpu.memref_squeeze %144 : memref<1x3x128x128xbf16, #tpu.memory_space<vmem>> -> memref<3x128x128xbf16, #tpu.memory_space<vmem>>
    %146 = tpu.memref_slice %arg15[%c2_i32_129] : memref<10x!tpu.dma_semaphore, #tpu.memory_space<semaphore_mem>> -> memref<1x!tpu.dma_semaphore, #tpu.memory_space<semaphore_mem>>
    %147 = tpu.memref_squeeze %146 : memref<1x!tpu.dma_semaphore, #tpu.memory_space<semaphore_mem>> -> memref<!tpu.dma_semaphore, #tpu.memory_space<semaphore_mem>>
    tpu.wait_dma2 semaphore(%147 : memref<!tpu.dma_semaphore, #tpu.memory_space<semaphore_mem>>) src(%143 : memref<3x128x128xbf16, #tpu.memory_space<any>>) dst(%145 : memref<3x128x128xbf16, #tpu.memory_space<vmem>>)
    %148 = arith.truncf %141 : vector<64x128xf32> to vector<64x128xbf16>
    %c2_136 = arith.constant 2 : index
    %c0_137 = arith.constant 0 : index
    %c0_138 = arith.constant 0 : index
    %c0_139 = arith.constant 0 : index
    %149 = vector.load %arg10[%c2_136, %c0_137, %c0_138, %c0_139] : memref<7x3x128x128xbf16, #tpu.memory_space<vmem>>, vector<1x1x128x128xbf16>
    %150 = vector.shape_cast %149 : vector<1x1x128x128xbf16> to vector<128x128xbf16>
    %cst_140 = arith.constant dense<0.000000e+00> : vector<64x128xf32>
    %151 = tpu.matmul %148, %150, %cst_140 {dimension_numbers = #tpu.dot_dimension_numbers<[1], [0], [0], [1], [0, 0, 1, 1], [], []>} : vector<64x128xbf16>, vector<128x128xbf16>, vector<64x128xf32> -> vector<64x128xf32>
    %c2_141 = arith.constant 2 : index
    %c1_142 = arith.constant 1 : index
    %c0_143 = arith.constant 0 : index
    %c0_144 = arith.constant 0 : index
    %152 = vector.load %arg10[%c2_141, %c1_142, %c0_143, %c0_144] : memref<7x3x128x128xbf16, #tpu.memory_space<vmem>>, vector<1x1x128x128xbf16>
    %153 = vector.shape_cast %152 : vector<1x1x128x128xbf16> to vector<128x128xbf16>
    %cst_145 = arith.constant dense<0.000000e+00> : vector<64x128xf32>
    %154 = tpu.matmul %148, %153, %cst_145 {dimension_numbers = #tpu.dot_dimension_numbers<[1], [0], [0], [1], [0, 0, 1, 1], [], []>} : vector<64x128xbf16>, vector<128x128xbf16>, vector<64x128xf32> -> vector<64x128xf32>
    %c2_146 = arith.constant 2 : index
    %c2_147 = arith.constant 2 : index
    %c0_148 = arith.constant 0 : index
    %c0_149 = arith.constant 0 : index
    %155 = vector.load %arg10[%c2_146, %c2_147, %c0_148, %c0_149] : memref<7x3x128x128xbf16, #tpu.memory_space<vmem>>, vector<1x1x128x128xbf16>
    %156 = vector.shape_cast %155 : vector<1x1x128x128xbf16> to vector<128x128xbf16>
    %cst_150 = arith.constant dense<0.000000e+00> : vector<64x128xf32>
    %157 = tpu.matmul %148, %156, %cst_150 {dimension_numbers = #tpu.dot_dimension_numbers<[1], [0], [0], [1], [0, 0, 1, 1], [], []>} : vector<64x128xbf16>, vector<128x128xbf16>, vector<64x128xf32> -> vector<64x128xf32>
    %cst_151 = arith.constant 0.000000e+00 : f32
    %158 = vector.broadcast %cst_151 : f32 to vector<1x128xf32>
    %159 = vector.extract_strided_slice %151 {offsets = [0, 0], sizes = [63, 128], strides = [1, 1]} : vector<64x128xf32> to vector<63x128xf32>
    %160 = tpu.concatenate %158, %159 in 0 : vector<1x128xf32>, vector<63x128xf32> -> vector<64x128xf32>
    %161 = arith.addf %160, %154 : vector<64x128xf32>
    %162 = vector.extract_strided_slice %157 {offsets = [1, 0], sizes = [63, 128], strides = [1, 1]} : vector<64x128xf32> to vector<63x128xf32>
    %163 = tpu.concatenate %162, %158 in 0 : vector<63x128xf32>, vector<1x128xf32> -> vector<64x128xf32>
    %164 = arith.addf %161, %163 : vector<64x128xf32>
    %c2_152 = arith.constant 2 : index
    %c0_153 = arith.constant 0 : index
    %165 = vector.load %arg3[%c2_152, %c0_153] : memref<7x128xf32, #tpu.memory_space<vmem>>, vector<1x128xf32>
    %166 = vector.broadcast %165 : vector<1x128xf32> to vector<64x128xf32>
    %167 = arith.addf %164, %166 : vector<64x128xf32>
    %cst_154 = arith.constant 0.000000e+00 : f32
    %168 = vector.broadcast %cst_154 : f32 to vector<64x128xf32>
    %169 = arith.maximumf %167, %168 : vector<64x128xf32>
    %cst_155 = arith.constant 0.000000e+00 : f32
    %170 = vector.broadcast %cst_155 : f32 to vector<64x128xf32>
    %171 = arith.select %57, %169, %170 : vector<64x128xi1>, vector<64x128xf32>
    %c3_i32_156 = arith.constant 3 : i32
    %c3_i32_157 = arith.constant 3 : i32
    %c3_i32_158 = arith.constant 3 : i32
    %c0_i32_159 = arith.constant 0 : i32
    %c0_i32_160 = arith.constant 0 : i32
    %c0_i32_161 = arith.constant 0 : i32
    %172 = tpu.memref_slice %arg5[%c3_i32_156, %c0_i32_159, %c0_i32_160, %c0_i32_161] : memref<7x3x128x128xbf16, #tpu.memory_space<any>> -> memref<1x3x128x128xbf16, #tpu.memory_space<any>>
    %173 = tpu.memref_squeeze %172 : memref<1x3x128x128xbf16, #tpu.memory_space<any>> -> memref<3x128x128xbf16, #tpu.memory_space<any>>
    %c0_i32_162 = arith.constant 0 : i32
    %c0_i32_163 = arith.constant 0 : i32
    %c0_i32_164 = arith.constant 0 : i32
    %174 = tpu.memref_slice %arg10[%c3_i32_157, %c0_i32_162, %c0_i32_163, %c0_i32_164] : memref<7x3x128x128xbf16, #tpu.memory_space<vmem>> -> memref<1x3x128x128xbf16, #tpu.memory_space<vmem>>
    %175 = tpu.memref_squeeze %174 : memref<1x3x128x128xbf16, #tpu.memory_space<vmem>> -> memref<3x128x128xbf16, #tpu.memory_space<vmem>>
    %176 = tpu.memref_slice %arg15[%c3_i32_158] : memref<10x!tpu.dma_semaphore, #tpu.memory_space<semaphore_mem>> -> memref<1x!tpu.dma_semaphore, #tpu.memory_space<semaphore_mem>>
    %177 = tpu.memref_squeeze %176 : memref<1x!tpu.dma_semaphore, #tpu.memory_space<semaphore_mem>> -> memref<!tpu.dma_semaphore, #tpu.memory_space<semaphore_mem>>
    tpu.wait_dma2 semaphore(%177 : memref<!tpu.dma_semaphore, #tpu.memory_space<semaphore_mem>>) src(%173 : memref<3x128x128xbf16, #tpu.memory_space<any>>) dst(%175 : memref<3x128x128xbf16, #tpu.memory_space<vmem>>)
    %178 = arith.truncf %171 : vector<64x128xf32> to vector<64x128xbf16>
    %c3 = arith.constant 3 : index
    %c0_165 = arith.constant 0 : index
    %c0_166 = arith.constant 0 : index
    %c0_167 = arith.constant 0 : index
    %179 = vector.load %arg10[%c3, %c0_165, %c0_166, %c0_167] : memref<7x3x128x128xbf16, #tpu.memory_space<vmem>>, vector<1x1x128x128xbf16>
    %180 = vector.shape_cast %179 : vector<1x1x128x128xbf16> to vector<128x128xbf16>
    %cst_168 = arith.constant dense<0.000000e+00> : vector<64x128xf32>
    %181 = tpu.matmul %178, %180, %cst_168 {dimension_numbers = #tpu.dot_dimension_numbers<[1], [0], [0], [1], [0, 0, 1, 1], [], []>} : vector<64x128xbf16>, vector<128x128xbf16>, vector<64x128xf32> -> vector<64x128xf32>
    %c3_169 = arith.constant 3 : index
    %c1_170 = arith.constant 1 : index
    %c0_171 = arith.constant 0 : index
    %c0_172 = arith.constant 0 : index
    %182 = vector.load %arg10[%c3_169, %c1_170, %c0_171, %c0_172] : memref<7x3x128x128xbf16, #tpu.memory_space<vmem>>, vector<1x1x128x128xbf16>
    %183 = vector.shape_cast %182 : vector<1x1x128x128xbf16> to vector<128x128xbf16>
    %cst_173 = arith.constant dense<0.000000e+00> : vector<64x128xf32>
    %184 = tpu.matmul %178, %183, %cst_173 {dimension_numbers = #tpu.dot_dimension_numbers<[1], [0], [0], [1], [0, 0, 1, 1], [], []>} : vector<64x128xbf16>, vector<128x128xbf16>, vector<64x128xf32> -> vector<64x128xf32>
    %c3_174 = arith.constant 3 : index
    %c2_175 = arith.constant 2 : index
    %c0_176 = arith.constant 0 : index
    %c0_177 = arith.constant 0 : index
    %185 = vector.load %arg10[%c3_174, %c2_175, %c0_176, %c0_177] : memref<7x3x128x128xbf16, #tpu.memory_space<vmem>>, vector<1x1x128x128xbf16>
    %186 = vector.shape_cast %185 : vector<1x1x128x128xbf16> to vector<128x128xbf16>
    %cst_178 = arith.constant dense<0.000000e+00> : vector<64x128xf32>
    %187 = tpu.matmul %178, %186, %cst_178 {dimension_numbers = #tpu.dot_dimension_numbers<[1], [0], [0], [1], [0, 0, 1, 1], [], []>} : vector<64x128xbf16>, vector<128x128xbf16>, vector<64x128xf32> -> vector<64x128xf32>
    %cst_179 = arith.constant 0.000000e+00 : f32
    %188 = vector.broadcast %cst_179 : f32 to vector<1x128xf32>
    %189 = vector.extract_strided_slice %181 {offsets = [0, 0], sizes = [63, 128], strides = [1, 1]} : vector<64x128xf32> to vector<63x128xf32>
    %190 = tpu.concatenate %188, %189 in 0 : vector<1x128xf32>, vector<63x128xf32> -> vector<64x128xf32>
    %191 = arith.addf %190, %184 : vector<64x128xf32>
    %192 = vector.extract_strided_slice %187 {offsets = [1, 0], sizes = [63, 128], strides = [1, 1]} : vector<64x128xf32> to vector<63x128xf32>
    %193 = tpu.concatenate %192, %188 in 0 : vector<63x128xf32>, vector<1x128xf32> -> vector<64x128xf32>
    %194 = arith.addf %191, %193 : vector<64x128xf32>
    %c3_180 = arith.constant 3 : index
    %c0_181 = arith.constant 0 : index
    %195 = vector.load %arg3[%c3_180, %c0_181] : memref<7x128xf32, #tpu.memory_space<vmem>>, vector<1x128xf32>
    %196 = vector.broadcast %195 : vector<1x128xf32> to vector<64x128xf32>
    %197 = arith.addf %194, %196 : vector<64x128xf32>
    %cst_182 = arith.constant 0.000000e+00 : f32
    %198 = vector.broadcast %cst_182 : f32 to vector<64x128xf32>
    %199 = arith.maximumf %197, %198 : vector<64x128xf32>
    %cst_183 = arith.constant 0.000000e+00 : f32
    %200 = vector.broadcast %cst_183 : f32 to vector<64x128xf32>
    %201 = arith.select %57, %199, %200 : vector<64x128xi1>, vector<64x128xf32>
    %202 = arith.addf %141, %201 : vector<64x128xf32>
    %cst_184 = arith.constant 0.000000e+00 : f32
    %203 = vector.broadcast %cst_184 : f32 to vector<1x128xf32>
    %204 = vector.extract_strided_slice %202 {offsets = [1, 0], sizes = [63, 128], strides = [1, 1]} : vector<64x128xf32> to vector<63x128xf32>
    %205 = tpu.concatenate %204, %203 in 0 : vector<63x128xf32>, vector<1x128xf32> -> vector<64x128xf32>
    %206 = arith.maximumf %202, %205 : vector<64x128xf32>
    %c0_185 = arith.constant 0 : index
    %c0_186 = arith.constant 0 : index
    %207 = vector.load %arg14[%c0_185, %c0_186] : memref<128x128xf32, #tpu.memory_space<vmem>>, vector<64x128xf32>
    tpu.vector_store %arg14[%c0_185, %c0_186], %206 {strides = array<i32>} : memref<128x128xf32, #tpu.memory_space<vmem>>, vector<64x128xf32>,
    %c0_187 = arith.constant 0 : index
    %c0_188 = arith.constant 0 : index
    %208 = tpu.strided_load %arg14[%c0_187, %c0_188] {strides = array<i32: 2, 1>} : memref<128x128xf32, #tpu.memory_space<vmem>>, vector<32x128xf32>
    %cst_189 = arith.constant 0.000000e+00 : f32
    %209 = vector.broadcast %cst_189 : f32 to vector<32x128xf32>
    %210 = arith.select %62, %208, %209 : vector<32x128xi1>, vector<32x128xf32>
    %c4_i32_190 = arith.constant 4 : i32
    %c4_i32_191 = arith.constant 4 : i32
    %c4_i32_192 = arith.constant 4 : i32
    %c0_i32_193 = arith.constant 0 : i32
    %c0_i32_194 = arith.constant 0 : i32
    %c0_i32_195 = arith.constant 0 : i32
    %211 = tpu.memref_slice %arg5[%c4_i32_190, %c0_i32_193, %c0_i32_194, %c0_i32_195] : memref<7x3x128x128xbf16, #tpu.memory_space<any>> -> memref<1x3x128x128xbf16, #tpu.memory_space<any>>
    %212 = tpu.memref_squeeze %211 : memref<1x3x128x128xbf16, #tpu.memory_space<any>> -> memref<3x128x128xbf16, #tpu.memory_space<any>>
    %c0_i32_196 = arith.constant 0 : i32
    %c0_i32_197 = arith.constant 0 : i32
    %c0_i32_198 = arith.constant 0 : i32
    %213 = tpu.memref_slice %arg10[%c4_i32_191, %c0_i32_196, %c0_i32_197, %c0_i32_198] : memref<7x3x128x128xbf16, #tpu.memory_space<vmem>> -> memref<1x3x128x128xbf16, #tpu.memory_space<vmem>>
    %214 = tpu.memref_squeeze %213 : memref<1x3x128x128xbf16, #tpu.memory_space<vmem>> -> memref<3x128x128xbf16, #tpu.memory_space<vmem>>
    %215 = tpu.memref_slice %arg15[%c4_i32_192] : memref<10x!tpu.dma_semaphore, #tpu.memory_space<semaphore_mem>> -> memref<1x!tpu.dma_semaphore, #tpu.memory_space<semaphore_mem>>
    %216 = tpu.memref_squeeze %215 : memref<1x!tpu.dma_semaphore, #tpu.memory_space<semaphore_mem>> -> memref<!tpu.dma_semaphore, #tpu.memory_space<semaphore_mem>>
    tpu.wait_dma2 semaphore(%216 : memref<!tpu.dma_semaphore, #tpu.memory_space<semaphore_mem>>) src(%212 : memref<3x128x128xbf16, #tpu.memory_space<any>>) dst(%214 : memref<3x128x128xbf16, #tpu.memory_space<vmem>>)
    %217 = arith.truncf %210 : vector<32x128xf32> to vector<32x128xbf16>
    %c4 = arith.constant 4 : index
    %c0_199 = arith.constant 0 : index
    %c0_200 = arith.constant 0 : index
    %c0_201 = arith.constant 0 : index
    %218 = vector.load %arg10[%c4, %c0_199, %c0_200, %c0_201] : memref<7x3x128x128xbf16, #tpu.memory_space<vmem>>, vector<1x1x128x128xbf16>
    %219 = vector.shape_cast %218 : vector<1x1x128x128xbf16> to vector<128x128xbf16>
    %cst_202 = arith.constant dense<0.000000e+00> : vector<32x128xf32>
    %220 = tpu.matmul %217, %219, %cst_202 {dimension_numbers = #tpu.dot_dimension_numbers<[1], [0], [0], [1], [0, 0, 1, 1], [], []>} : vector<32x128xbf16>, vector<128x128xbf16>, vector<32x128xf32> -> vector<32x128xf32>
    %c4_203 = arith.constant 4 : index
    %c1_204 = arith.constant 1 : index
    %c0_205 = arith.constant 0 : index
    %c0_206 = arith.constant 0 : index
    %221 = vector.load %arg10[%c4_203, %c1_204, %c0_205, %c0_206] : memref<7x3x128x128xbf16, #tpu.memory_space<vmem>>, vector<1x1x128x128xbf16>
    %222 = vector.shape_cast %221 : vector<1x1x128x128xbf16> to vector<128x128xbf16>
    %cst_207 = arith.constant dense<0.000000e+00> : vector<32x128xf32>
    %223 = tpu.matmul %217, %222, %cst_207 {dimension_numbers = #tpu.dot_dimension_numbers<[1], [0], [0], [1], [0, 0, 1, 1], [], []>} : vector<32x128xbf16>, vector<128x128xbf16>, vector<32x128xf32> -> vector<32x128xf32>
    %c4_208 = arith.constant 4 : index
    %c2_209 = arith.constant 2 : index
    %c0_210 = arith.constant 0 : index
    %c0_211 = arith.constant 0 : index
    %224 = vector.load %arg10[%c4_208, %c2_209, %c0_210, %c0_211] : memref<7x3x128x128xbf16, #tpu.memory_space<vmem>>, vector<1x1x128x128xbf16>
    %225 = vector.shape_cast %224 : vector<1x1x128x128xbf16> to vector<128x128xbf16>
    %cst_212 = arith.constant dense<0.000000e+00> : vector<32x128xf32>
    %226 = tpu.matmul %217, %225, %cst_212 {dimension_numbers = #tpu.dot_dimension_numbers<[1], [0], [0], [1], [0, 0, 1, 1], [], []>} : vector<32x128xbf16>, vector<128x128xbf16>, vector<32x128xf32> -> vector<32x128xf32>
    %cst_213 = arith.constant 0.000000e+00 : f32
    %227 = vector.broadcast %cst_213 : f32 to vector<1x128xf32>
    %228 = vector.extract_strided_slice %220 {offsets = [0, 0], sizes = [31, 128], strides = [1, 1]} : vector<32x128xf32> to vector<31x128xf32>
    %229 = tpu.concatenate %227, %228 in 0 : vector<1x128xf32>, vector<31x128xf32> -> vector<32x128xf32>
    %230 = arith.addf %229, %223 : vector<32x128xf32>
    %231 = vector.extract_strided_slice %226 {offsets = [1, 0], sizes = [31, 128], strides = [1, 1]} : vector<32x128xf32> to vector<31x128xf32>
    %232 = tpu.concatenate %231, %227 in 0 : vector<31x128xf32>, vector<1x128xf32> -> vector<32x128xf32>
    %233 = arith.addf %230, %232 : vector<32x128xf32>
    %c4_214 = arith.constant 4 : index
    %c0_215 = arith.constant 0 : index
    %234 = vector.load %arg3[%c4_214, %c0_215] : memref<7x128xf32, #tpu.memory_space<vmem>>, vector<1x128xf32>
    %235 = vector.broadcast %234 : vector<1x128xf32> to vector<32x128xf32>
    %236 = arith.addf %233, %235 : vector<32x128xf32>
    %cst_216 = arith.constant 0.000000e+00 : f32
    %237 = vector.broadcast %cst_216 : f32 to vector<32x128xf32>
    %238 = arith.maximumf %236, %237 : vector<32x128xf32>
    %cst_217 = arith.constant 0.000000e+00 : f32
    %239 = vector.broadcast %cst_217 : f32 to vector<32x128xf32>
    %240 = arith.select %62, %238, %239 : vector<32x128xi1>, vector<32x128xf32>
    %c5_i32_218 = arith.constant 5 : i32
    %c5_i32_219 = arith.constant 5 : i32
    %c5_i32_220 = arith.constant 5 : i32
    %c0_i32_221 = arith.constant 0 : i32
    %c0_i32_222 = arith.constant 0 : i32
    %c0_i32_223 = arith.constant 0 : i32
    %241 = tpu.memref_slice %arg5[%c5_i32_218, %c0_i32_221, %c0_i32_222, %c0_i32_223] : memref<7x3x128x128xbf16, #tpu.memory_space<any>> -> memref<1x3x128x128xbf16, #tpu.memory_space<any>>
    %242 = tpu.memref_squeeze %241 : memref<1x3x128x128xbf16, #tpu.memory_space<any>> -> memref<3x128x128xbf16, #tpu.memory_space<any>>
    %c0_i32_224 = arith.constant 0 : i32
    %c0_i32_225 = arith.constant 0 : i32
    %c0_i32_226 = arith.constant 0 : i32
    %243 = tpu.memref_slice %arg10[%c5_i32_219, %c0_i32_224, %c0_i32_225, %c0_i32_226] : memref<7x3x128x128xbf16, #tpu.memory_space<vmem>> -> memref<1x3x128x128xbf16, #tpu.memory_space<vmem>>
    %244 = tpu.memref_squeeze %243 : memref<1x3x128x128xbf16, #tpu.memory_space<vmem>> -> memref<3x128x128xbf16, #tpu.memory_space<vmem>>
    %245 = tpu.memref_slice %arg15[%c5_i32_220] : memref<10x!tpu.dma_semaphore, #tpu.memory_space<semaphore_mem>> -> memref<1x!tpu.dma_semaphore, #tpu.memory_space<semaphore_mem>>
    %246 = tpu.memref_squeeze %245 : memref<1x!tpu.dma_semaphore, #tpu.memory_space<semaphore_mem>> -> memref<!tpu.dma_semaphore, #tpu.memory_space<semaphore_mem>>
    tpu.wait_dma2 semaphore(%246 : memref<!tpu.dma_semaphore, #tpu.memory_space<semaphore_mem>>) src(%242 : memref<3x128x128xbf16, #tpu.memory_space<any>>) dst(%244 : memref<3x128x128xbf16, #tpu.memory_space<vmem>>)
    %247 = arith.truncf %240 : vector<32x128xf32> to vector<32x128xbf16>
    %c5 = arith.constant 5 : index
    %c0_227 = arith.constant 0 : index
    %c0_228 = arith.constant 0 : index
    %c0_229 = arith.constant 0 : index
    %248 = vector.load %arg10[%c5, %c0_227, %c0_228, %c0_229] : memref<7x3x128x128xbf16, #tpu.memory_space<vmem>>, vector<1x1x128x128xbf16>
    %249 = vector.shape_cast %248 : vector<1x1x128x128xbf16> to vector<128x128xbf16>
    %cst_230 = arith.constant dense<0.000000e+00> : vector<32x128xf32>
    %250 = tpu.matmul %247, %249, %cst_230 {dimension_numbers = #tpu.dot_dimension_numbers<[1], [0], [0], [1], [0, 0, 1, 1], [], []>} : vector<32x128xbf16>, vector<128x128xbf16>, vector<32x128xf32> -> vector<32x128xf32>
    %c5_231 = arith.constant 5 : index
    %c1_232 = arith.constant 1 : index
    %c0_233 = arith.constant 0 : index
    %c0_234 = arith.constant 0 : index
    %251 = vector.load %arg10[%c5_231, %c1_232, %c0_233, %c0_234] : memref<7x3x128x128xbf16, #tpu.memory_space<vmem>>, vector<1x1x128x128xbf16>
    %252 = vector.shape_cast %251 : vector<1x1x128x128xbf16> to vector<128x128xbf16>
    %cst_235 = arith.constant dense<0.000000e+00> : vector<32x128xf32>
    %253 = tpu.matmul %247, %252, %cst_235 {dimension_numbers = #tpu.dot_dimension_numbers<[1], [0], [0], [1], [0, 0, 1, 1], [], []>} : vector<32x128xbf16>, vector<128x128xbf16>, vector<32x128xf32> -> vector<32x128xf32>
    %c5_236 = arith.constant 5 : index
    %c2_237 = arith.constant 2 : index
    %c0_238 = arith.constant 0 : index
    %c0_239 = arith.constant 0 : index
    %254 = vector.load %arg10[%c5_236, %c2_237, %c0_238, %c0_239] : memref<7x3x128x128xbf16, #tpu.memory_space<vmem>>, vector<1x1x128x128xbf16>
    %255 = vector.shape_cast %254 : vector<1x1x128x128xbf16> to vector<128x128xbf16>
    %cst_240 = arith.constant dense<0.000000e+00> : vector<32x128xf32>
    %256 = tpu.matmul %247, %255, %cst_240 {dimension_numbers = #tpu.dot_dimension_numbers<[1], [0], [0], [1], [0, 0, 1, 1], [], []>} : vector<32x128xbf16>, vector<128x128xbf16>, vector<32x128xf32> -> vector<32x128xf32>
    %cst_241 = arith.constant 0.000000e+00 : f32
    %257 = vector.broadcast %cst_241 : f32 to vector<1x128xf32>
    %258 = vector.extract_strided_slice %250 {offsets = [0, 0], sizes = [31, 128], strides = [1, 1]} : vector<32x128xf32> to vector<31x128xf32>
    %259 = tpu.concatenate %257, %258 in 0 : vector<1x128xf32>, vector<31x128xf32> -> vector<32x128xf32>
    %260 = arith.addf %259, %253 : vector<32x128xf32>
    %261 = vector.extract_strided_slice %256 {offsets = [1, 0], sizes = [31, 128], strides = [1, 1]} : vector<32x128xf32> to vector<31x128xf32>
    %262 = tpu.concatenate %261, %257 in 0 : vector<31x128xf32>, vector<1x128xf32> -> vector<32x128xf32>
    %263 = arith.addf %260, %262 : vector<32x128xf32>
    %c5_242 = arith.constant 5 : index
    %c0_243 = arith.constant 0 : index
    %264 = vector.load %arg3[%c5_242, %c0_243] : memref<7x128xf32, #tpu.memory_space<vmem>>, vector<1x128xf32>
    %265 = vector.broadcast %264 : vector<1x128xf32> to vector<32x128xf32>
    %266 = arith.addf %263, %265 : vector<32x128xf32>
    %cst_244 = arith.constant 0.000000e+00 : f32
    %267 = vector.broadcast %cst_244 : f32 to vector<32x128xf32>
    %268 = arith.maximumf %266, %267 : vector<32x128xf32>
    %cst_245 = arith.constant 0.000000e+00 : f32
    %269 = vector.broadcast %cst_245 : f32 to vector<32x128xf32>
    %270 = arith.select %62, %268, %269 : vector<32x128xi1>, vector<32x128xf32>
    %271 = arith.addf %210, %270 : vector<32x128xf32>
    %cst_246 = arith.constant 0.000000e+00 : f32
    %272 = vector.broadcast %cst_246 : f32 to vector<1x128xf32>
    %273 = vector.extract_strided_slice %271 {offsets = [1, 0], sizes = [31, 128], strides = [1, 1]} : vector<32x128xf32> to vector<31x128xf32>
    %274 = tpu.concatenate %273, %272 in 0 : vector<31x128xf32>, vector<1x128xf32> -> vector<32x128xf32>
    %275 = arith.maximumf %271, %274 : vector<32x128xf32>
    %c0_247 = arith.constant 0 : index
    %c0_248 = arith.constant 0 : index
    %276 = vector.load %arg14[%c0_247, %c0_248] : memref<128x128xf32, #tpu.memory_space<vmem>>, vector<32x128xf32>
    tpu.vector_store %arg14[%c0_247, %c0_248], %275 {strides = array<i32>} : memref<128x128xf32, #tpu.memory_space<vmem>>, vector<32x128xf32>,
    %c6_i32_249 = arith.constant 6 : i32
    %c6_i32_250 = arith.constant 6 : i32
    %c6_i32_251 = arith.constant 6 : i32
    %c0_i32_252 = arith.constant 0 : i32
    %c0_i32_253 = arith.constant 0 : i32
    %c0_i32_254 = arith.constant 0 : i32
    %277 = tpu.memref_slice %arg5[%c6_i32_249, %c0_i32_252, %c0_i32_253, %c0_i32_254] : memref<7x3x128x128xbf16, #tpu.memory_space<any>> -> memref<1x3x128x128xbf16, #tpu.memory_space<any>>
    %278 = tpu.memref_squeeze %277 : memref<1x3x128x128xbf16, #tpu.memory_space<any>> -> memref<3x128x128xbf16, #tpu.memory_space<any>>
    %c0_i32_255 = arith.constant 0 : i32
    %c0_i32_256 = arith.constant 0 : i32
    %c0_i32_257 = arith.constant 0 : i32
    %279 = tpu.memref_slice %arg10[%c6_i32_250, %c0_i32_255, %c0_i32_256, %c0_i32_257] : memref<7x3x128x128xbf16, #tpu.memory_space<vmem>> -> memref<1x3x128x128xbf16, #tpu.memory_space<vmem>>
    %280 = tpu.memref_squeeze %279 : memref<1x3x128x128xbf16, #tpu.memory_space<vmem>> -> memref<3x128x128xbf16, #tpu.memory_space<vmem>>
    %281 = tpu.memref_slice %arg15[%c6_i32_251] : memref<10x!tpu.dma_semaphore, #tpu.memory_space<semaphore_mem>> -> memref<1x!tpu.dma_semaphore, #tpu.memory_space<semaphore_mem>>
    %282 = tpu.memref_squeeze %281 : memref<1x!tpu.dma_semaphore, #tpu.memory_space<semaphore_mem>> -> memref<!tpu.dma_semaphore, #tpu.memory_space<semaphore_mem>>
    tpu.wait_dma2 semaphore(%282 : memref<!tpu.dma_semaphore, #tpu.memory_space<semaphore_mem>>) src(%278 : memref<3x128x128xbf16, #tpu.memory_space<any>>) dst(%280 : memref<3x128x128xbf16, #tpu.memory_space<vmem>>)
    %c6 = arith.constant 6 : index
    %c0_258 = arith.constant 0 : index
    %283 = vector.load %arg3[%c6, %c0_258] : memref<7x128xf32, #tpu.memory_space<vmem>>, vector<1x128xf32>
    %c0_259 = arith.constant 0 : index
    %c0_260 = arith.constant 0 : index
    %284 = tpu.strided_load %arg14[%c0_259, %c0_260] {strides = array<i32: 8, 1>} : memref<128x128xf32, #tpu.memory_space<vmem>>, vector<4x128xf32>
    %285 = arith.truncf %284 : vector<4x128xf32> to vector<4x128xbf16>
    %c6_261 = arith.constant 6 : index
    %c0_262 = arith.constant 0 : index
    %c0_263 = arith.constant 0 : index
    %c0_264 = arith.constant 0 : index
    %286 = vector.load %arg10[%c6_261, %c0_262, %c0_263, %c0_264] : memref<7x3x128x128xbf16, #tpu.memory_space<vmem>>, vector<1x1x128x128xbf16>
    %287 = vector.shape_cast %286 : vector<1x1x128x128xbf16> to vector<128x128xbf16>
    %cst_265 = arith.constant dense<0.000000e+00> : vector<4x128xf32>
    %288 = tpu.matmul %285, %287, %cst_265 {dimension_numbers = #tpu.dot_dimension_numbers<[1], [0], [0], [1], [0, 0, 1, 1], [], []>} : vector<4x128xbf16>, vector<128x128xbf16>, vector<4x128xf32> -> vector<4x128xf32>
    %289 = vector.broadcast %283 : vector<1x128xf32> to vector<4x128xf32>
    %290 = arith.addf %289, %288 : vector<4x128xf32>
    %c2_266 = arith.constant 2 : index
    %c0_267 = arith.constant 0 : index
    %291 = tpu.strided_load %arg14[%c2_266, %c0_267] {strides = array<i32: 8, 1>} : memref<128x128xf32, #tpu.memory_space<vmem>>, vector<4x128xf32>
    %292 = arith.truncf %291 : vector<4x128xf32> to vector<4x128xbf16>
    %c6_268 = arith.constant 6 : index
    %c1_269 = arith.constant 1 : index
    %c0_270 = arith.constant 0 : index
    %c0_271 = arith.constant 0 : index
    %293 = vector.load %arg10[%c6_268, %c1_269, %c0_270, %c0_271] : memref<7x3x128x128xbf16, #tpu.memory_space<vmem>>, vector<1x1x128x128xbf16>
    %294 = vector.shape_cast %293 : vector<1x1x128x128xbf16> to vector<128x128xbf16>
    %cst_272 = arith.constant dense<0.000000e+00> : vector<4x128xf32>
    %295 = tpu.matmul %292, %294, %cst_272 {dimension_numbers = #tpu.dot_dimension_numbers<[1], [0], [0], [1], [0, 0, 1, 1], [], []>} : vector<4x128xbf16>, vector<128x128xbf16>, vector<4x128xf32> -> vector<4x128xf32>
    %296 = arith.addf %290, %295 : vector<4x128xf32>
    %c4_273 = arith.constant 4 : index
    %c0_274 = arith.constant 0 : index
    %297 = tpu.strided_load %arg14[%c4_273, %c0_274] {strides = array<i32: 8, 1>} : memref<128x128xf32, #tpu.memory_space<vmem>>, vector<4x128xf32>
    %298 = arith.truncf %297 : vector<4x128xf32> to vector<4x128xbf16>
    %c6_275 = arith.constant 6 : index
    %c2_276 = arith.constant 2 : index
    %c0_277 = arith.constant 0 : index
    %c0_278 = arith.constant 0 : index
    %299 = vector.load %arg10[%c6_275, %c2_276, %c0_277, %c0_278] : memref<7x3x128x128xbf16, #tpu.memory_space<vmem>>, vector<1x1x128x128xbf16>
    %300 = vector.shape_cast %299 : vector<1x1x128x128xbf16> to vector<128x128xbf16>
    %cst_279 = arith.constant dense<0.000000e+00> : vector<4x128xf32>
    %301 = tpu.matmul %298, %300, %cst_279 {dimension_numbers = #tpu.dot_dimension_numbers<[1], [0], [0], [1], [0, 0, 1, 1], [], []>} : vector<4x128xbf16>, vector<128x128xbf16>, vector<4x128xf32> -> vector<4x128xf32>
    %302 = arith.addf %296, %301 : vector<4x128xf32>
    %cst_280 = arith.constant 0.000000e+00 : f32
    %303 = vector.broadcast %cst_280 : f32 to vector<4x128xf32>
    %304 = arith.maximumf %302, %303 : vector<4x128xf32>
    %c7_i32_281 = arith.constant 7 : i32
    %305 = tpu.memref_slice %arg15[%c7_i32_281] : memref<10x!tpu.dma_semaphore, #tpu.memory_space<semaphore_mem>> -> memref<1x!tpu.dma_semaphore, #tpu.memory_space<semaphore_mem>>
    %306 = tpu.memref_squeeze %305 : memref<1x!tpu.dma_semaphore, #tpu.memory_space<semaphore_mem>> -> memref<!tpu.dma_semaphore, #tpu.memory_space<semaphore_mem>>
    tpu.wait_dma2 semaphore(%306 : memref<!tpu.dma_semaphore, #tpu.memory_space<semaphore_mem>>) src(%arg6 : memref<64x512xbf16, #tpu.memory_space<any>>) dst(%arg11 : memref<64x512xbf16, #tpu.memory_space<vmem>>)
    %c0_282 = arith.constant 0 : index
    %c0_283 = arith.constant 0 : index
    %307 = vector.load %arg1[%c0_282, %c0_283] : memref<4x95xf32, #tpu.memory_space<vmem>>, vector<4x64xf32>
    %308 = arith.truncf %307 : vector<4x64xf32> to vector<4x64xbf16>
    %c0_284 = arith.constant 0 : index
    %c0_285 = arith.constant 0 : index
    %309 = vector.load %arg11[%c0_284, %c0_285] : memref<64x512xbf16, #tpu.memory_space<vmem>>, vector<64x512xbf16>
    %cst_286 = arith.constant dense<0.000000e+00> : vector<4x512xf32>
    %310 = tpu.matmul %308, %309, %cst_286 {dimension_numbers = #tpu.dot_dimension_numbers<[1], [0], [0], [1], [0, 0, 1, 1], [], []>} : vector<4x64xbf16>, vector<64x512xbf16>, vector<4x512xf32> -> vector<4x512xf32>
    %c0_287 = arith.constant 0 : index
    %c0_288 = arith.constant 0 : index
    %311 = vector.load %arg4[%c0_287, %c0_288] : memref<5x512xf32, #tpu.memory_space<vmem>>, vector<1x512xf32>
    %312 = vector.broadcast %311 : vector<1x512xf32> to vector<4x512xf32>
    %313 = arith.addf %310, %312 : vector<4x512xf32>
    %cst_289 = arith.constant 0.000000e+00 : f32
    %314 = vector.broadcast %cst_289 : f32 to vector<4x512xf32>
    %315 = arith.maximumf %313, %314 : vector<4x512xf32>
    %c8_i32_290 = arith.constant 8 : i32
    %316 = tpu.memref_slice %arg15[%c8_i32_290] : memref<10x!tpu.dma_semaphore, #tpu.memory_space<semaphore_mem>> -> memref<1x!tpu.dma_semaphore, #tpu.memory_space<semaphore_mem>>
    %317 = tpu.memref_squeeze %316 : memref<1x!tpu.dma_semaphore, #tpu.memory_space<semaphore_mem>> -> memref<!tpu.dma_semaphore, #tpu.memory_space<semaphore_mem>>
    tpu.wait_dma2 semaphore(%317 : memref<!tpu.dma_semaphore, #tpu.memory_space<semaphore_mem>>) src(%arg7 : memref<512x256xbf16, #tpu.memory_space<any>>) dst(%arg12 : memref<512x256xbf16, #tpu.memory_space<vmem>>)
    %318 = arith.truncf %315 : vector<4x512xf32> to vector<4x512xbf16>
    %c0_291 = arith.constant 0 : index
    %c0_292 = arith.constant 0 : index
    %319 = vector.load %arg12[%c0_291, %c0_292] : memref<512x256xbf16, #tpu.memory_space<vmem>>, vector<512x256xbf16>
    %cst_293 = arith.constant dense<0.000000e+00> : vector<4x256xf32>
    %320 = tpu.matmul %318, %319, %cst_293 {dimension_numbers = #tpu.dot_dimension_numbers<[1], [0], [0], [1], [0, 0, 1, 1], [], []>} : vector<4x512xbf16>, vector<512x256xbf16>, vector<4x256xf32> -> vector<4x256xf32>
    %c1_294 = arith.constant 1 : index
    %c0_295 = arith.constant 0 : index
    %321 = vector.load %arg4[%c1_294, %c0_295] : memref<5x512xf32, #tpu.memory_space<vmem>>, vector<1x256xf32>
    %322 = vector.broadcast %321 : vector<1x256xf32> to vector<4x256xf32>
    %323 = arith.addf %320, %322 : vector<4x256xf32>
    %cst_296 = arith.constant 0.000000e+00 : f32
    %324 = vector.broadcast %cst_296 : f32 to vector<4x256xf32>
    %325 = arith.maximumf %323, %324 : vector<4x256xf32>
    %c9_i32_297 = arith.constant 9 : i32
    %326 = tpu.memref_slice %arg15[%c9_i32_297] : memref<10x!tpu.dma_semaphore, #tpu.memory_space<semaphore_mem>> -> memref<1x!tpu.dma_semaphore, #tpu.memory_space<semaphore_mem>>
    %327 = tpu.memref_squeeze %326 : memref<1x!tpu.dma_semaphore, #tpu.memory_space<semaphore_mem>> -> memref<!tpu.dma_semaphore, #tpu.memory_space<semaphore_mem>>
    tpu.wait_dma2 semaphore(%327 : memref<!tpu.dma_semaphore, #tpu.memory_space<semaphore_mem>>) src(%arg8 : memref<384x128xbf16, #tpu.memory_space<any>>) dst(%arg13 : memref<384x128xbf16, #tpu.memory_space<vmem>>)
    %328 = arith.truncf %304 : vector<4x128xf32> to vector<4x128xbf16>
    %c0_298 = arith.constant 0 : index
    %c0_299 = arith.constant 0 : index
    %329 = vector.load %arg13[%c0_298, %c0_299] : memref<384x128xbf16, #tpu.memory_space<vmem>>, vector<128x128xbf16>
    %cst_300 = arith.constant dense<0.000000e+00> : vector<4x128xf32>
    %330 = tpu.matmul %328, %329, %cst_300 {dimension_numbers = #tpu.dot_dimension_numbers<[1], [0], [0], [1], [0, 0, 1, 1], [], []>} : vector<4x128xbf16>, vector<128x128xbf16>, vector<4x128xf32> -> vector<4x128xf32>
    %331 = arith.truncf %325 : vector<4x256xf32> to vector<4x256xbf16>
    %c128 = arith.constant 128 : index
    %c0_301 = arith.constant 0 : index
    %332 = vector.load %arg13[%c128, %c0_301] : memref<384x128xbf16, #tpu.memory_space<vmem>>, vector<256x128xbf16>
    %cst_302 = arith.constant dense<0.000000e+00> : vector<4x128xf32>
    %333 = tpu.matmul %331, %332, %cst_302 {dimension_numbers = #tpu.dot_dimension_numbers<[1], [0], [0], [1], [0, 0, 1, 1], [], []>} : vector<4x256xbf16>, vector<256x128xbf16>, vector<4x128xf32> -> vector<4x128xf32>
    %334 = arith.addf %330, %333 : vector<4x128xf32>
    %c2_303 = arith.constant 2 : index
    %c0_304 = arith.constant 0 : index
    %335 = vector.load %arg4[%c2_303, %c0_304] : memref<5x512xf32, #tpu.memory_space<vmem>>, vector<1x128xf32>
    %336 = vector.broadcast %335 : vector<1x128xf32> to vector<4x128xf32>
    %337 = arith.addf %334, %336 : vector<4x128xf32>
    %cst_305 = arith.constant 0.000000e+00 : f32
    %338 = vector.broadcast %cst_305 : f32 to vector<4x128xf32>
    %339 = arith.maximumf %337, %338 : vector<4x128xf32>
    %c3_306 = arith.constant 3 : index
    %c0_307 = arith.constant 0 : index
    %340 = vector.load %arg4[%c3_306, %c0_307] : memref<5x512xf32, #tpu.memory_space<vmem>>, vector<1x128xf32>
    %341 = vector.broadcast %340 : vector<1x128xf32> to vector<4x128xf32>
    %342 = arith.mulf %339, %341 : vector<4x128xf32>
    %cst_308 = arith.constant dense<0.000000e+00> : vector<4xf32>
    %343 = vector.multi_reduction <add>, %342, %cst_308 [1] : vector<4x128xf32> to vector<4xf32>
    %344 = vector.shape_cast %343 : vector<4xf32> to vector<4x1xf32>
    %c4_309 = arith.constant 4 : index
    %c0_310 = arith.constant 0 : index
    %345 = vector.load %arg4[%c4_309, %c0_310] : memref<5x512xf32, #tpu.memory_space<vmem>>, vector<1x1xf32>
    %346 = vector.broadcast %345 : vector<1x1xf32> to vector<4x1xf32>
    %347 = arith.addf %344, %346 : vector<4x1xf32>
    %348 = math.absf %347 : vector<4x1xf32>
    %cst_311 = arith.constant 0.000000e+00 : f32
    %349 = vector.broadcast %cst_311 : f32 to vector<4x1xf32>
    %350 = arith.subf %349, %348 : vector<4x1xf32>
    %351 = math.exp %350 : vector<4x1xf32>
    %cst_312 = arith.constant 0.000000e+00 : f32
    %352 = vector.broadcast %cst_312 : f32 to vector<4x1xf32>
    %353 = arith.cmpf oge, %347, %352 : vector<4x1xf32>
    %cst_313 = arith.constant 1.000000e+00 : f32
    %354 = vector.broadcast %cst_313 : f32 to vector<4x1xf32>
    %355 = arith.select %353, %354, %351 : vector<4x1xi1>, vector<4x1xf32>
    %cst_314 = arith.constant 1.000000e+00 : f32
    %356 = vector.broadcast %cst_314 : f32 to vector<4x1xf32>
    %357 = arith.addf %356, %351 : vector<4x1xf32>
    %358 = arith.divf %355, %357 : vector<4x1xf32>
    %359 = vector.shape_cast %347 : vector<4x1xf32> to vector<4x1xf32>
    %360 = vector.broadcast %359 : vector<4x1xf32> to vector<4x128xf32>
    %361 = vector.shape_cast %358 : vector<4x1xf32> to vector<4x1xf32>
    %362 = vector.broadcast %361 : vector<4x1xf32> to vector<4x128xf32>
    %363 = tpu.concatenate %360, %362 in 0 : vector<4x128xf32>, vector<4x128xf32> -> vector<8x128xf32>
    %c0_315 = arith.constant 0 : index
    %c0_316 = arith.constant 0 : index
    %364 = vector.load %arg9[%c0_315, %c0_316] : memref<8x128xf32, #tpu.memory_space<vmem>>, vector<8x128xf32>
    tpu.vector_store %arg9[%c0_315, %c0_316], %363 {strides = array<i32>} : memref<8x128xf32, #tpu.memory_space<vmem>>, vector<8x128xf32>,
    return
  }
}

</mosaic_0001>

<llo_original>
// kernel: binary_classifier_forward.1
$region0: #{binary_classifier_forward.1}
  #allocation0 [shape = 'u32[]', space=smem, size = 0x4, offset = 0x4, fixed_abs, tag = 'smem constant byte address 0x4 - core index']
  #allocation1 [shape = 'u32[72,128]{1,0:T(1,128)}', space=vmem, size = 0x9000, scoped, tag = 'internal scratch']
  #allocation2 [shape = 'bf16[7,3,128,128]{3,2,1,0:T(8,128)(2,1)}', space=vmem, size = 0xa8000, scoped, tag = 'scratch operand']
  #allocation3 [shape = 'bf16[64,512]{1,0:T(8,128)(2,1)}', space=vmem, size = 0x10000, scoped, tag = 'scratch operand']
  #allocation4 [shape = 'bf16[512,256]{1,0:T(8,128)(2,1)}', space=vmem, size = 0x40000, scoped, tag = 'scratch operand']
  #allocation5 [shape = 'bf16[384,128]{1,0:T(8,128)(2,1)}', space=vmem, size = 0x18000, scoped, tag = 'scratch operand']
  #allocation6 [shape = 'f32[128,128]{1,0:T(8,128)}', space=vmem, size = 0x10000, scoped, tag = 'scratch operand']
  #allocation7 [shape = 's32[10]{0}', space=sflag, size = 0x28, scoped, tag = 'scratch operand']
  #allocation12 [shape = 's32[]', space=sflag, size = 0x4, offset = 0, fixed_abs, tag = 'sflag constant byte address 0x0 - dummy sync flag']
  #allocation13 [shape = 's32[]', space=sflag, size = 0x4, offset = 0, fixed_abs, tag = 'sflag constant byte address 0x0 - dummy sync flag']
  #allocation14 [shape = 'u32[]', space=smem, size = 0x4, offset = 0x44, fixed_abs, tag = 'smem constant byte address 0x44 - assertion arg 0']
  #allocation15 [shape = 'u32[]', space=smem, size = 0x4, offset = 0x48, fixed_abs, tag = 'smem constant byte address 0x48 - assertion arg 1']
  #allocation16 [shape = 's32[]', space=sflag, size = 0x4, offset = 0, fixed_abs, tag = 'sflag constant byte address 0x0 - dummy sync flag']
  #allocation17 [shape = 's32[]', space=sflag, size = 0x4, offset = 0, fixed_abs, tag = 'sflag constant byte address 0x0 - dummy sync flag']
  #allocation18 [shape = 's32[]', space=sflag, size = 0x4, offset = 0, fixed_abs, tag = 'sflag constant byte address 0x0 - dummy sync flag']
  #allocation19 [shape = 's32[]', space=sflag, size = 0x4, offset = 0, fixed_abs, tag = 'sflag constant byte address 0x0 - dummy sync flag']
  #allocation20 [shape = 's32[]', space=sflag, size = 0x4, offset = 0, fixed_abs, tag = 'sflag constant byte address 0x0 - dummy sync flag']
  #allocation21 [shape = 's32[]', space=sflag, size = 0x4, offset = 0, fixed_abs, tag = 'sflag constant byte address 0x0 - dummy sync flag']
  #allocation22 [shape = 's32[]', space=sflag, size = 0x4, offset = 0, fixed_abs, tag = 'sflag constant byte address 0x0 - dummy sync flag']
  #allocation23 [shape = 's32[]', space=sflag, size = 0x4, offset = 0, fixed_abs, tag = 'sflag constant byte address 0x0 - dummy sync flag']
  #allocation24 [shape = 's32[]', space=sflag, size = 0x4, offset = 0, fixed_abs, tag = 'sflag constant byte address 0x0 - dummy sync flag']
  #allocation25 [shape = 's32[]', space=sflag, size = 0x4, offset = 0, fixed_abs, tag = 'sflag constant byte address 0x0 - dummy sync flag']
  #allocation26 [shape = 's32[]', space=sflag, size = 0x4, offset = 0, fixed_abs, tag = 'sflag constant byte address 0x0 - dummy sync flag']
  #allocation27 [shape = 's32[]', space=sflag, size = 0x4, offset = 0, fixed_abs, tag = 'sflag constant byte address 0x0 - dummy sync flag']
  #allocation28 [shape = 's32[]', space=sflag, size = 0x4, offset = 0, fixed_abs, tag = 'sflag constant byte address 0x0 - dummy sync flag']
  #allocation29 [shape = 's32[]', space=sflag, size = 0x4, offset = 0, fixed_abs, tag = 'sflag constant byte address 0x0 - dummy sync flag']
  #allocation30 [shape = 's32[]', space=sflag, size = 0x4, offset = 0, fixed_abs, tag = 'sflag constant byte address 0x0 - dummy sync flag']
  #allocation31 [shape = 's32[]', space=sflag, size = 0x4, offset = 0, fixed_abs, tag = 'sflag constant byte address 0x0 - dummy sync flag']
  #allocation32 [shape = 's32[]', space=sflag, size = 0x4, offset = 0, fixed_abs, tag = 'sflag constant byte address 0x0 - dummy sync flag']
  %s0 = inlined_call_operand.vmem [shape: s32[128,1], index: 0, kind: input, shape index: {}]
  %s1 = inlined_call_operand.vmem [shape: f32[4,95], index: 1, kind: input, shape index: {}]
  %s2 = inlined_call_operand.hbm [shape: bf16[128,128], index: 2, kind: input, shape index: {}]
  %s3 = inlined_call_operand.vmem [shape: f32[7,128], index: 3, kind: input, shape index: {}]
  %s4 = inlined_call_operand.hbm [shape: f32[5,512], index: 4, kind: input, shape index: {}]
  %s5 = inlined_call_operand.hbm [shape: bf16[7,3,128,128], index: 5, kind: input, shape index: {}]
  %s6 = inlined_call_operand.vmem [shape: bf16[64,512], index: 6, kind: input, shape index: {}]
  %s7 = inlined_call_operand.hbm [shape: bf16[512,256], index: 7, kind: input, shape index: {}]
  %s8 = inlined_call_operand.hbm [shape: bf16[384,128], index: 8, kind: input, shape index: {}]
  %s9 = inlined_call_operand.vmem [shape: f32[8,128], index: 9, kind: output, shape index: {}]
  %s10 = sld [smem:[#allocation0]]
  $region93: #{binary_classifier_forward.1} parent=0
    _
  %s12 = ssub.s32 1, %s10
  %s13 = scalar_select 0, %s12, %s10
  $region1: #{binary_classifier_forward.1} parent=0
    #allocation8 [shape = 'u8[32768]{0}', space=vmem, size = 0x8000, scoped, tag = 'input window, operand 2, single buffered']
    #allocation9 [shape = 's32[1]{0}', space=sflag, size = 0x4, scoped, tag = 'scoped memory for binary_classifier_forward.1']
    #allocation10 [shape = 'u8[16384]{0}', space=vmem, size = 0x4000, scoped, tag = 'input window, operand 4, single buffered']
    #allocation11 [shape = 's32[1]{0}', space=sflag, size = 0x4, scoped, tag = 'scoped memory for binary_classifier_forward.1']
    %14 = vsyncpa [#allocation9], 0
    %15 = vsyncpa [#allocation11], 0
    // Predicated region
    $region2: #{binary_classifier_forward.1} parent=1 // pred_check
      _
    $region3: #{binary_classifier_forward.1} parent=1 // pred_check_branch
      %17 = sbr.rel (0) target = $region5
    $region4: #{binary_classifier_forward.1} parent=1 // pred_region
      _
    $region5: #{binary_classifier_forward.1} parent=1 // pred_fallthru
      _
    // Predicated region
    $region6: #{binary_classifier_forward.1} parent=1 // pred_check
      _
    $region7: #{binary_classifier_forward.1} parent=1 // pred_check_branch
      %19 = sbr.rel (0) target = $region9
    $region8: #{binary_classifier_forward.1} parent=1 // pred_region
      _
    $region9: #{binary_classifier_forward.1} parent=1 // pred_fallthru
      _
    // Predicated region
    $region10: #{binary_classifier_forward.1} parent=1 // pred_check
      _
    $region11: #{binary_classifier_forward.1} parent=1 // pred_check_branch
      %21 = sbr.rel (0) target = $region13
    $region12: #{binary_classifier_forward.1} parent=1 // pred_region
      %23 = vsyncadd [#allocation9], 0
      %s24 = sshll.u32 %s2, 4
      %s25 = int_to_ptr.hbm [resolvable:$true] %s24
      %s26 = sshll.u32 [#allocation8], 4
      %s27 = int_to_ptr.vmem [resolvable:$true] %s26
      %32 = dma.hbm_to_vmem [thread:$0]  %s25, 1024, %s27, [#allocation9], 64, 64, 4
    $region13: #{binary_classifier_forward.1} parent=1 // pred_fallthru
      _
    // Predicated region
    $region14: #{binary_classifier_forward.1} parent=1 // pred_check
      _
    $region15: #{binary_classifier_forward.1} parent=1 // pred_check_branch
      %34 = sbr.rel (0) target = $region17
    $region16: #{binary_classifier_forward.1} parent=1 // pred_region
      _
    $region17: #{binary_classifier_forward.1} parent=1 // pred_fallthru
      _
    // Predicated region
    $region18: #{binary_classifier_forward.1} parent=1 // pred_check
      _
    $region19: #{binary_classifier_forward.1} parent=1 // pred_check_branch
      %36 = sbr.rel (0) target = $region21
    $region20: #{binary_classifier_forward.1} parent=1 // pred_region
      %38 = vsyncadd [#allocation11], 0
      %s40 = sshll.u32 %s4, 4
      %s41 = int_to_ptr.hbm [resolvable:$true] %s40
      %s42 = sshll.u32 [#allocation10], 4
      %s43 = int_to_ptr.vmem [resolvable:$true] %s42
      %45 = dma.hbm_to_vmem [thread:$0]  %s41, 512, %s43, [#allocation11]
    $region21: #{binary_classifier_forward.1} parent=1 // pred_fallthru
      _
    // Predicated region
    $region22: #{binary_classifier_forward.1} parent=1 // pred_check
      _
    $region23: #{binary_classifier_forward.1} parent=1 // pred_check_branch
      %47 = sbr.rel (0) target = $region25
    $region24: #{binary_classifier_forward.1} parent=1 // pred_region
      %49 = dma.done [#allocation9], 1024
    $region25: #{binary_classifier_forward.1} parent=1 // pred_fallthru
      _
    // Predicated region
    $region26: #{binary_classifier_forward.1} parent=1 // pred_check
      _
    $region27: #{binary_classifier_forward.1} parent=1 // pred_check_branch
      %51 = sbr.rel (0) target = $region29
    $region28: #{binary_classifier_forward.1} parent=1 // pred_region
      %53 = dma.done [#allocation11], 512
    $region29: #{binary_classifier_forward.1} parent=1 // pred_fallthru
      _
    // Predicated region
    $region30: #{binary_classifier_forward.1} parent=1 // pred_check
      _
    $region31: #{binary_classifier_forward.1} parent=1 // pred_check_branch
      %56 = sbr.rel target = $region33
    $region32: #{binary_classifier_forward.1} parent=1 // pred_region
      %57 = sst [smem:[#allocation14]] [#allocation13]
      %58 = sst [smem:[#allocation15]] [#allocation12]
    $region33: #{binary_classifier_forward.1} parent=1 // pred_fallthru
      _
    %60 = shalt.err (0)
    %s62 = sshll.u32 %s5, 4
    %s63 = int_to_ptr.hbm [resolvable:$true] %s62
    %s64 = sshll.u32 [#allocation2], 4
    %s65 = int_to_ptr.vmem [resolvable:$true] %s64
    %67 = dma.hbm_to_vmem [thread:$0]  %s63, 3072, %s65, [#allocation7]
    %s68 = scalar_lea.hbm %s5, 192
    %s69 = scalar_lea.vmem [#allocation2], 192
    %s70 = scalar_lea.sflag [#allocation7], 1
    // Predicated region
    $region34: #{binary_classifier_forward.1} parent=1 // pred_check
      _
    $region35: #{binary_classifier_forward.1} parent=1 // pred_check_branch
      %72 = sbr.rel target = $region37
    $region36: #{binary_classifier_forward.1} parent=1 // pred_region
      %73 = sst [smem:[#allocation14]] [#allocation17]
      %74 = sst [smem:[#allocation15]] [#allocation16]
    $region37: #{binary_classifier_forward.1} parent=1 // pred_fallthru
      _
    %76 = shalt.err (0)
    %s78 = sshll.u32 %s68, 4
    %s79 = int_to_ptr.hbm [resolvable:$true] %s78
    %s80 = sshll.u32 %s69, 4
    %s81 = int_to_ptr.vmem [resolvable:$true] %s80
    %83 = dma.hbm_to_vmem [thread:$0]  %s79, 3072, %s81, %s70
    %s84 = scalar_lea.hbm %s5, 384
    %s85 = scalar_lea.vmem [#allocation2], 384
    %s86 = scalar_lea.sflag [#allocation7], 2
    // Predicated region
    $region38: #{binary_classifier_forward.1} parent=1 // pred_check
      _
    $region39: #{binary_classifier_forward.1} parent=1 // pred_check_branch
      %88 = sbr.rel target = $region41
    $region40: #{binary_classifier_forward.1} parent=1 // pred_region
      %89 = sst [smem:[#allocation14]] [#allocation19]
      %90 = sst [smem:[#allocation15]] [#allocation18]
    $region41: #{binary_classifier_forward.1} parent=1 // pred_fallthru
      _
    %92 = shalt.err (0)
    %s94 = sshll.u32 %s84, 4
    %s95 = int_to_ptr.hbm [resolvable:$true] %s94
    %s96 = sshll.u32 %s85, 4
    %s97 = int_to_ptr.vmem [resolvable:$true] %s96
    %99 = dma.hbm_to_vmem [thread:$0]  %s95, 3072, %s97, %s86
    %s100 = scalar_lea.hbm %s5, 576
    %s101 = scalar_lea.vmem [#allocation2], 576
    %s102 = scalar_lea.sflag [#allocation7], 3
    // Predicated region
    $region42: #{binary_classifier_forward.1} parent=1 // pred_check
      _
    $region43: #{binary_classifier_forward.1} parent=1 // pred_check_branch
      %104 = sbr.rel target = $region45
    $region44: #{binary_classifier_forward.1} parent=1 // pred_region
      %105 = sst [smem:[#allocation14]] [#allocation21]
      %106 = sst [smem:[#allocation15]] [#allocation20]
    $region45: #{binary_classifier_forward.1} parent=1 // pred_fallthru
      _
    %108 = shalt.err (0)
    %s110 = sshll.u32 %s100, 4
    %s111 = int_to_ptr.hbm [resolvable:$true] %s110
    %s112 = sshll.u32 %s101, 4
    %s113 = int_to_ptr.vmem [resolvable:$true] %s112
    %115 = dma.hbm_to_vmem [thread:$0]  %s111, 3072, %s113, %s102
    %s116 = scalar_lea.hbm %s5, 768
    %s117 = scalar_lea.vmem [#allocation2], 768
    %s118 = scalar_lea.sflag [#allocation7], 4
    // Predicated region
    $region46: #{binary_classifier_forward.1} parent=1 // pred_check
      _
    $region47: #{binary_classifier_forward.1} parent=1 // pred_check_branch
      %120 = sbr.rel target = $region49
    $region48: #{binary_classifier_forward.1} parent=1 // pred_region
      %121 = sst [smem:[#allocation14]] [#allocation23]
      %122 = sst [smem:[#allocation15]] [#allocation22]
    $region49: #{binary_classifier_forward.1} parent=1 // pred_fallthru
      _
    %124 = shalt.err (0)
    %s126 = sshll.u32 %s116, 4
    %s127 = int_to_ptr.hbm [resolvable:$true] %s126
    %s128 = sshll.u32 %s117, 4
    %s129 = int_to_ptr.vmem [resolvable:$true] %s128
    %131 = dma.hbm_to_vmem [thread:$0]  %s127, 3072, %s129, %s118
    %s132 = scalar_lea.hbm %s5, 960
    %s133 = scalar_lea.vmem [#allocation2], 960
    %s134 = scalar_lea.sflag [#allocation7], 5
    // Predicated region
    $region50: #{binary_classifier_forward.1} parent=1 // pred_check
      _
    $region51: #{binary_classifier_forward.1} parent=1 // pred_check_branch
      %136 = sbr.rel target = $region53
    $region52: #{binary_classifier_forward.1} parent=1 // pred_region
      %137 = sst [smem:[#allocation14]] [#allocation25]
      %138 = sst [smem:[#allocation15]] [#allocation24]
    $region53: #{binary_classifier_forward.1} parent=1 // pred_fallthru
      _
    %140 = shalt.err (0)
    %s142 = sshll.u32 %s132, 4
    %s143 = int_to_ptr.hbm [resolvable:$true] %s142
    %s144 = sshll.u32 %s133, 4
    %s145 = int_to_ptr.vmem [resolvable:$true] %s144
    %147 = dma.hbm_to_vmem [thread:$0]  %s143, 3072, %s145, %s134
    %s148 = scalar_lea.hbm %s5, 1152
    %s149 = scalar_lea.vmem [#allocation2], 1152
    %s150 = scalar_lea.sflag [#allocation7], 6
    // Predicated region
    $region54: #{binary_classifier_forward.1} parent=1 // pred_check
      _
    $region55: #{binary_classifier_forward.1} parent=1 // pred_check_branch
      %152 = sbr.rel target = $region57
    $region56: #{binary_classifier_forward.1} parent=1 // pred_region
      %153 = sst [smem:[#allocation14]] [#allocation27]
      %154 = sst [smem:[#allocation15]] [#allocation26]
    $region57: #{binary_classifier_forward.1} parent=1 // pred_fallthru
      _
    %156 = shalt.err (0)
    %s158 = sshll.u32 %s148, 4
    %s159 = int_to_ptr.hbm [resolvable:$true] %s158
    %s160 = sshll.u32 %s149, 4
    %s161 = int_to_ptr.vmem [resolvable:$true] %s160
    %163 = dma.hbm_to_vmem [thread:$0]  %s159, 3072, %s161, %s150
    %s164 = scalar_lea.sflag [#allocation7], 7
    // Predicated region
    $region58: #{binary_classifier_forward.1} parent=1 // pred_check
      _
    $region59: #{binary_classifier_forward.1} parent=1 // pred_check_branch
      %166 = sbr.rel (0) target = $region61
    $region60: #{binary_classifier_forward.1} parent=1 // pred_region
      loop: start=0, step=1, limit=1
      $region62: #{binary_classifier_forward.1} parent=60 // loop_pre_header
        _
      $region63: #{binary_classifier_forward.1} parent=60 // loop_header
        %s168 = sphi 0, %s172
        %p169 = scmp.ge.s32.totalorder %s168, 1
        %s173 = sphi %s6, %s6
        %s174 = sphi [#allocation3], [#allocation3]
      $region64: #{binary_classifier_forward.1} parent=60 // loop_header_branch
        %171 = sbr.rel (%p169) target = $region68
      $region65: #{binary_classifier_forward.1} parent=60 // loop_body
        %v175 = vld [vmem:[%s173] sm:$0xff]
        %176 = vst [vmem:[%s174] sm:$0xff] %v175
        %v177 = vld [vmem:[%s173 + $0x8] sm:$0xff]
        %178 = vst [vmem:[%s174 + $0x8] sm:$0xff] %v177
        %v179 = vld [vmem:[%s173 + $0x10] sm:$0xff]
        %180 = vst [vmem:[%s174 + $0x10] sm:$0xff] %v179
        %v181 = vld [vmem:[%s173 + $0x18] sm:$0xff]
        %182 = vst [vmem:[%s174 + $0x18] sm:$0xff] %v181
        %v183 = vld [vmem:[%s173 + $0x20] sm:$0xff]
        %184 = vst [vmem:[%s174 + $0x20] sm:$0xff] %v183
        %v185 = vld [vmem:[%s173 + $0x28] sm:$0xff]
        %186 = vst [vmem:[%s174 + $0x28] sm:$0xff] %v185
        %v187 = vld [vmem:[%s173 + $0x30] sm:$0xff]
        %188 = vst [vmem:[%s174 + $0x30] sm:$0xff] %v187
        %v189 = vld [vmem:[%s173 + $0x38] sm:$0xff]
        %190 = vst [vmem:[%s174 + $0x38] sm:$0xff] %v189
        %v191 = vld [vmem:[%s173 + $0x40] sm:$0xff]
        %192 = vst [vmem:[%s174 + $0x40] sm:$0xff] %v191
        %v193 = vld [vmem:[%s173 + $0x48] sm:$0xff]
        %194 = vst [vmem:[%s174 + $0x48] sm:$0xff] %v193
        %v195 = vld [vmem:[%s173 + $0x50] sm:$0xff]
        %196 = vst [vmem:[%s174 + $0x50] sm:$0xff] %v195
        %v197 = vld [vmem:[%s173 + $0x58] sm:$0xff]
        %198 = vst [vmem:[%s174 + $0x58] sm:$0xff] %v197
        %v199 = vld [vmem:[%s173 + $0x60] sm:$0xff]
        %200 = vst [vmem:[%s174 + $0x60] sm:$0xff] %v199
        %v201 = vld [vmem:[%s173 + $0x68] sm:$0xff]
        %202 = vst [vmem:[%s174 + $0x68] sm:$0xff] %v201
        %v203 = vld [vmem:[%s173 + $0x70] sm:$0xff]
        %204 = vst [vmem:[%s174 + $0x70] sm:$0xff] %v203
        %v205 = vld [vmem:[%s173 + $0x78] sm:$0xff]
        %206 = vst [vmem:[%s174 + $0x78] sm:$0xff] %v205
      $region66: #{binary_classifier_forward.1} parent=60 // loop_footer
        %s172 = sadd.s32 1, %s168
      $region67: #{binary_classifier_forward.1} parent=60 // loop_footer_branch
        %167 = sbr.rel target = $region63
      $region68: #{binary_classifier_forward.1} parent=60 // loop_exit
        _
    $region61: #{binary_classifier_forward.1} parent=1 // pred_fallthru
      _
    // Predicated region
    $region69: #{binary_classifier_forward.1} parent=1 // pred_check
      _
    $region70: #{binary_classifier_forward.1} parent=1 // pred_check_branch
      %208 = sbr.rel target = $region72
    $region71: #{binary_classifier_forward.1} parent=1 // pred_region
      _
    $region72: #{binary_classifier_forward.1} parent=1 // pred_fallthru
      _
    // Predicated region
    $region73: #{binary_classifier_forward.1} parent=1 // pred_check
      _
    $region74: #{binary_classifier_forward.1} parent=1 // pred_check_branch
      %211 = sbr.rel (0) target = $region76
    $region75: #{binary_classifier_forward.1} parent=1 // pred_region
      %212 = vsyncadd %s164, 2048
    $region76: #{binary_classifier_forward.1} parent=1 // pred_fallthru
      _
    %s213 = scalar_lea.sflag [#allocation7], 8
    // Predicated region
    $region77: #{binary_classifier_forward.1} parent=1 // pred_check
      _
    $region78: #{binary_classifier_forward.1} parent=1 // pred_check_branch
      %215 = sbr.rel target = $region80
    $region79: #{binary_classifier_forward.1} parent=1 // pred_region
      %216 = sst [smem:[#allocation14]] [#allocation30]
      %217 = sst [smem:[#allocation15]] [#allocation29]
    $region80: #{binary_classifier_forward.1} parent=1 // pred_fallthru
      _
    %219 = shalt.err (0)
    %s221 = sshll.u32 %s7, 4
    %s222 = int_to_ptr.hbm [resolvable:$true] %s221
    %s223 = sshll.u32 [#allocation4], 4
    %s224 = int_to_ptr.vmem [resolvable:$true] %s223
    %226 = dma.hbm_to_vmem [thread:$0]  %s222, 8192, %s224, %s213
    %s227 = scalar_lea.sflag [#allocation7], 9
    // Predicated region
    $region81: #{binary_classifier_forward.1} parent=1 // pred_check
      _
    $region82: #{binary_classifier_forward.1} parent=1 // pred_check_branch
      %229 = sbr.rel target = $region84
    $region83: #{binary_classifier_forward.1} parent=1 // pred_region
      %230 = sst [smem:[#allocation14]] [#allocation32]
      %231 = sst [smem:[#allocation15]] [#allocation31]
    $region84: #{binary_classifier_forward.1} parent=1 // pred_fallthru
      _
    %233 = shalt.err (0)
    %s235 = sshll.u32 %s8, 4
    %s236 = int_to_ptr.hbm [resolvable:$true] %s235
    %s237 = sshll.u32 [#allocation5], 4
    %s238 = int_to_ptr.vmem [resolvable:$true] %s237
    %240 = dma.hbm_to_vmem [thread:$0]  %s236, 3072, %s238, %s227
    %v241 = vlaneseq
    %v242 = vshrl.u32 %v241, 7
    %v243 = vadd.s32 %v242, 8
    %v244 = vadd.s32 %v242, 16
    %v245 = vadd.s32 %v242, 24
    %v246 = vadd.s32 %v242, 32
    %v247 = vadd.s32 %v242, 40
    %v248 = vadd.s32 %v242, 48
    %v249 = vadd.s32 %v242, 56
    %v250 = vadd.s32 %v242, 64
    %v251 = vadd.s32 %v242, 72
    %v252 = vadd.s32 %v242, 80
    %v253 = vadd.s32 %v242, 88
    %v254 = vadd.s32 %v242, 96
    %v255 = vadd.s32 %v242, 104
    %v256 = vadd.s32 %v242, 112
    %v257 = vadd.s32 %v242, 120
    %v258 = vand.u32 %v242, 31
    %v259 = vand.u32 %v243, 31
    %v260 = vand.u32 %v244, 31
    %v261 = vand.u32 %v245, 31
    %v262 = vand.u32 %v246, 31
    %v263 = vand.u32 %v247, 31
    %v264 = vand.u32 %v248, 31
    %v265 = vand.u32 %v249, 31
    %v266 = vand.u32 %v250, 31
    %v267 = vand.u32 %v251, 31
    %v268 = vand.u32 %v252, 31
    %v269 = vand.u32 %v253, 31
    %v270 = vand.u32 %v254, 31
    %v271 = vand.u32 %v255, 31
    %v272 = vand.u32 %v256, 31
    %v273 = vand.u32 %v257, 31
    %vm274 = vcmp.ne.s32.totalorder %v258, 31
    %vm275 = vcmp.ne.s32.totalorder %v259, 31
    %vm276 = vcmp.ne.s32.totalorder %v260, 31
    %vm277 = vcmp.ne.s32.totalorder %v261, 31
    %vm278 = vcmp.ne.s32.totalorder %v262, 31
    %vm279 = vcmp.ne.s32.totalorder %v263, 31
    %vm280 = vcmp.ne.s32.totalorder %v264, 31
    %vm281 = vcmp.ne.s32.totalorder %v265, 31
    %vm282 = vcmp.ne.s32.totalorder %v266, 31
    %vm283 = vcmp.ne.s32.totalorder %v267, 31
    %vm284 = vcmp.ne.s32.totalorder %v268, 31
    %vm285 = vcmp.ne.s32.totalorder %v269, 31
    %vm286 = vcmp.ne.s32.totalorder %v270, 31
    %vm287 = vcmp.ne.s32.totalorder %v271, 31
    %vm288 = vcmp.ne.s32.totalorder %v272, 31
    %vm289 = vcmp.ne.s32.totalorder %v273, 31
    %v290 = vand.u32 %v242, 15
    %v291 = vand.u32 %v243, 15
    %v292 = vand.u32 %v244, 15
    %v293 = vand.u32 %v245, 15
    %v294 = vand.u32 %v246, 15
    %v295 = vand.u32 %v247, 15
    %v296 = vand.u32 %v248, 15
    %v297 = vand.u32 %v249, 15
    %vm298 = vcmp.ne.s32.totalorder %v290, 15
    %vm299 = vcmp.ne.s32.totalorder %v291, 15
    %vm300 = vcmp.ne.s32.totalorder %v292, 15
    %vm301 = vcmp.ne.s32.totalorder %v293, 15
    %vm302 = vcmp.ne.s32.totalorder %v294, 15
    %vm303 = vcmp.ne.s32.totalorder %v295, 15
    %vm304 = vcmp.ne.s32.totalorder %v296, 15
    %vm305 = vcmp.ne.s32.totalorder %v297, 15
    %v306 = vand.u32 %v242, 7
    %v307 = vand.u32 %v243, 7
    %v308 = vand.u32 %v244, 7
    %v309 = vand.u32 %v245, 7
    %vm310 = vcmp.ne.s32.totalorder %v306, 7
    %vm311 = vcmp.ne.s32.totalorder %v307, 7
    %vm312 = vcmp.ne.s32.totalorder %v308, 7
    %vm313 = vcmp.ne.s32.totalorder %v309, 7
    %v314 = vlaneseq
    %v315 = vand.u32 %v314, 127
    %v316 = vld [vmem:[%s0] sm:$0xff]
    %v317 = vld [vmem:[%s0 + $0x8] sm:$0xff]
    %v318 = vld [vmem:[%s0 + $0x10] sm:$0xff]
    %v319 = vld [vmem:[%s0 + $0x18] sm:$0xff]
    %v320 = vld [vmem:[%s0 + $0x20] sm:$0xff]
    %v321 = vld [vmem:[%s0 + $0x28] sm:$0xff]
    %v322 = vld [vmem:[%s0 + $0x30] sm:$0xff]
    %v323 = vld [vmem:[%s0 + $0x38] sm:$0xff]
    %v324 = vld [vmem:[%s0 + $0x40] sm:$0xff]
    %v325 = vld [vmem:[%s0 + $0x48] sm:$0xff]
    %v326 = vld [vmem:[%s0 + $0x50] sm:$0xff]
    %v327 = vld [vmem:[%s0 + $0x58] sm:$0xff]
    %v328 = vld [vmem:[%s0 + $0x60] sm:$0xff]
    %v329 = vld [vmem:[%s0 + $0x68] sm:$0xff]
    %v330 = vld [vmem:[%s0 + $0x70] sm:$0xff]
    %v331 = vld [vmem:[%s0 + $0x78] sm:$0xff]
    %332 = vset.pattern.permute.xlu0 0
    %333 = vperm.xlu0 %332, %v316
    %v334 = vpop.permute.xlu0 %333
    %335 = vset.pattern.permute.xlu0 0
    %336 = vperm.xlu0 %335, %v317
    %v337 = vpop.permute.xlu0 %336
    %338 = vset.pattern.permute.xlu0 0
    %339 = vperm.xlu0 %338, %v318
    %v340 = vpop.permute.xlu0 %339
    %341 = vset.pattern.permute.xlu0 0
    %342 = vperm.xlu0 %341, %v319
    %v343 = vpop.permute.xlu0 %342
    %344 = vset.pattern.permute.xlu0 0
    %345 = vperm.xlu0 %344, %v320
    %v346 = vpop.permute.xlu0 %345
    %347 = vset.pattern.permute.xlu0 0
    %348 = vperm.xlu0 %347, %v321
    %v349 = vpop.permute.xlu0 %348
    %350 = vset.pattern.permute.xlu0 0
    %351 = vperm.xlu0 %350, %v322
    %v352 = vpop.permute.xlu0 %351
    %353 = vset.pattern.permute.xlu0 0
    %354 = vperm.xlu0 %353, %v323
    %v355 = vpop.permute.xlu0 %354
    %356 = vset.pattern.permute.xlu0 0
    %357 = vperm.xlu0 %356, %v324
    %v358 = vpop.permute.xlu0 %357
    %359 = vset.pattern.permute.xlu0 0
    %360 = vperm.xlu0 %359, %v325
    %v361 = vpop.permute.xlu0 %360
    %362 = vset.pattern.permute.xlu0 0
    %363 = vperm.xlu0 %362, %v326
    %v364 = vpop.permute.xlu0 %363
    %365 = vset.pattern.permute.xlu0 0
    %366 = vperm.xlu0 %365, %v327
    %v367 = vpop.permute.xlu0 %366
    %368 = vset.pattern.permute.xlu0 0
    %369 = vperm.xlu0 %368, %v328
    %v370 = vpop.permute.xlu0 %369
    %371 = vset.pattern.permute.xlu0 0
    %372 = vperm.xlu0 %371, %v329
    %v373 = vpop.permute.xlu0 %372
    %374 = vset.pattern.permute.xlu0 0
    %375 = vperm.xlu0 %374, %v330
    %v376 = vpop.permute.xlu0 %375
    %377 = vset.pattern.permute.xlu0 0
    %378 = vperm.xlu0 %377, %v331
    %v379 = vpop.permute.xlu0 %378
    %vm380 = vcmp.eq.s32.totalorder %v315, %v334
    %vm381 = vcmp.eq.s32.totalorder %v315, %v337
    %vm382 = vcmp.eq.s32.totalorder %v315, %v340
    %vm383 = vcmp.eq.s32.totalorder %v315, %v343
    %vm384 = vcmp.eq.s32.totalorder %v315, %v346
    %vm385 = vcmp.eq.s32.totalorder %v315, %v349
    %vm386 = vcmp.eq.s32.totalorder %v315, %v352
    %vm387 = vcmp.eq.s32.totalorder %v315, %v355
    %vm388 = vcmp.eq.s32.totalorder %v315, %v358
    %vm389 = vcmp.eq.s32.totalorder %v315, %v361
    %vm390 = vcmp.eq.s32.totalorder %v315, %v364
    %vm391 = vcmp.eq.s32.totalorder %v315, %v367
    %vm392 = vcmp.eq.s32.totalorder %v315, %v370
    %vm393 = vcmp.eq.s32.totalorder %v315, %v373
    %vm394 = vcmp.eq.s32.totalorder %v315, %v376
    %vm395 = vcmp.eq.s32.totalorder %v315, %v379
    %v396 = vsel %vm380, 1.0, 0.0
    %v397 = vsel %vm381, 1.0, 0.0
    %v398 = vsel %vm382, 1.0, 0.0
    %v399 = vsel %vm383, 1.0, 0.0
    %v400 = vsel %vm384, 1.0, 0.0
    %v401 = vsel %vm385, 1.0, 0.0
    %v402 = vsel %vm386, 1.0, 0.0
    %v403 = vsel %vm387, 1.0, 0.0
    %v404 = vsel %vm388, 1.0, 0.0
    %v405 = vsel %vm389, 1.0, 0.0
    %v406 = vsel %vm390, 1.0, 0.0
    %v407 = vsel %vm391, 1.0, 0.0
    %v408 = vsel %vm392, 1.0, 0.0
    %v409 = vsel %vm393, 1.0, 0.0
    %v410 = vsel %vm394, 1.0, 0.0
    %v411 = vsel %vm395, 1.0, 0.0
    %v412 = vpack.c.bf16 %v397, %v396
    %v413 = vpack.c.bf16 %v399, %v398
    %v414 = vpack.c.bf16 %v401, %v400
    %v415 = vpack.c.bf16 %v403, %v402
    %v416 = vpack.c.bf16 %v405, %v404
    %v417 = vpack.c.bf16 %v407, %v406
    %v418 = vpack.c.bf16 %v409, %v408
    %v419 = vpack.c.bf16 %v411, %v410
    %v420 = vld [vmem:[#allocation8] sm:$0xf]
    %v421 = vld [vmem:[#allocation8 + $0x4] sm:$0xf]
    %v422 = vld [vmem:[#allocation8 + $0x8] sm:$0xf]
    %v423 = vld [vmem:[#allocation8 + $0xc] sm:$0xf]
    %v424 = vld [vmem:[#allocation8 + $0x10] sm:$0xf]
    %v425 = vld [vmem:[#allocation8 + $0x14] sm:$0xf]
    %v426 = vld [vmem:[#allocation8 + $0x18] sm:$0xf]
    %v427 = vld [vmem:[#allocation8 + $0x1c] sm:$0xf]
    %v428 = vld [vmem:[#allocation8 + $0x20] sm:$0xf]
    %v429 = vld [vmem:[#allocation8 + $0x24] sm:$0xf]
    %v430 = vld [vmem:[#allocation8 + $0x28] sm:$0xf]
    %v431 = vld [vmem:[#allocation8 + $0x2c] sm:$0xf]
    %v432 = vld [vmem:[#allocation8 + $0x30] sm:$0xf]
    %v433 = vld [vmem:[#allocation8 + $0x34] sm:$0xf]
    %v434 = vld [vmem:[#allocation8 + $0x38] sm:$0xf]
    %v435 = vld [vmem:[#allocation8 + $0x3c] sm:$0xf]
    %v452 = vunpack.c.l.b16 %v420
    %v453 = vunpack.c.l.b16 %v421
    %v454 = vunpack.c.l.b16 %v422
    %v455 = vunpack.c.l.b16 %v423
    %v456 = vunpack.c.l.b16 %v424
    %v457 = vunpack.c.l.b16 %v425
    %v458 = vunpack.c.l.b16 %v426
    %v459 = vunpack.c.l.b16 %v427
    %v460 = vunpack.c.l.b16 %v428
    %v461 = vunpack.c.l.b16 %v429
    %v462 = vunpack.c.l.b16 %v430
    %v463 = vunpack.c.l.b16 %v431
    %v464 = vunpack.c.l.b16 %v432
    %v465 = vunpack.c.l.b16 %v433
    %v466 = vunpack.c.l.b16 %v434
    %v467 = vunpack.c.l.b16 %v435
    %v468 = vpack.c.b16 %v453, %v452
    %v469 = vpack.c.b16 %v455, %v454
    %v470 = vpack.c.b16 %v457, %v456
    %v471 = vpack.c.b16 %v459, %v458
    %v472 = vpack.c.b16 %v461, %v460
    %v473 = vpack.c.b16 %v463, %v462
    %v474 = vpack.c.b16 %v465, %v464
    %v475 = vpack.c.b16 %v467, %v466
    %484 = vmatpush.bf16.msra.mxu0 %v475
    %485 = vmatpush.bf16.msra.mxu0 %v474
    %486 = vmatpush.bf16.msra.mxu0 %v473
    %487 = vmatpush.bf16.msra.mxu0 %v472
    %488 = vmatpush.bf16.msra.mxu0 %v471
    %489 = vmatpush.bf16.msra.mxu0 %v470
    %490 = vmatpush.bf16.msra.mxu0 %v469
    %491 = vmatpush.bf16.msra.mxu0 %v468
    %492 = vmatmul.bf16.gmra.mxu0 %v412
    %v493 = vpop.f32.mrf.mxu0
    %v494 = vadd.f32 0.0, %v493
    %v495 = vpop.f32.mrf.mxu0
    %v496 = vadd.f32 0.0, %v495
    %497 = vmatmul.bf16.gmra.mxu0 %v413
    %v498 = vpop.f32.mrf.mxu0
    %v499 = vadd.f32 0.0, %v498
    %v500 = vpop.f32.mrf.mxu0
    %v501 = vadd.f32 0.0, %v500
    %502 = vmatmul.bf16.gmra.mxu0 %v414
    %v503 = vpop.f32.mrf.mxu0
    %v504 = vadd.f32 0.0, %v503
    %v505 = vpop.f32.mrf.mxu0
    %v506 = vadd.f32 0.0, %v505
    %507 = vmatmul.bf16.gmra.mxu0 %v415
    %v508 = vpop.f32.mrf.mxu0
    %v509 = vadd.f32 0.0, %v508
    %v510 = vpop.f32.mrf.mxu0
    %v511 = vadd.f32 0.0, %v510
    %512 = vmatmul.bf16.gmra.mxu0 %v416
    %v513 = vpop.f32.mrf.mxu0
    %v514 = vadd.f32 0.0, %v513
    %v515 = vpop.f32.mrf.mxu0
    %v516 = vadd.f32 0.0, %v515
    %517 = vmatmul.bf16.gmra.mxu0 %v417
    %v518 = vpop.f32.mrf.mxu0
    %v519 = vadd.f32 0.0, %v518
    %v520 = vpop.f32.mrf.mxu0
    %v521 = vadd.f32 0.0, %v520
    %522 = vmatmul.bf16.gmra.mxu0 %v418
    %v523 = vpop.f32.mrf.mxu0
    %v524 = vadd.f32 0.0, %v523
    %v525 = vpop.f32.mrf.mxu0
    %v526 = vadd.f32 0.0, %v525
    %527 = vmatmul.bf16.gmra.mxu0 %v419
    %v528 = vpop.f32.mrf.mxu0
    %v529 = vadd.f32 0.0, %v528
    %v530 = vpop.f32.mrf.mxu0
    %v531 = vadd.f32 0.0, %v530
    %532 = vdwg.mxu0
    %s533 = smul.u32 4, 3
    %s534 = smul.u32 %s533, 16
    %s535 = smul.u32 %s534, 1
    %s536 = sshll.u32 %s535, 4
    %537 = dma.done [#allocation7], %s536
    %v538 = vpack.c.bf16 %v496, %v494
    %v539 = vpack.c.bf16 %v501, %v499
    %v540 = vpack.c.bf16 %v506, %v504
    %v541 = vpack.c.bf16 %v511, %v509
    %v542 = vpack.c.bf16 %v516, %v514
    %v543 = vpack.c.bf16 %v521, %v519
    %v544 = vpack.c.bf16 %v526, %v524
    %v545 = vpack.c.bf16 %v531, %v529
    %v546 = vld [vmem:[#allocation2] sm:$0xf]
    %v547 = vld [vmem:[#allocation2 + $0x4] sm:$0xf]
    %v548 = vld [vmem:[#allocation2 + $0x8] sm:$0xf]
    %v549 = vld [vmem:[#allocation2 + $0xc] sm:$0xf]
    %v550 = vld [vmem:[#allocation2 + $0x10] sm:$0xf]
    %v551 = vld [vmem:[#allocation2 + $0x14] sm:$0xf]
    %v552 = vld [vmem:[#allocation2 + $0x18] sm:$0xf]
    %v553 = vld [vmem:[#allocation2 + $0x1c] sm:$0xf]
    %v554 = vld [vmem:[#allocation2 + $0x20] sm:$0xf]
    %v555 = vld [vmem:[#allocation2 + $0x24] sm:$0xf]
    %v556 = vld [vmem:[#allocation2 + $0x28] sm:$0xf]
    %v557 = vld [vmem:[#allocation2 + $0x2c] sm:$0xf]
    %v558 = vld [vmem:[#allocation2 + $0x30] sm:$0xf]
    %v559 = vld [vmem:[#allocation2 + $0x34] sm:$0xf]
    %v560 = vld [vmem:[#allocation2 + $0x38] sm:$0xf]
    %v561 = vld [vmem:[#allocation2 + $0x3c] sm:$0xf]
    %v578 = vunpack.c.l.b16 %v546
    %v579 = vunpack.c.l.b16 %v547
    %v580 = vunpack.c.l.b16 %v548
    %v581 = vunpack.c.l.b16 %v549
    %v582 = vunpack.c.l.b16 %v550
    %v583 = vunpack.c.l.b16 %v551
    %v584 = vunpack.c.l.b16 %v552
    %v585 = vunpack.c.l.b16 %v553
    %v586 = vunpack.c.l.b16 %v554
    %v587 = vunpack.c.l.b16 %v555
    %v588 = vunpack.c.l.b16 %v556
    %v589 = vunpack.c.l.b16 %v557
    %v590 = vunpack.c.l.b16 %v558
    %v591 = vunpack.c.l.b16 %v559
    %v592 = vunpack.c.l.b16 %v560
    %v593 = vunpack.c.l.b16 %v561
    %v594 = vpack.c.b16 %v579, %v578
    %v595 = vpack.c.b16 %v581, %v580
    %v596 = vpack.c.b16 %v583, %v582
    %v597 = vpack.c.b16 %v585, %v584
    %v598 = vpack.c.b16 %v587, %v586
    %v599 = vpack.c.b16 %v589, %v588
    %v600 = vpack.c.b16 %v591, %v590
    %v601 = vpack.c.b16 %v593, %v592
    %610 = vmatpush.bf16.msra.mxu0 %v601
    %611 = vmatpush.bf16.msra.mxu0 %v600
    %612 = vmatpush.bf16.msra.mxu0 %v599
    %613 = vmatpush.bf16.msra.mxu0 %v598
    %614 = vmatpush.bf16.msra.mxu0 %v597
    %615 = vmatpush.bf16.msra.mxu0 %v596
    %616 = vmatpush.bf16.msra.mxu0 %v595
    %617 = vmatpush.bf16.msra.mxu0 %v594
    %618 = vmatmul.bf16.gmra.mxu0 %v538
    %v619 = vpop.f32.mrf.mxu0
    %v620 = vadd.f32 0.0, %v619
    %v621 = vpop.f32.mrf.mxu0
    %v622 = vadd.f32 0.0, %v621
    %623 = vmatmul.bf16.gmra.mxu0 %v539
    %v624 = vpop.f32.mrf.mxu0
    %v625 = vadd.f32 0.0, %v624
    %v626 = vpop.f32.mrf.mxu0
    %v627 = vadd.f32 0.0, %v626
    %628 = vmatmul.bf16.gmra.mxu0 %v540
    %v629 = vpop.f32.mrf.mxu0
    %v630 = vadd.f32 0.0, %v629
    %v631 = vpop.f32.mrf.mxu0
    %v632 = vadd.f32 0.0, %v631
    %633 = vmatmul.bf16.gmra.mxu0 %v541
    %v634 = vpop.f32.mrf.mxu0
    %v635 = vadd.f32 0.0, %v634
    %v636 = vpop.f32.mrf.mxu0
    %v637 = vadd.f32 0.0, %v636
    %638 = vmatmul.bf16.gmra.mxu0 %v542
    %v639 = vpop.f32.mrf.mxu0
    %v640 = vadd.f32 0.0, %v639
    %v641 = vpop.f32.mrf.mxu0
    %v642 = vadd.f32 0.0, %v641
    %643 = vmatmul.bf16.gmra.mxu0 %v543
    %v644 = vpop.f32.mrf.mxu0
    %v645 = vadd.f32 0.0, %v644
    %v646 = vpop.f32.mrf.mxu0
    %v647 = vadd.f32 0.0, %v646
    %648 = vmatmul.bf16.gmra.mxu0 %v544
    %v649 = vpop.f32.mrf.mxu0
    %v650 = vadd.f32 0.0, %v649
    %v651 = vpop.f32.mrf.mxu0
    %v652 = vadd.f32 0.0, %v651
    %653 = vmatmul.bf16.gmra.mxu0 %v545
    %v654 = vpop.f32.mrf.mxu0
    %v655 = vadd.f32 0.0, %v654
    %v656 = vpop.f32.mrf.mxu0
    %v657 = vadd.f32 0.0, %v656
    %658 = vdwg.mxu0
    %s659 = scalar_lea.vmem [#allocation2], 64
    %v660 = vld [vmem:[%s659] sm:$0xf]
    %v661 = vld [vmem:[%s659 + $0x4] sm:$0xf]
    %v662 = vld [vmem:[%s659 + $0x8] sm:$0xf]
    %v663 = vld [vmem:[%s659 + $0xc] sm:$0xf]
    %v664 = vld [vmem:[%s659 + $0x10] sm:$0xf]
    %v665 = vld [vmem:[%s659 + $0x14] sm:$0xf]
    %v666 = vld [vmem:[%s659 + $0x18] sm:$0xf]
    %v667 = vld [vmem:[%s659 + $0x1c] sm:$0xf]
    %v668 = vld [vmem:[%s659 + $0x20] sm:$0xf]
    %v669 = vld [vmem:[%s659 + $0x24] sm:$0xf]
    %v670 = vld [vmem:[%s659 + $0x28] sm:$0xf]
    %v671 = vld [vmem:[%s659 + $0x2c] sm:$0xf]
    %v672 = vld [vmem:[%s659 + $0x30] sm:$0xf]
    %v673 = vld [vmem:[%s659 + $0x34] sm:$0xf]
    %v674 = vld [vmem:[%s659 + $0x38] sm:$0xf]
    %v675 = vld [vmem:[%s659 + $0x3c] sm:$0xf]
    %v692 = vunpack.c.l.b16 %v660
    %v693 = vunpack.c.l.b16 %v661
    %v694 = vunpack.c.l.b16 %v662
    %v695 = vunpack.c.l.b16 %v663
    %v696 = vunpack.c.l.b16 %v664
    %v697 = vunpack.c.l.b16 %v665
    %v698 = vunpack.c.l.b16 %v666
    %v699 = vunpack.c.l.b16 %v667
    %v700 = vunpack.c.l.b16 %v668
    %v701 = vunpack.c.l.b16 %v669
    %v702 = vunpack.c.l.b16 %v670
    %v703 = vunpack.c.l.b16 %v671
    %v704 = vunpack.c.l.b16 %v672
    %v705 = vunpack.c.l.b16 %v673
    %v706 = vunpack.c.l.b16 %v674
    %v707 = vunpack.c.l.b16 %v675
    %v708 = vpack.c.b16 %v693, %v692
    %v709 = vpack.c.b16 %v695, %v694
    %v710 = vpack.c.b16 %v697, %v696
    %v711 = vpack.c.b16 %v699, %v698
    %v712 = vpack.c.b16 %v701, %v700
    %v713 = vpack.c.b16 %v703, %v702
    %v714 = vpack.c.b16 %v705, %v704
    %v715 = vpack.c.b16 %v707, %v706
    %724 = vmatpush.bf16.msra.mxu0 %v715
    %725 = vmatpush.bf16.msra.mxu0 %v714
    %726 = vmatpush.bf16.msra.mxu0 %v713
    %727 = vmatpush.bf16.msra.mxu0 %v712
    %728 = vmatpush.bf16.msra.mxu0 %v711
    %729 = vmatpush.bf16.msra.mxu0 %v710
    %730 = vmatpush.bf16.msra.mxu0 %v709
    %731 = vmatpush.bf16.msra.mxu0 %v708
    %732 = vmatmul.bf16.gmra.mxu0 %v538
    %v733 = vpop.f32.mrf.mxu0
    %v734 = vadd.f32 0.0, %v733
    %v735 = vpop.f32.mrf.mxu0
    %v736 = vadd.f32 0.0, %v735
    %737 = vmatmul.bf16.gmra.mxu0 %v539
    %v738 = vpop.f32.mrf.mxu0
    %v739 = vadd.f32 0.0, %v738
    %v740 = vpop.f32.mrf.mxu0
    %v741 = vadd.f32 0.0, %v740
    %742 = vmatmul.bf16.gmra.mxu0 %v540
    %v743 = vpop.f32.mrf.mxu0
    %v744 = vadd.f32 0.0, %v743
    %v745 = vpop.f32.mrf.mxu0
    %v746 = vadd.f32 0.0, %v745
    %747 = vmatmul.bf16.gmra.mxu0 %v541
    %v748 = vpop.f32.mrf.mxu0
    %v749 = vadd.f32 0.0, %v748
    %v750 = vpop.f32.mrf.mxu0
    %v751 = vadd.f32 0.0, %v750
    %752 = vmatmul.bf16.gmra.mxu0 %v542
    %v753 = vpop.f32.mrf.mxu0
    %v754 = vadd.f32 0.0, %v753
    %v755 = vpop.f32.mrf.mxu0
    %v756 = vadd.f32 0.0, %v755
    %757 = vmatmul.bf16.gmra.mxu0 %v543
    %v758 = vpop.f32.mrf.mxu0
    %v759 = vadd.f32 0.0, %v758
    %v760 = vpop.f32.mrf.mxu0
    %v761 = vadd.f32 0.0, %v760
    %762 = vmatmul.bf16.gmra.mxu0 %v544
    %v763 = vpop.f32.mrf.mxu0
    %v764 = vadd.f32 0.0, %v763
    %v765 = vpop.f32.mrf.mxu0
    %v766 = vadd.f32 0.0, %v765
    %767 = vmatmul.bf16.gmra.mxu0 %v545
    %v768 = vpop.f32.mrf.mxu0
    %v769 = vadd.f32 0.0, %v768
    %v770 = vpop.f32.mrf.mxu0
    %v771 = vadd.f32 0.0, %v770
    %772 = vdwg.mxu0
    %s773 = scalar_lea.vmem [#allocation2], 128
    %v774 = vld [vmem:[%s773] sm:$0xf]
    %v775 = vld [vmem:[%s773 + $0x4] sm:$0xf]
    %v776 = vld [vmem:[%s773 + $0x8] sm:$0xf]
    %v777 = vld [vmem:[%s773 + $0xc] sm:$0xf]
    %v778 = vld [vmem:[%s773 + $0x10] sm:$0xf]
    %v779 = vld [vmem:[%s773 + $0x14] sm:$0xf]
    %v780 = vld [vmem:[%s773 + $0x18] sm:$0xf]
    %v781 = vld [vmem:[%s773 + $0x1c] sm:$0xf]
    %v782 = vld [vmem:[%s773 + $0x20] sm:$0xf]
    %v783 = vld [vmem:[%s773 + $0x24] sm:$0xf]
    %v784 = vld [vmem:[%s773 + $0x28] sm:$0xf]
    %v785 = vld [vmem:[%s773 + $0x2c] sm:$0xf]
    %v786 = vld [vmem:[%s773 + $0x30] sm:$0xf]
    %v787 = vld [vmem:[%s773 + $0x34] sm:$0xf]
    %v788 = vld [vmem:[%s773 + $0x38] sm:$0xf]
    %v789 = vld [vmem:[%s773 + $0x3c] sm:$0xf]
    %v806 = vunpack.c.l.b16 %v774
    %v807 = vunpack.c.l.b16 %v775
    %v808 = vunpack.c.l.b16 %v776
    %v809 = vunpack.c.l.b16 %v777
    %v810 = vunpack.c.l.b16 %v778
    %v811 = vunpack.c.l.b16 %v779
    %v812 = vunpack.c.l.b16 %v780
    %v813 = vunpack.c.l.b16 %v781
    %v814 = vunpack.c.l.b16 %v782
    %v815 = vunpack.c.l.b16 %v783
    %v816 = vunpack.c.l.b16 %v784
    %v817 = vunpack.c.l.b16 %v785
    %v818 = vunpack.c.l.b16 %v786
    %v819 = vunpack.c.l.b16 %v787
    %v820 = vunpack.c.l.b16 %v788
    %v821 = vunpack.c.l.b16 %v789
    %v822 = vpack.c.b16 %v807, %v806
    %v823 = vpack.c.b16 %v809, %v808
    %v824 = vpack.c.b16 %v811, %v810
    %v825 = vpack.c.b16 %v813, %v812
    %v826 = vpack.c.b16 %v815, %v814
    %v827 = vpack.c.b16 %v817, %v816
    %v828 = vpack.c.b16 %v819, %v818
    %v829 = vpack.c.b16 %v821, %v820
    %838 = vmatpush.bf16.msra.mxu0 %v829
    %839 = vmatpush.bf16.msra.mxu0 %v828
    %840 = vmatpush.bf16.msra.mxu0 %v827
    %841 = vmatpush.bf16.msra.mxu0 %v826
    %842 = vmatpush.bf16.msra.mxu0 %v825
    %843 = vmatpush.bf16.msra.mxu0 %v824
    %844 = vmatpush.bf16.msra.mxu0 %v823
    %845 = vmatpush.bf16.msra.mxu0 %v822
    %846 = vmatmul.bf16.gmra.mxu0 %v538
    %v847 = vpop.f32.mrf.mxu0
    %v848 = vadd.f32 0.0, %v847
    %v849 = vpop.f32.mrf.mxu0
    %v850 = vadd.f32 0.0, %v849
    %851 = vmatmul.bf16.gmra.mxu0 %v539
    %v852 = vpop.f32.mrf.mxu0
    %v853 = vadd.f32 0.0, %v852
    %v854 = vpop.f32.mrf.mxu0
    %v855 = vadd.f32 0.0, %v854
    %856 = vmatmul.bf16.gmra.mxu0 %v540
    %v857 = vpop.f32.mrf.mxu0
    %v858 = vadd.f32 0.0, %v857
    %v859 = vpop.f32.mrf.mxu0
    %v860 = vadd.f32 0.0, %v859
    %861 = vmatmul.bf16.gmra.mxu0 %v541
    %v862 = vpop.f32.mrf.mxu0
    %v863 = vadd.f32 0.0, %v862
    %v864 = vpop.f32.mrf.mxu0
    %v865 = vadd.f32 0.0, %v864
    %866 = vmatmul.bf16.gmra.mxu0 %v542
    %v867 = vpop.f32.mrf.mxu0
    %v868 = vadd.f32 0.0, %v867
    %v869 = vpop.f32.mrf.mxu0
    %v870 = vadd.f32 0.0, %v869
    %871 = vmatmul.bf16.gmra.mxu0 %v543
    %v872 = vpop.f32.mrf.mxu0
    %v873 = vadd.f32 0.0, %v872
    %v874 = vpop.f32.mrf.mxu0
    %v875 = vadd.f32 0.0, %v874
    %876 = vmatmul.bf16.gmra.mxu0 %v544
    %v877 = vpop.f32.mrf.mxu0
    %v878 = vadd.f32 0.0, %v877
    %v879 = vpop.f32.mrf.mxu0
    %v880 = vadd.f32 0.0, %v879
    %881 = vmatmul.bf16.gmra.mxu0 %v545
    %v882 = vpop.f32.mrf.mxu0
    %v883 = vadd.f32 0.0, %v882
    %v884 = vpop.f32.mrf.mxu0
    %v885 = vadd.f32 0.0, %v884
    %886 = vdwg.mxu0
    %vm903 = vcmask 1040384
    %v904 = vrot.slane %v620, 7
    %v905 = vrot.slane %v622, 7
    %v906 = vsel %vm903, %v904, %v905
    %v907 = vrot.slane %v625, 7
    %v908 = vsel %vm903, %v905, %v907
    %v909 = vrot.slane %v627, 7
    %v910 = vsel %vm903, %v907, %v909
    %v911 = vrot.slane %v630, 7
    %v912 = vsel %vm903, %v909, %v911
    %v913 = vrot.slane %v632, 7
    %v914 = vsel %vm903, %v911, %v913
    %v915 = vrot.slane %v635, 7
    %v916 = vsel %vm903, %v913, %v915
    %v917 = vrot.slane %v637, 7
    %v918 = vsel %vm903, %v915, %v917
    %v919 = vrot.slane %v640, 7
    %v920 = vsel %vm903, %v917, %v919
    %v921 = vrot.slane %v642, 7
    %v922 = vsel %vm903, %v919, %v921
    %v923 = vrot.slane %v645, 7
    %v924 = vsel %vm903, %v921, %v923
    %v925 = vrot.slane %v647, 7
    %v926 = vsel %vm903, %v923, %v925
    %v927 = vrot.slane %v650, 7
    %v928 = vsel %vm903, %v925, %v927
    %v929 = vrot.slane %v652, 7
    %v930 = vsel %vm903, %v927, %v929
    %v931 = vrot.slane %v655, 7
    %v932 = vsel %vm903, %v929, %v931
    %v933 = vrot.slane %v657, 7
    %v934 = vsel %vm903, %v931, %v933
    %v951 = vsel %vm903, 0.0, %v904
    %v952 = vadd.f32 %v951, %v734
    %v953 = vadd.f32 %v906, %v736
    %v954 = vadd.f32 %v908, %v739
    %v955 = vadd.f32 %v910, %v741
    %v956 = vadd.f32 %v912, %v744
    %v957 = vadd.f32 %v914, %v746
    %v958 = vadd.f32 %v916, %v749
    %v959 = vadd.f32 %v918, %v751
    %v960 = vadd.f32 %v920, %v754
    %v961 = vadd.f32 %v922, %v756
    %v962 = vadd.f32 %v924, %v759
    %v963 = vadd.f32 %v926, %v761
    %v964 = vadd.f32 %v928, %v764
    %v965 = vadd.f32 %v930, %v766
    %v966 = vadd.f32 %v932, %v769
    %v967 = vadd.f32 %v934, %v771
    %vm984 = vcmask 1046528
    %v985 = vrot.slane %v848, 1
    %v986 = vrot.slane %v850, 1
    %v987 = vsel %vm984, %v985, %v986
    %v988 = vrot.slane %v853, 1
    %v989 = vsel %vm984, %v986, %v988
    %v990 = vrot.slane %v855, 1
    %v991 = vsel %vm984, %v988, %v990
    %v992 = vrot.slane %v858, 1
    %v993 = vsel %vm984, %v990, %v992
    %v994 = vrot.slane %v860, 1
    %v995 = vsel %vm984, %v992, %v994
    %v996 = vrot.slane %v863, 1
    %v997 = vsel %vm984, %v994, %v996
    %v998 = vrot.slane %v865, 1
    %v999 = vsel %vm984, %v996, %v998
    %v1000 = vrot.slane %v868, 1
    %v1001 = vsel %vm984, %v998, %v1000
    %v1002 = vrot.slane %v870, 1
    %v1003 = vsel %vm984, %v1000, %v1002
    %v1004 = vrot.slane %v873, 1
    %v1005 = vsel %vm984, %v1002, %v1004
    %v1006 = vrot.slane %v875, 1
    %v1007 = vsel %vm984, %v1004, %v1006
    %v1008 = vrot.slane %v878, 1
    %v1009 = vsel %vm984, %v1006, %v1008
    %v1010 = vrot.slane %v880, 1
    %v1011 = vsel %vm984, %v1008, %v1010
    %v1012 = vrot.slane %v883, 1
    %v1013 = vsel %vm984, %v1010, %v1012
    %v1014 = vrot.slane %v885, 1
    %v1015 = vsel %vm984, %v1012, %v1014
    %v1032 = vsel %vm984, %v1014, 0.0
    %v1033 = vadd.f32 %v952, %v987
    %v1034 = vadd.f32 %v953, %v989
    %v1035 = vadd.f32 %v954, %v991
    %v1036 = vadd.f32 %v955, %v993
    %v1037 = vadd.f32 %v956, %v995
    %v1038 = vadd.f32 %v957, %v997
    %v1039 = vadd.f32 %v958, %v999
    %v1040 = vadd.f32 %v959, %v1001
    %v1041 = vadd.f32 %v960, %v1003
    %v1042 = vadd.f32 %v961, %v1005
    %v1043 = vadd.f32 %v962, %v1007
    %v1044 = vadd.f32 %v963, %v1009
    %v1045 = vadd.f32 %v964, %v1011
    %v1046 = vadd.f32 %v965, %v1013
    %v1047 = vadd.f32 %v966, %v1015
    %v1048 = vadd.f32 %v967, %v1032
    %v1049 = vld [vmem:[%s3] sm:$0x1]
    %v1050 = vperm.slane %v1049, 0
    %v1051 = vadd.f32 %v1033, %v1050
    %v1052 = vadd.f32 %v1034, %v1050
    %v1053 = vadd.f32 %v1035, %v1050
    %v1054 = vadd.f32 %v1036, %v1050
    %v1055 = vadd.f32 %v1037, %v1050
    %v1056 = vadd.f32 %v1038, %v1050
    %v1057 = vadd.f32 %v1039, %v1050
    %v1058 = vadd.f32 %v1040, %v1050
    %v1059 = vadd.f32 %v1041, %v1050
    %v1060 = vadd.f32 %v1042, %v1050
    %v1061 = vadd.f32 %v1043, %v1050
    %v1062 = vadd.f32 %v1044, %v1050
    %v1063 = vadd.f32 %v1045, %v1050
    %v1064 = vadd.f32 %v1046, %v1050
    %v1065 = vadd.f32 %v1047, %v1050
    %v1066 = vadd.f32 %v1048, %v1050
    %v1067 = vmax.f32 %v1051, 0.0
    %v1068 = vmax.f32 %v1052, 0.0
    %v1069 = vmax.f32 %v1053, 0.0
    %v1070 = vmax.f32 %v1054, 0.0
    %v1071 = vmax.f32 %v1055, 0.0
    %v1072 = vmax.f32 %v1056, 0.0
    %v1073 = vmax.f32 %v1057, 0.0
    %v1074 = vmax.f32 %v1058, 0.0
    %v1075 = vmax.f32 %v1059, 0.0
    %v1076 = vmax.f32 %v1060, 0.0
    %v1077 = vmax.f32 %v1061, 0.0
    %v1078 = vmax.f32 %v1062, 0.0
    %v1079 = vmax.f32 %v1063, 0.0
    %v1080 = vmax.f32 %v1064, 0.0
    %v1081 = vmax.f32 %v1065, 0.0
    %v1082 = vmax.f32 %v1066, 0.0
    %v1083 = vsel %vm274, %v1067, 0.0
    %v1084 = vsel %vm275, %v1068, 0.0
    %v1085 = vsel %vm276, %v1069, 0.0
    %v1086 = vsel %vm277, %v1070, 0.0
    %v1087 = vsel %vm278, %v1071, 0.0
    %v1088 = vsel %vm279, %v1072, 0.0
    %v1089 = vsel %vm280, %v1073, 0.0
    %v1090 = vsel %vm281, %v1074, 0.0
    %v1091 = vsel %vm282, %v1075, 0.0
    %v1092 = vsel %vm283, %v1076, 0.0
    %v1093 = vsel %vm284, %v1077, 0.0
    %v1094 = vsel %vm285, %v1078, 0.0
    %v1095 = vsel %vm286, %v1079, 0.0
    %v1096 = vsel %vm287, %v1080, 0.0
    %v1097 = vsel %vm288, %v1081, 0.0
    %v1098 = vsel %vm289, %v1082, 0.0
    %s1099 = sshll.u32 %s535, 4
    %1100 = dma.done %s70, %s1099
    %v1101 = vpack.c.bf16 %v1084, %v1083
    %v1102 = vpack.c.bf16 %v1086, %v1085
    %v1103 = vpack.c.bf16 %v1088, %v1087
    %v1104 = vpack.c.bf16 %v1090, %v1089
    %v1105 = vpack.c.bf16 %v1092, %v1091
    %v1106 = vpack.c.bf16 %v1094, %v1093
    %v1107 = vpack.c.bf16 %v1096, %v1095
    %v1108 = vpack.c.bf16 %v1098, %v1097
    %v1109 = vld [vmem:[%s69] sm:$0xf]
    %v1110 = vld [vmem:[%s69 + $0x4] sm:$0xf]
    %v1111 = vld [vmem:[%s69 + $0x8] sm:$0xf]
    %v1112 = vld [vmem:[%s69 + $0xc] sm:$0xf]
    %v1113 = vld [vmem:[%s69 + $0x10] sm:$0xf]
    %v1114 = vld [vmem:[%s69 + $0x14] sm:$0xf]
    %v1115 = vld [vmem:[%s69 + $0x18] sm:$0xf]
    %v1116 = vld [vmem:[%s69 + $0x1c] sm:$0xf]
    %v1117 = vld [vmem:[%s69 + $0x20] sm:$0xf]
    %v1118 = vld [vmem:[%s69 + $0x24] sm:$0xf]
    %v1119 = vld [vmem:[%s69 + $0x28] sm:$0xf]
    %v1120 = vld [vmem:[%s69 + $0x2c] sm:$0xf]
    %v1121 = vld [vmem:[%s69 + $0x30] sm:$0xf]
    %v1122 = vld [vmem:[%s69 + $0x34] sm:$0xf]
    %v1123 = vld [vmem:[%s69 + $0x38] sm:$0xf]
    %v1124 = vld [vmem:[%s69 + $0x3c] sm:$0xf]
    %v1141 = vunpack.c.l.b16 %v1109
    %v1142 = vunpack.c.l.b16 %v1110
    %v1143 = vunpack.c.l.b16 %v1111
    %v1144 = vunpack.c.l.b16 %v1112
    %v1145 = vunpack.c.l.b16 %v1113
    %v1146 = vunpack.c.l.b16 %v1114
    %v1147 = vunpack.c.l.b16 %v1115
    %v1148 = vunpack.c.l.b16 %v1116
    %v1149 = vunpack.c.l.b16 %v1117
    %v1150 = vunpack.c.l.b16 %v1118
    %v1151 = vunpack.c.l.b16 %v1119
    %v1152 = vunpack.c.l.b16 %v1120
    %v1153 = vunpack.c.l.b16 %v1121
    %v1154 = vunpack.c.l.b16 %v1122
    %v1155 = vunpack.c.l.b16 %v1123
    %v1156 = vunpack.c.l.b16 %v1124
    %v1157 = vpack.c.b16 %v1142, %v1141
    %v1158 = vpack.c.b16 %v1144, %v1143
    %v1159 = vpack.c.b16 %v1146, %v1145
    %v1160 = vpack.c.b16 %v1148, %v1147
    %v1161 = vpack.c.b16 %v1150, %v1149
    %v1162 = vpack.c.b16 %v1152, %v1151
    %v1163 = vpack.c.b16 %v1154, %v1153
    %v1164 = vpack.c.b16 %v1156, %v1155
    %1173 = vmatpush.bf16.msra.mxu0 %v1164
    %1174 = vmatpush.bf16.msra.mxu0 %v1163
    %1175 = vmatpush.bf16.msra.mxu0 %v1162
    %1176 = vmatpush.bf16.msra.mxu0 %v1161
    %1177 = vmatpush.bf16.msra.mxu0 %v1160
    %1178 = vmatpush.bf16.msra.mxu0 %v1159
    %1179 = vmatpush.bf16.msra.mxu0 %v1158
    %1180 = vmatpush.bf16.msra.mxu0 %v1157
    %1181 = vmatmul.bf16.gmra.mxu0 %v1101
    %v1182 = vpop.f32.mrf.mxu0
    %v1183 = vadd.f32 0.0, %v1182
    %v1184 = vpop.f32.mrf.mxu0
    %v1185 = vadd.f32 0.0, %v1184
    %1186 = vmatmul.bf16.gmra.mxu0 %v1102
    %v1187 = vpop.f32.mrf.mxu0
    %v1188 = vadd.f32 0.0, %v1187
    %v1189 = vpop.f32.mrf.mxu0
    %v1190 = vadd.f32 0.0, %v1189
    %1191 = vmatmul.bf16.gmra.mxu0 %v1103
    %v1192 = vpop.f32.mrf.mxu0
    %v1193 = vadd.f32 0.0, %v1192
    %v1194 = vpop.f32.mrf.mxu0
    %v1195 = vadd.f32 0.0, %v1194
    %1196 = vmatmul.bf16.gmra.mxu0 %v1104
    %v1197 = vpop.f32.mrf.mxu0
    %v1198 = vadd.f32 0.0, %v1197
    %v1199 = vpop.f32.mrf.mxu0
    %v1200 = vadd.f32 0.0, %v1199
    %1201 = vmatmul.bf16.gmra.mxu0 %v1105
    %v1202 = vpop.f32.mrf.mxu0
    %v1203 = vadd.f32 0.0, %v1202
    %v1204 = vpop.f32.mrf.mxu0
    %v1205 = vadd.f32 0.0, %v1204
    %1206 = vmatmul.bf16.gmra.mxu0 %v1106
    %v1207 = vpop.f32.mrf.mxu0
    %v1208 = vadd.f32 0.0, %v1207
    %v1209 = vpop.f32.mrf.mxu0
    %v1210 = vadd.f32 0.0, %v1209
    %1211 = vmatmul.bf16.gmra.mxu0 %v1107
    %v1212 = vpop.f32.mrf.mxu0
    %v1213 = vadd.f32 0.0, %v1212
    %v1214 = vpop.f32.mrf.mxu0
    %v1215 = vadd.f32 0.0, %v1214
    %1216 = vmatmul.bf16.gmra.mxu0 %v1108
    %v1217 = vpop.f32.mrf.mxu0
    %v1218 = vadd.f32 0.0, %v1217
    %v1219 = vpop.f32.mrf.mxu0
    %v1220 = vadd.f32 0.0, %v1219
    %1221 = vdwg.mxu0
    %s1222 = scalar_lea.vmem [#allocation2], 256
    %v1223 = vld [vmem:[%s1222] sm:$0xf]
    %v1224 = vld [vmem:[%s1222 + $0x4] sm:$0xf]
    %v1225 = vld [vmem:[%s1222 + $0x8] sm:$0xf]
    %v1226 = vld [vmem:[%s1222 + $0xc] sm:$0xf]
    %v1227 = vld [vmem:[%s1222 + $0x10] sm:$0xf]
    %v1228 = vld [vmem:[%s1222 + $0x14] sm:$0xf]
    %v1229 = vld [vmem:[%s1222 + $0x18] sm:$0xf]
    %v1230 = vld [vmem:[%s1222 + $0x1c] sm:$0xf]
    %v1231 = vld [vmem:[%s1222 + $0x20] sm:$0xf]
    %v1232 = vld [vmem:[%s1222 + $0x24] sm:$0xf]
    %v1233 = vld [vmem:[%s1222 + $0x28] sm:$0xf]
    %v1234 = vld [vmem:[%s1222 + $0x2c] sm:$0xf]
    %v1235 = vld [vmem:[%s1222 + $0x30] sm:$0xf]
    %v1236 = vld [vmem:[%s1222 + $0x34] sm:$0xf]
    %v1237 = vld [vmem:[%s1222 + $0x38] sm:$0xf]
    %v1238 = vld [vmem:[%s1222 + $0x3c] sm:$0xf]
    %v1255 = vunpack.c.l.b16 %v1223
    %v1256 = vunpack.c.l.b16 %v1224
    %v1257 = vunpack.c.l.b16 %v1225
    %v1258 = vunpack.c.l.b16 %v1226
    %v1259 = vunpack.c.l.b16 %v1227
    %v1260 = vunpack.c.l.b16 %v1228
    %v1261 = vunpack.c.l.b16 %v1229
    %v1262 = vunpack.c.l.b16 %v1230
    %v1263 = vunpack.c.l.b16 %v1231
    %v1264 = vunpack.c.l.b16 %v1232
    %v1265 = vunpack.c.l.b16 %v1233
    %v1266 = vunpack.c.l.b16 %v1234
    %v1267 = vunpack.c.l.b16 %v1235
    %v1268 = vunpack.c.l.b16 %v1236
    %v1269 = vunpack.c.l.b16 %v1237
    %v1270 = vunpack.c.l.b16 %v1238
    %v1271 = vpack.c.b16 %v1256, %v1255
    %v1272 = vpack.c.b16 %v1258, %v1257
    %v1273 = vpack.c.b16 %v1260, %v1259
    %v1274 = vpack.c.b16 %v1262, %v1261
    %v1275 = vpack.c.b16 %v1264, %v1263
    %v1276 = vpack.c.b16 %v1266, %v1265
    %v1277 = vpack.c.b16 %v1268, %v1267
    %v1278 = vpack.c.b16 %v1270, %v1269
    %1287 = vmatpush.bf16.msra.mxu0 %v1278
    %1288 = vmatpush.bf16.msra.mxu0 %v1277
    %1289 = vmatpush.bf16.msra.mxu0 %v1276
    %1290 = vmatpush.bf16.msra.mxu0 %v1275
    %1291 = vmatpush.bf16.msra.mxu0 %v1274
    %1292 = vmatpush.bf16.msra.mxu0 %v1273
    %1293 = vmatpush.bf16.msra.mxu0 %v1272
    %1294 = vmatpush.bf16.msra.mxu0 %v1271
    %1295 = vmatmul.bf16.gmra.mxu0 %v1101
    %v1296 = vpop.f32.mrf.mxu0
    %v1297 = vadd.f32 0.0, %v1296
    %v1298 = vpop.f32.mrf.mxu0
    %v1299 = vadd.f32 0.0, %v1298
    %1300 = vmatmul.bf16.gmra.mxu0 %v1102
    %v1301 = vpop.f32.mrf.mxu0
    %v1302 = vadd.f32 0.0, %v1301
    %v1303 = vpop.f32.mrf.mxu0
    %v1304 = vadd.f32 0.0, %v1303
    %1305 = vmatmul.bf16.gmra.mxu0 %v1103
    %v1306 = vpop.f32.mrf.mxu0
    %v1307 = vadd.f32 0.0, %v1306
    %v1308 = vpop.f32.mrf.mxu0
    %v1309 = vadd.f32 0.0, %v1308
    %1310 = vmatmul.bf16.gmra.mxu0 %v1104
    %v1311 = vpop.f32.mrf.mxu0
    %v1312 = vadd.f32 0.0, %v1311
    %v1313 = vpop.f32.mrf.mxu0
    %v1314 = vadd.f32 0.0, %v1313
    %1315 = vmatmul.bf16.gmra.mxu0 %v1105
    %v1316 = vpop.f32.mrf.mxu0
    %v1317 = vadd.f32 0.0, %v1316
    %v1318 = vpop.f32.mrf.mxu0
    %v1319 = vadd.f32 0.0, %v1318
    %1320 = vmatmul.bf16.gmra.mxu0 %v1106
    %v1321 = vpop.f32.mrf.mxu0
    %v1322 = vadd.f32 0.0, %v1321
    %v1323 = vpop.f32.mrf.mxu0
    %v1324 = vadd.f32 0.0, %v1323
    %1325 = vmatmul.bf16.gmra.mxu0 %v1107
    %v1326 = vpop.f32.mrf.mxu0
    %v1327 = vadd.f32 0.0, %v1326
    %v1328 = vpop.f32.mrf.mxu0
    %v1329 = vadd.f32 0.0, %v1328
    %1330 = vmatmul.bf16.gmra.mxu0 %v1108
    %v1331 = vpop.f32.mrf.mxu0
    %v1332 = vadd.f32 0.0, %v1331
    %v1333 = vpop.f32.mrf.mxu0
    %v1334 = vadd.f32 0.0, %v1333
    %1335 = vdwg.mxu0
    %s1336 = scalar_lea.vmem [#allocation2], 320
    %v1337 = vld [vmem:[%s1336] sm:$0xf]
    %v1338 = vld [vmem:[%s1336 + $0x4] sm:$0xf]
    %v1339 = vld [vmem:[%s1336 + $0x8] sm:$0xf]
    %v1340 = vld [vmem:[%s1336 + $0xc] sm:$0xf]
    %v1341 = vld [vmem:[%s1336 + $0x10] sm:$0xf]
    %v1342 = vld [vmem:[%s1336 + $0x14] sm:$0xf]
    %v1343 = vld [vmem:[%s1336 + $0x18] sm:$0xf]
    %v1344 = vld [vmem:[%s1336 + $0x1c] sm:$0xf]
    %v1345 = vld [vmem:[%s1336 + $0x20] sm:$0xf]
    %v1346 = vld [vmem:[%s1336 + $0x24] sm:$0xf]
    %v1347 = vld [vmem:[%s1336 + $0x28] sm:$0xf]
    %v1348 = vld [vmem:[%s1336 + $0x2c] sm:$0xf]
    %v1349 = vld [vmem:[%s1336 + $0x30] sm:$0xf]
    %v1350 = vld [vmem:[%s1336 + $0x34] sm:$0xf]
    %v1351 = vld [vmem:[%s1336 + $0x38] sm:$0xf]
    %v1352 = vld [vmem:[%s1336 + $0x3c] sm:$0xf]
    %v1369 = vunpack.c.l.b16 %v1337
    %v1370 = vunpack.c.l.b16 %v1338
    %v1371 = vunpack.c.l.b16 %v1339
    %v1372 = vunpack.c.l.b16 %v1340
    %v1373 = vunpack.c.l.b16 %v1341
    %v1374 = vunpack.c.l.b16 %v1342
    %v1375 = vunpack.c.l.b16 %v1343
    %v1376 = vunpack.c.l.b16 %v1344
    %v1377 = vunpack.c.l.b16 %v1345
    %v1378 = vunpack.c.l.b16 %v1346
    %v1379 = vunpack.c.l.b16 %v1347
    %v1380 = vunpack.c.l.b16 %v1348
    %v1381 = vunpack.c.l.b16 %v1349
    %v1382 = vunpack.c.l.b16 %v1350
    %v1383 = vunpack.c.l.b16 %v1351
    %v1384 = vunpack.c.l.b16 %v1352
    %v1385 = vpack.c.b16 %v1370, %v1369
    %v1386 = vpack.c.b16 %v1372, %v1371
    %v1387 = vpack.c.b16 %v1374, %v1373
    %v1388 = vpack.c.b16 %v1376, %v1375
    %v1389 = vpack.c.b16 %v1378, %v1377
    %v1390 = vpack.c.b16 %v1380, %v1379
    %v1391 = vpack.c.b16 %v1382, %v1381
    %v1392 = vpack.c.b16 %v1384, %v1383
    %1401 = vmatpush.bf16.msra.mxu0 %v1392
    %1402 = vmatpush.bf16.msra.mxu0 %v1391
    %1403 = vmatpush.bf16.msra.mxu0 %v1390
    %1404 = vmatpush.bf16.msra.mxu0 %v1389
    %1405 = vmatpush.bf16.msra.mxu0 %v1388
    %1406 = vmatpush.bf16.msra.mxu0 %v1387
    %1407 = vmatpush.bf16.msra.mxu0 %v1386
    %1408 = vmatpush.bf16.msra.mxu0 %v1385
    %1409 = vmatmul.bf16.gmra.mxu0 %v1101
    %v1410 = vpop.f32.mrf.mxu0
    %v1411 = vadd.f32 0.0, %v1410
    %v1412 = vpop.f32.mrf.mxu0
    %v1413 = vadd.f32 0.0, %v1412
    %1414 = vmatmul.bf16.gmra.mxu0 %v1102
    %v1415 = vpop.f32.mrf.mxu0
    %v1416 = vadd.f32 0.0, %v1415
    %v1417 = vpop.f32.mrf.mxu0
    %v1418 = vadd.f32 0.0, %v1417
    %1419 = vmatmul.bf16.gmra.mxu0 %v1103
    %v1420 = vpop.f32.mrf.mxu0
    %v1421 = vadd.f32 0.0, %v1420
    %v1422 = vpop.f32.mrf.mxu0
    %v1423 = vadd.f32 0.0, %v1422
    %1424 = vmatmul.bf16.gmra.mxu0 %v1104
    %v1425 = vpop.f32.mrf.mxu0
    %v1426 = vadd.f32 0.0, %v1425
    %v1427 = vpop.f32.mrf.mxu0
    %v1428 = vadd.f32 0.0, %v1427
    %1429 = vmatmul.bf16.gmra.mxu0 %v1105
    %v1430 = vpop.f32.mrf.mxu0
    %v1431 = vadd.f32 0.0, %v1430
    %v1432 = vpop.f32.mrf.mxu0
    %v1433 = vadd.f32 0.0, %v1432
    %1434 = vmatmul.bf16.gmra.mxu0 %v1106
    %v1435 = vpop.f32.mrf.mxu0
    %v1436 = vadd.f32 0.0, %v1435
    %v1437 = vpop.f32.mrf.mxu0
    %v1438 = vadd.f32 0.0, %v1437
    %1439 = vmatmul.bf16.gmra.mxu0 %v1107
    %v1440 = vpop.f32.mrf.mxu0
    %v1441 = vadd.f32 0.0, %v1440
    %v1442 = vpop.f32.mrf.mxu0
    %v1443 = vadd.f32 0.0, %v1442
    %1444 = vmatmul.bf16.gmra.mxu0 %v1108
    %v1445 = vpop.f32.mrf.mxu0
    %v1446 = vadd.f32 0.0, %v1445
    %v1447 = vpop.f32.mrf.mxu0
    %v1448 = vadd.f32 0.0, %v1447
    %1449 = vdwg.mxu0
    %v1466 = vrot.slane %v1183, 7
    %v1467 = vrot.slane %v1185, 7
    %v1468 = vsel %vm903, %v1466, %v1467
    %v1469 = vrot.slane %v1188, 7
    %v1470 = vsel %vm903, %v1467, %v1469
    %v1471 = vrot.slane %v1190, 7
    %v1472 = vsel %vm903, %v1469, %v1471
    %v1473 = vrot.slane %v1193, 7
    %v1474 = vsel %vm903, %v1471, %v1473
    %v1475 = vrot.slane %v1195, 7
    %v1476 = vsel %vm903, %v1473, %v1475
    %v1477 = vrot.slane %v1198, 7
    %v1478 = vsel %vm903, %v1475, %v1477
    %v1479 = vrot.slane %v1200, 7
    %v1480 = vsel %vm903, %v1477, %v1479
    %v1481 = vrot.slane %v1203, 7
    %v1482 = vsel %vm903, %v1479, %v1481
    %v1483 = vrot.slane %v1205, 7
    %v1484 = vsel %vm903, %v1481, %v1483
    %v1485 = vrot.slane %v1208, 7
    %v1486 = vsel %vm903, %v1483, %v1485
    %v1487 = vrot.slane %v1210, 7
    %v1488 = vsel %vm903, %v1485, %v1487
    %v1489 = vrot.slane %v1213, 7
    %v1490 = vsel %vm903, %v1487, %v1489
    %v1491 = vrot.slane %v1215, 7
    %v1492 = vsel %vm903, %v1489, %v1491
    %v1493 = vrot.slane %v1218, 7
    %v1494 = vsel %vm903, %v1491, %v1493
    %v1495 = vrot.slane %v1220, 7
    %v1496 = vsel %vm903, %v1493, %v1495
    %v1513 = vsel %vm903, 0.0, %v1466
    %v1514 = vadd.f32 %v1513, %v1297
    %v1515 = vadd.f32 %v1468, %v1299
    %v1516 = vadd.f32 %v1470, %v1302
    %v1517 = vadd.f32 %v1472, %v1304
    %v1518 = vadd.f32 %v1474, %v1307
    %v1519 = vadd.f32 %v1476, %v1309
    %v1520 = vadd.f32 %v1478, %v1312
    %v1521 = vadd.f32 %v1480, %v1314
    %v1522 = vadd.f32 %v1482, %v1317
    %v1523 = vadd.f32 %v1484, %v1319
    %v1524 = vadd.f32 %v1486, %v1322
    %v1525 = vadd.f32 %v1488, %v1324
    %v1526 = vadd.f32 %v1490, %v1327
    %v1527 = vadd.f32 %v1492, %v1329
    %v1528 = vadd.f32 %v1494, %v1332
    %v1529 = vadd.f32 %v1496, %v1334
    %v1546 = vrot.slane %v1411, 1
    %v1547 = vrot.slane %v1413, 1
    %v1548 = vsel %vm984, %v1546, %v1547
    %v1549 = vrot.slane %v1416, 1
    %v1550 = vsel %vm984, %v1547, %v1549
    %v1551 = vrot.slane %v1418, 1
    %v1552 = vsel %vm984, %v1549, %v1551
    %v1553 = vrot.slane %v1421, 1
    %v1554 = vsel %vm984, %v1551, %v1553
    %v1555 = vrot.slane %v1423, 1
    %v1556 = vsel %vm984, %v1553, %v1555
    %v1557 = vrot.slane %v1426, 1
    %v1558 = vsel %vm984, %v1555, %v1557
    %v1559 = vrot.slane %v1428, 1
    %v1560 = vsel %vm984, %v1557, %v1559
    %v1561 = vrot.slane %v1431, 1
    %v1562 = vsel %vm984, %v1559, %v1561
    %v1563 = vrot.slane %v1433, 1
    %v1564 = vsel %vm984, %v1561, %v1563
    %v1565 = vrot.slane %v1436, 1
    %v1566 = vsel %vm984, %v1563, %v1565
    %v1567 = vrot.slane %v1438, 1
    %v1568 = vsel %vm984, %v1565, %v1567
    %v1569 = vrot.slane %v1441, 1
    %v1570 = vsel %vm984, %v1567, %v1569
    %v1571 = vrot.slane %v1443, 1
    %v1572 = vsel %vm984, %v1569, %v1571
    %v1573 = vrot.slane %v1446, 1
    %v1574 = vsel %vm984, %v1571, %v1573
    %v1575 = vrot.slane %v1448, 1
    %v1576 = vsel %vm984, %v1573, %v1575
    %v1593 = vsel %vm984, %v1575, 0.0
    %v1594 = vadd.f32 %v1514, %v1548
    %v1595 = vadd.f32 %v1515, %v1550
    %v1596 = vadd.f32 %v1516, %v1552
    %v1597 = vadd.f32 %v1517, %v1554
    %v1598 = vadd.f32 %v1518, %v1556
    %v1599 = vadd.f32 %v1519, %v1558
    %v1600 = vadd.f32 %v1520, %v1560
    %v1601 = vadd.f32 %v1521, %v1562
    %v1602 = vadd.f32 %v1522, %v1564
    %v1603 = vadd.f32 %v1523, %v1566
    %v1604 = vadd.f32 %v1524, %v1568
    %v1605 = vadd.f32 %v1525, %v1570
    %v1606 = vadd.f32 %v1526, %v1572
    %v1607 = vadd.f32 %v1527, %v1574
    %v1608 = vadd.f32 %v1528, %v1576
    %v1609 = vadd.f32 %v1529, %v1593
    %v1610 = vld [vmem:[%s3 + $0x1] sm:$0x1]
    %v1611 = vperm.slane %v1610, 0
    %v1612 = vadd.f32 %v1594, %v1611
    %v1613 = vadd.f32 %v1595, %v1611
    %v1614 = vadd.f32 %v1596, %v1611
    %v1615 = vadd.f32 %v1597, %v1611
    %v1616 = vadd.f32 %v1598, %v1611
    %v1617 = vadd.f32 %v1599, %v1611
    %v1618 = vadd.f32 %v1600, %v1611
    %v1619 = vadd.f32 %v1601, %v1611
    %v1620 = vadd.f32 %v1602, %v1611
    %v1621 = vadd.f32 %v1603, %v1611
    %v1622 = vadd.f32 %v1604, %v1611
    %v1623 = vadd.f32 %v1605, %v1611
    %v1624 = vadd.f32 %v1606, %v1611
    %v1625 = vadd.f32 %v1607, %v1611
    %v1626 = vadd.f32 %v1608, %v1611
    %v1627 = vadd.f32 %v1609, %v1611
    %v1628 = vmax.f32 %v1612, 0.0
    %v1629 = vmax.f32 %v1613, 0.0
    %v1630 = vmax.f32 %v1614, 0.0
    %v1631 = vmax.f32 %v1615, 0.0
    %v1632 = vmax.f32 %v1616, 0.0
    %v1633 = vmax.f32 %v1617, 0.0
    %v1634 = vmax.f32 %v1618, 0.0
    %v1635 = vmax.f32 %v1619, 0.0
    %v1636 = vmax.f32 %v1620, 0.0
    %v1637 = vmax.f32 %v1621, 0.0
    %v1638 = vmax.f32 %v1622, 0.0
    %v1639 = vmax.f32 %v1623, 0.0
    %v1640 = vmax.f32 %v1624, 0.0
    %v1641 = vmax.f32 %v1625, 0.0
    %v1642 = vmax.f32 %v1626, 0.0
    %v1643 = vmax.f32 %v1627, 0.0
    %v1644 = vsel %vm274, %v1628, 0.0
    %v1645 = vsel %vm275, %v1629, 0.0
    %v1646 = vsel %vm276, %v1630, 0.0
    %v1647 = vsel %vm277, %v1631, 0.0
    %v1648 = vsel %vm278, %v1632, 0.0
    %v1649 = vsel %vm279, %v1633, 0.0
    %v1650 = vsel %vm280, %v1634, 0.0
    %v1651 = vsel %vm281, %v1635, 0.0
    %v1652 = vsel %vm282, %v1636, 0.0
    %v1653 = vsel %vm283, %v1637, 0.0
    %v1654 = vsel %vm284, %v1638, 0.0
    %v1655 = vsel %vm285, %v1639, 0.0
    %v1656 = vsel %vm286, %v1640, 0.0
    %v1657 = vsel %vm287, %v1641, 0.0
    %v1658 = vsel %vm288, %v1642, 0.0
    %v1659 = vsel %vm289, %v1643, 0.0
    %v1660 = vadd.f32 %v494, %v1644
    %v1661 = vadd.f32 %v496, %v1645
    %v1662 = vadd.f32 %v499, %v1646
    %v1663 = vadd.f32 %v501, %v1647
    %v1664 = vadd.f32 %v504, %v1648
    %v1665 = vadd.f32 %v506, %v1649
    %v1666 = vadd.f32 %v509, %v1650
    %v1667 = vadd.f32 %v511, %v1651
    %v1668 = vadd.f32 %v514, %v1652
    %v1669 = vadd.f32 %v516, %v1653
    %v1670 = vadd.f32 %v519, %v1654
    %v1671 = vadd.f32 %v521, %v1655
    %v1672 = vadd.f32 %v524, %v1656
    %v1673 = vadd.f32 %v526, %v1657
    %v1674 = vadd.f32 %v529, %v1658
    %v1675 = vadd.f32 %v531, %v1659
    %v1692 = vrot.slane %v1660, 1
    %v1693 = vrot.slane %v1661, 1
    %v1694 = vsel %vm984, %v1692, %v1693
    %v1695 = vrot.slane %v1662, 1
    %v1696 = vsel %vm984, %v1693, %v1695
    %v1697 = vrot.slane %v1663, 1
    %v1698 = vsel %vm984, %v1695, %v1697
    %v1699 = vrot.slane %v1664, 1
    %v1700 = vsel %vm984, %v1697, %v1699
    %v1701 = vrot.slane %v1665, 1
    %v1702 = vsel %vm984, %v1699, %v1701
    %v1703 = vrot.slane %v1666, 1
    %v1704 = vsel %vm984, %v1701, %v1703
    %v1705 = vrot.slane %v1667, 1
    %v1706 = vsel %vm984, %v1703, %v1705
    %v1707 = vrot.slane %v1668, 1
    %v1708 = vsel %vm984, %v1705, %v1707
    %v1709 = vrot.slane %v1669, 1
    %v1710 = vsel %vm984, %v1707, %v1709
    %v1711 = vrot.slane %v1670, 1
    %v1712 = vsel %vm984, %v1709, %v1711
    %v1713 = vrot.slane %v1671, 1
    %v1714 = vsel %vm984, %v1711, %v1713
    %v1715 = vrot.slane %v1672, 1
    %v1716 = vsel %vm984, %v1713, %v1715
    %v1717 = vrot.slane %v1673, 1
    %v1718 = vsel %vm984, %v1715, %v1717
    %v1719 = vrot.slane %v1674, 1
    %v1720 = vsel %vm984, %v1717, %v1719
    %v1721 = vrot.slane %v1675, 1
    %v1722 = vsel %vm984, %v1719, %v1721
    %v1739 = vsel %vm984, %v1721, 0.0
    %v1740 = vmax.f32 %v1660, %v1694
    %v1741 = vmax.f32 %v1661, %v1696
    %v1742 = vmax.f32 %v1662, %v1698
    %v1743 = vmax.f32 %v1663, %v1700
    %v1744 = vmax.f32 %v1664, %v1702
    %v1745 = vmax.f32 %v1665, %v1704
    %v1746 = vmax.f32 %v1666, %v1706
    %v1747 = vmax.f32 %v1667, %v1708
    %v1748 = vmax.f32 %v1668, %v1710
    %v1749 = vmax.f32 %v1669, %v1712
    %v1750 = vmax.f32 %v1670, %v1714
    %v1751 = vmax.f32 %v1671, %v1716
    %v1752 = vmax.f32 %v1672, %v1718
    %v1753 = vmax.f32 %v1673, %v1720
    %v1754 = vmax.f32 %v1674, %v1722
    %v1755 = vmax.f32 %v1675, %v1739
    %1756 = vst [vmem:[#allocation6] sm:$0xff] %v1740
    %1757 = vst [vmem:[#allocation6 + $0x8] sm:$0xff] %v1741
    %1758 = vst [vmem:[#allocation6 + $0x10] sm:$0xff] %v1742
    %1759 = vst [vmem:[#allocation6 + $0x18] sm:$0xff] %v1743
    %1760 = vst [vmem:[#allocation6 + $0x20] sm:$0xff] %v1744
    %1761 = vst [vmem:[#allocation6 + $0x28] sm:$0xff] %v1745
    %1762 = vst [vmem:[#allocation6 + $0x30] sm:$0xff] %v1746
    %1763 = vst [vmem:[#allocation6 + $0x38] sm:$0xff] %v1747
    %1764 = vst [vmem:[#allocation6 + $0x40] sm:$0xff] %v1748
    %1765 = vst [vmem:[#allocation6 + $0x48] sm:$0xff] %v1749
    %1766 = vst [vmem:[#allocation6 + $0x50] sm:$0xff] %v1750
    %1767 = vst [vmem:[#allocation6 + $0x58] sm:$0xff] %v1751
    %1768 = vst [vmem:[#allocation6 + $0x60] sm:$0xff] %v1752
    %1769 = vst [vmem:[#allocation6 + $0x68] sm:$0xff] %v1753
    %1770 = vst [vmem:[#allocation6 + $0x70] sm:$0xff] %v1754
    %1771 = vst [vmem:[#allocation6 + $0x78] sm:$0xff] %v1755
    %v1772 = vld [vmem:[#allocation6] ss:$2 sm:$0xff]
    %s1773 = scalar_lea.vmem [#allocation6], 16
    %v1774 = vld [vmem:[%s1773] ss:$2 sm:$0xff]
    %s1775 = scalar_lea.vmem [#allocation6], 32
    %v1776 = vld [vmem:[%s1775] ss:$2 sm:$0xff]
    %s1777 = scalar_lea.vmem [#allocation6], 48
    %v1778 = vld [vmem:[%s1777] ss:$2 sm:$0xff]
    %s1779 = scalar_lea.vmem [#allocation6], 64
    %v1780 = vld [vmem:[%s1779] ss:$2 sm:$0xff]
    %s1781 = scalar_lea.vmem [#allocation6], 80
    %v1782 = vld [vmem:[%s1781] ss:$2 sm:$0xff]
    %s1783 = scalar_lea.vmem [#allocation6], 96
    %v1784 = vld [vmem:[%s1783] ss:$2 sm:$0xff]
    %s1785 = scalar_lea.vmem [#allocation6], 112
    %v1786 = vld [vmem:[%s1785] ss:$2 sm:$0xff]
    %v1787 = vsel %vm298, %v1772, 0.0
    %v1788 = vsel %vm299, %v1774, 0.0
    %v1789 = vsel %vm300, %v1776, 0.0
    %v1790 = vsel %vm301, %v1778, 0.0
    %v1791 = vsel %vm302, %v1780, 0.0
    %v1792 = vsel %vm303, %v1782, 0.0
    %v1793 = vsel %vm304, %v1784, 0.0
    %v1794 = vsel %vm305, %v1786, 0.0
    %s1795 = sshll.u32 %s535, 4
    %1796 = dma.done %s86, %s1795
    %v1797 = vpack.c.bf16 %v1788, %v1787
    %v1798 = vpack.c.bf16 %v1790, %v1789
    %v1799 = vpack.c.bf16 %v1792, %v1791
    %v1800 = vpack.c.bf16 %v1794, %v1793
    %v1801 = vld [vmem:[%s85] sm:$0xf]
    %v1802 = vld [vmem:[%s85 + $0x4] sm:$0xf]
    %v1803 = vld [vmem:[%s85 + $0x8] sm:$0xf]
    %v1804 = vld [vmem:[%s85 + $0xc] sm:$0xf]
    %v1805 = vld [vmem:[%s85 + $0x10] sm:$0xf]
    %v1806 = vld [vmem:[%s85 + $0x14] sm:$0xf]
    %v1807 = vld [vmem:[%s85 + $0x18] sm:$0xf]
    %v1808 = vld [vmem:[%s85 + $0x1c] sm:$0xf]
    %v1809 = vld [vmem:[%s85 + $0x20] sm:$0xf]
    %v1810 = vld [vmem:[%s85 + $0x24] sm:$0xf]
    %v1811 = vld [vmem:[%s85 + $0x28] sm:$0xf]
    %v1812 = vld [vmem:[%s85 + $0x2c] sm:$0xf]
    %v1813 = vld [vmem:[%s85 + $0x30] sm:$0xf]
    %v1814 = vld [vmem:[%s85 + $0x34] sm:$0xf]
    %v1815 = vld [vmem:[%s85 + $0x38] sm:$0xf]
    %v1816 = vld [vmem:[%s85 + $0x3c] sm:$0xf]
    %v1833 = vunpack.c.l.b16 %v1801
    %v1834 = vunpack.c.l.b16 %v1802
    %v1835 = vunpack.c.l.b16 %v1803
    %v1836 = vunpack.c.l.b16 %v1804
    %v1837 = vunpack.c.l.b16 %v1805
    %v1838 = vunpack.c.l.b16 %v1806
    %v1839 = vunpack.c.l.b16 %v1807
    %v1840 = vunpack.c.l.b16 %v1808
    %v1841 = vunpack.c.l.b16 %v1809
    %v1842 = vunpack.c.l.b16 %v1810
    %v1843 = vunpack.c.l.b16 %v1811
    %v1844 = vunpack.c.l.b16 %v1812
    %v1845 = vunpack.c.l.b16 %v1813
    %v1846 = vunpack.c.l.b16 %v1814
    %v1847 = vunpack.c.l.b16 %v1815
    %v1848 = vunpack.c.l.b16 %v1816
    %v1849 = vpack.c.b16 %v1834, %v1833
    %v1850 = vpack.c.b16 %v1836, %v1835
    %v1851 = vpack.c.b16 %v1838, %v1837
    %v1852 = vpack.c.b16 %v1840, %v1839
    %v1853 = vpack.c.b16 %v1842, %v1841
    %v1854 = vpack.c.b16 %v1844, %v1843
    %v1855 = vpack.c.b16 %v1846, %v1845
    %v1856 = vpack.c.b16 %v1848, %v1847
    %1865 = vmatpush.bf16.msra.mxu0 %v1856
    %1866 = vmatpush.bf16.msra.mxu0 %v1855
    %1867 = vmatpush.bf16.msra.mxu0 %v1854
    %1868 = vmatpush.bf16.msra.mxu0 %v1853
    %1869 = vmatpush.bf16.msra.mxu0 %v1852
    %1870 = vmatpush.bf16.msra.mxu0 %v1851
    %1871 = vmatpush.bf16.msra.mxu0 %v1850
    %1872 = vmatpush.bf16.msra.mxu0 %v1849
    %1873 = vmatmul.bf16.gmra.mxu0 %v1797
    %v1874 = vpop.f32.mrf.mxu0
    %v1875 = vadd.f32 0.0, %v1874
    %v1876 = vpop.f32.mrf.mxu0
    %v1877 = vadd.f32 0.0, %v1876
    %1878 = vmatmul.bf16.gmra.mxu0 %v1798
    %v1879 = vpop.f32.mrf.mxu0
    %v1880 = vadd.f32 0.0, %v1879
    %v1881 = vpop.f32.mrf.mxu0
    %v1882 = vadd.f32 0.0, %v1881
    %1883 = vmatmul.bf16.gmra.mxu0 %v1799
    %v1884 = vpop.f32.mrf.mxu0
    %v1885 = vadd.f32 0.0, %v1884
    %v1886 = vpop.f32.mrf.mxu0
    %v1887 = vadd.f32 0.0, %v1886
    %1888 = vmatmul.bf16.gmra.mxu0 %v1800
    %v1889 = vpop.f32.mrf.mxu0
    %v1890 = vadd.f32 0.0, %v1889
    %v1891 = vpop.f32.mrf.mxu0
    %v1892 = vadd.f32 0.0, %v1891
    %1893 = vdwg.mxu0
    %s1894 = scalar_lea.vmem [#allocation2], 448
    %v1895 = vld [vmem:[%s1894] sm:$0xf]
    %v1896 = vld [vmem:[%s1894 + $0x4] sm:$0xf]
    %v1897 = vld [vmem:[%s1894 + $0x8] sm:$0xf]
    %v1898 = vld [vmem:[%s1894 + $0xc] sm:$0xf]
    %v1899 = vld [vmem:[%s1894 + $0x10] sm:$0xf]
    %v1900 = vld [vmem:[%s1894 + $0x14] sm:$0xf]
    %v1901 = vld [vmem:[%s1894 + $0x18] sm:$0xf]
    %v1902 = vld [vmem:[%s1894 + $0x1c] sm:$0xf]
    %v1903 = vld [vmem:[%s1894 + $0x20] sm:$0xf]
    %v1904 = vld [vmem:[%s1894 + $0x24] sm:$0xf]
    %v1905 = vld [vmem:[%s1894 + $0x28] sm:$0xf]
    %v1906 = vld [vmem:[%s1894 + $0x2c] sm:$0xf]
    %v1907 = vld [vmem:[%s1894 + $0x30] sm:$0xf]
    %v1908 = vld [vmem:[%s1894 + $0x34] sm:$0xf]
    %v1909 = vld [vmem:[%s1894 + $0x38] sm:$0xf]
    %v1910 = vld [vmem:[%s1894 + $0x3c] sm:$0xf]
    %v1927 = vunpack.c.l.b16 %v1895
    %v1928 = vunpack.c.l.b16 %v1896
    %v1929 = vunpack.c.l.b16 %v1897
    %v1930 = vunpack.c.l.b16 %v1898
    %v1931 = vunpack.c.l.b16 %v1899
    %v1932 = vunpack.c.l.b16 %v1900
    %v1933 = vunpack.c.l.b16 %v1901
    %v1934 = vunpack.c.l.b16 %v1902
    %v1935 = vunpack.c.l.b16 %v1903
    %v1936 = vunpack.c.l.b16 %v1904
    %v1937 = vunpack.c.l.b16 %v1905
    %v1938 = vunpack.c.l.b16 %v1906
    %v1939 = vunpack.c.l.b16 %v1907
    %v1940 = vunpack.c.l.b16 %v1908
    %v1941 = vunpack.c.l.b16 %v1909
    %v1942 = vunpack.c.l.b16 %v1910
    %v1943 = vpack.c.b16 %v1928, %v1927
    %v1944 = vpack.c.b16 %v1930, %v1929
    %v1945 = vpack.c.b16 %v1932, %v1931
    %v1946 = vpack.c.b16 %v1934, %v1933
    %v1947 = vpack.c.b16 %v1936, %v1935
    %v1948 = vpack.c.b16 %v1938, %v1937
    %v1949 = vpack.c.b16 %v1940, %v1939
    %v1950 = vpack.c.b16 %v1942, %v1941
    %1959 = vmatpush.bf16.msra.mxu0 %v1950
    %1960 = vmatpush.bf16.msra.mxu0 %v1949
    %1961 = vmatpush.bf16.msra.mxu0 %v1948
    %1962 = vmatpush.bf16.msra.mxu0 %v1947
    %1963 = vmatpush.bf16.msra.mxu0 %v1946
    %1964 = vmatpush.bf16.msra.mxu0 %v1945
    %1965 = vmatpush.bf16.msra.mxu0 %v1944
    %1966 = vmatpush.bf16.msra.mxu0 %v1943
    %1967 = vmatmul.bf16.gmra.mxu0 %v1797
    %v1968 = vpop.f32.mrf.mxu0
    %v1969 = vadd.f32 0.0, %v1968
    %v1970 = vpop.f32.mrf.mxu0
    %v1971 = vadd.f32 0.0, %v1970
    %1972 = vmatmul.bf16.gmra.mxu0 %v1798
    %v1973 = vpop.f32.mrf.mxu0
    %v1974 = vadd.f32 0.0, %v1973
    %v1975 = vpop.f32.mrf.mxu0
    %v1976 = vadd.f32 0.0, %v1975
    %1977 = vmatmul.bf16.gmra.mxu0 %v1799
    %v1978 = vpop.f32.mrf.mxu0
    %v1979 = vadd.f32 0.0, %v1978
    %v1980 = vpop.f32.mrf.mxu0
    %v1981 = vadd.f32 0.0, %v1980
    %1982 = vmatmul.bf16.gmra.mxu0 %v1800
    %v1983 = vpop.f32.mrf.mxu0
    %v1984 = vadd.f32 0.0, %v1983
    %v1985 = vpop.f32.mrf.mxu0
    %v1986 = vadd.f32 0.0, %v1985
    %1987 = vdwg.mxu0
    %s1988 = scalar_lea.vmem [#allocation2], 512
    %v1989 = vld [vmem:[%s1988] sm:$0xf]
    %v1990 = vld [vmem:[%s1988 + $0x4] sm:$0xf]
    %v1991 = vld [vmem:[%s1988 + $0x8] sm:$0xf]
    %v1992 = vld [vmem:[%s1988 + $0xc] sm:$0xf]
    %v1993 = vld [vmem:[%s1988 + $0x10] sm:$0xf]
    %v1994 = vld [vmem:[%s1988 + $0x14] sm:$0xf]
    %v1995 = vld [vmem:[%s1988 + $0x18] sm:$0xf]
    %v1996 = vld [vmem:[%s1988 + $0x1c] sm:$0xf]
    %v1997 = vld [vmem:[%s1988 + $0x20] sm:$0xf]
    %v1998 = vld [vmem:[%s1988 + $0x24] sm:$0xf]
    %v1999 = vld [vmem:[%s1988 + $0x28] sm:$0xf]
    %v2000 = vld [vmem:[%s1988 + $0x2c] sm:$0xf]
    %v2001 = vld [vmem:[%s1988 + $0x30] sm:$0xf]
    %v2002 = vld [vmem:[%s1988 + $0x34] sm:$0xf]
    %v2003 = vld [vmem:[%s1988 + $0x38] sm:$0xf]
    %v2004 = vld [vmem:[%s1988 + $0x3c] sm:$0xf]
    %v2021 = vunpack.c.l.b16 %v1989
    %v2022 = vunpack.c.l.b16 %v1990
    %v2023 = vunpack.c.l.b16 %v1991
    %v2024 = vunpack.c.l.b16 %v1992
    %v2025 = vunpack.c.l.b16 %v1993
    %v2026 = vunpack.c.l.b16 %v1994
    %v2027 = vunpack.c.l.b16 %v1995
    %v2028 = vunpack.c.l.b16 %v1996
    %v2029 = vunpack.c.l.b16 %v1997
    %v2030 = vunpack.c.l.b16 %v1998
    %v2031 = vunpack.c.l.b16 %v1999
    %v2032 = vunpack.c.l.b16 %v2000
    %v2033 = vunpack.c.l.b16 %v2001
    %v2034 = vunpack.c.l.b16 %v2002
    %v2035 = vunpack.c.l.b16 %v2003
    %v2036 = vunpack.c.l.b16 %v2004
    %v2037 = vpack.c.b16 %v2022, %v2021
    %v2038 = vpack.c.b16 %v2024, %v2023
    %v2039 = vpack.c.b16 %v2026, %v2025
    %v2040 = vpack.c.b16 %v2028, %v2027
    %v2041 = vpack.c.b16 %v2030, %v2029
    %v2042 = vpack.c.b16 %v2032, %v2031
    %v2043 = vpack.c.b16 %v2034, %v2033
    %v2044 = vpack.c.b16 %v2036, %v2035
    %2053 = vmatpush.bf16.msra.mxu0 %v2044
    %2054 = vmatpush.bf16.msra.mxu0 %v2043
    %2055 = vmatpush.bf16.msra.mxu0 %v2042
    %2056 = vmatpush.bf16.msra.mxu0 %v2041
    %2057 = vmatpush.bf16.msra.mxu0 %v2040
    %2058 = vmatpush.bf16.msra.mxu0 %v2039
    %2059 = vmatpush.bf16.msra.mxu0 %v2038
    %2060 = vmatpush.bf16.msra.mxu0 %v2037
    %2061 = vmatmul.bf16.gmra.mxu0 %v1797
    %v2062 = vpop.f32.mrf.mxu0
    %v2063 = vadd.f32 0.0, %v2062
    %v2064 = vpop.f32.mrf.mxu0
    %v2065 = vadd.f32 0.0, %v2064
    %2066 = vmatmul.bf16.gmra.mxu0 %v1798
    %v2067 = vpop.f32.mrf.mxu0
    %v2068 = vadd.f32 0.0, %v2067
    %v2069 = vpop.f32.mrf.mxu0
    %v2070 = vadd.f32 0.0, %v2069
    %2071 = vmatmul.bf16.gmra.mxu0 %v1799
    %v2072 = vpop.f32.mrf.mxu0
    %v2073 = vadd.f32 0.0, %v2072
    %v2074 = vpop.f32.mrf.mxu0
    %v2075 = vadd.f32 0.0, %v2074
    %2076 = vmatmul.bf16.gmra.mxu0 %v1800
    %v2077 = vpop.f32.mrf.mxu0
    %v2078 = vadd.f32 0.0, %v2077
    %v2079 = vpop.f32.mrf.mxu0
    %v2080 = vadd.f32 0.0, %v2079
    %2081 = vdwg.mxu0
    %v2090 = vrot.slane %v1875, 7
    %v2091 = vrot.slane %v1877, 7
    %v2092 = vsel %vm903, %v2090, %v2091
    %v2093 = vrot.slane %v1880, 7
    %v2094 = vsel %vm903, %v2091, %v2093
    %v2095 = vrot.slane %v1882, 7
    %v2096 = vsel %vm903, %v2093, %v2095
    %v2097 = vrot.slane %v1885, 7
    %v2098 = vsel %vm903, %v2095, %v2097
    %v2099 = vrot.slane %v1887, 7
    %v2100 = vsel %vm903, %v2097, %v2099
    %v2101 = vrot.slane %v1890, 7
    %v2102 = vsel %vm903, %v2099, %v2101
    %v2103 = vrot.slane %v1892, 7
    %v2104 = vsel %vm903, %v2101, %v2103
    %v2113 = vsel %vm903, 0.0, %v2090
    %v2114 = vadd.f32 %v2113, %v1969
    %v2115 = vadd.f32 %v2092, %v1971
    %v2116 = vadd.f32 %v2094, %v1974
    %v2117 = vadd.f32 %v2096, %v1976
    %v2118 = vadd.f32 %v2098, %v1979
    %v2119 = vadd.f32 %v2100, %v1981
    %v2120 = vadd.f32 %v2102, %v1984
    %v2121 = vadd.f32 %v2104, %v1986
    %v2130 = vrot.slane %v2063, 1
    %v2131 = vrot.slane %v2065, 1
    %v2132 = vsel %vm984, %v2130, %v2131
    %v2133 = vrot.slane %v2068, 1
    %v2134 = vsel %vm984, %v2131, %v2133
    %v2135 = vrot.slane %v2070, 1
    %v2136 = vsel %vm984, %v2133, %v2135
    %v2137 = vrot.slane %v2073, 1
    %v2138 = vsel %vm984, %v2135, %v2137
    %v2139 = vrot.slane %v2075, 1
    %v2140 = vsel %vm984, %v2137, %v2139
    %v2141 = vrot.slane %v2078, 1
    %v2142 = vsel %vm984, %v2139, %v2141
    %v2143 = vrot.slane %v2080, 1
    %v2144 = vsel %vm984, %v2141, %v2143
    %v2153 = vsel %vm984, %v2143, 0.0
    %v2154 = vadd.f32 %v2114, %v2132
    %v2155 = vadd.f32 %v2115, %v2134
    %v2156 = vadd.f32 %v2116, %v2136
    %v2157 = vadd.f32 %v2117, %v2138
    %v2158 = vadd.f32 %v2118, %v2140
    %v2159 = vadd.f32 %v2119, %v2142
    %v2160 = vadd.f32 %v2120, %v2144
    %v2161 = vadd.f32 %v2121, %v2153
    %v2162 = vld [vmem:[%s3 + $0x2] sm:$0x1]
    %v2163 = vperm.slane %v2162, 0
    %v2164 = vadd.f32 %v2154, %v2163
    %v2165 = vadd.f32 %v2155, %v2163
    %v2166 = vadd.f32 %v2156, %v2163
    %v2167 = vadd.f32 %v2157, %v2163
    %v2168 = vadd.f32 %v2158, %v2163
    %v2169 = vadd.f32 %v2159, %v2163
    %v2170 = vadd.f32 %v2160, %v2163
    %v2171 = vadd.f32 %v2161, %v2163
    %v2172 = vmax.f32 %v2164, 0.0
    %v2173 = vmax.f32 %v2165, 0.0
    %v2174 = vmax.f32 %v2166, 0.0
    %v2175 = vmax.f32 %v2167, 0.0
    %v2176 = vmax.f32 %v2168, 0.0
    %v2177 = vmax.f32 %v2169, 0.0
    %v2178 = vmax.f32 %v2170, 0.0
    %v2179 = vmax.f32 %v2171, 0.0
    %v2180 = vsel %vm298, %v2172, 0.0
    %v2181 = vsel %vm299, %v2173, 0.0
    %v2182 = vsel %vm300, %v2174, 0.0
    %v2183 = vsel %vm301, %v2175, 0.0
    %v2184 = vsel %vm302, %v2176, 0.0
    %v2185 = vsel %vm303, %v2177, 0.0
    %v2186 = vsel %vm304, %v2178, 0.0
    %v2187 = vsel %vm305, %v2179, 0.0
    %s2188 = sshll.u32 %s535, 4
    %2189 = dma.done %s102, %s2188
    %v2190 = vpack.c.bf16 %v2181, %v2180
    %v2191 = vpack.c.bf16 %v2183, %v2182
    %v2192 = vpack.c.bf16 %v2185, %v2184
    %v2193 = vpack.c.bf16 %v2187, %v2186
    %v2194 = vld [vmem:[%s101] sm:$0xf]
    %v2195 = vld [vmem:[%s101 + $0x4] sm:$0xf]
    %v2196 = vld [vmem:[%s101 + $0x8] sm:$0xf]
    %v2197 = vld [vmem:[%s101 + $0xc] sm:$0xf]
    %v2198 = vld [vmem:[%s101 + $0x10] sm:$0xf]
    %v2199 = vld [vmem:[%s101 + $0x14] sm:$0xf]
    %v2200 = vld [vmem:[%s101 + $0x18] sm:$0xf]
    %v2201 = vld [vmem:[%s101 + $0x1c] sm:$0xf]
    %v2202 = vld [vmem:[%s101 + $0x20] sm:$0xf]
    %v2203 = vld [vmem:[%s101 + $0x24] sm:$0xf]
    %v2204 = vld [vmem:[%s101 + $0x28] sm:$0xf]
    %v2205 = vld [vmem:[%s101 + $0x2c] sm:$0xf]
    %v2206 = vld [vmem:[%s101 + $0x30] sm:$0xf]
    %v2207 = vld [vmem:[%s101 + $0x34] sm:$0xf]
    %v2208 = vld [vmem:[%s101 + $0x38] sm:$0xf]
    %v2209 = vld [vmem:[%s101 + $0x3c] sm:$0xf]
    %v2226 = vunpack.c.l.b16 %v2194
    %v2227 = vunpack.c.l.b16 %v2195
    %v2228 = vunpack.c.l.b16 %v2196
    %v2229 = vunpack.c.l.b16 %v2197
    %v2230 = vunpack.c.l.b16 %v2198
    %v2231 = vunpack.c.l.b16 %v2199
    %v2232 = vunpack.c.l.b16 %v2200
    %v2233 = vunpack.c.l.b16 %v2201
    %v2234 = vunpack.c.l.b16 %v2202
    %v2235 = vunpack.c.l.b16 %v2203
    %v2236 = vunpack.c.l.b16 %v2204
    %v2237 = vunpack.c.l.b16 %v2205
    %v2238 = vunpack.c.l.b16 %v2206
    %v2239 = vunpack.c.l.b16 %v2207
    %v2240 = vunpack.c.l.b16 %v2208
    %v2241 = vunpack.c.l.b16 %v2209
    %v2242 = vpack.c.b16 %v2227, %v2226
    %v2243 = vpack.c.b16 %v2229, %v2228
    %v2244 = vpack.c.b16 %v2231, %v2230
    %v2245 = vpack.c.b16 %v2233, %v2232
    %v2246 = vpack.c.b16 %v2235, %v2234
    %v2247 = vpack.c.b16 %v2237, %v2236
    %v2248 = vpack.c.b16 %v2239, %v2238
    %v2249 = vpack.c.b16 %v2241, %v2240
    %2258 = vmatpush.bf16.msra.mxu0 %v2249
    %2259 = vmatpush.bf16.msra.mxu0 %v2248
    %2260 = vmatpush.bf16.msra.mxu0 %v2247
    %2261 = vmatpush.bf16.msra.mxu0 %v2246
    %2262 = vmatpush.bf16.msra.mxu0 %v2245
    %2263 = vmatpush.bf16.msra.mxu0 %v2244
    %2264 = vmatpush.bf16.msra.mxu0 %v2243
    %2265 = vmatpush.bf16.msra.mxu0 %v2242
    %2266 = vmatmul.bf16.gmra.mxu0 %v2190
    %v2267 = vpop.f32.mrf.mxu0
    %v2268 = vadd.f32 0.0, %v2267
    %v2269 = vpop.f32.mrf.mxu0
    %v2270 = vadd.f32 0.0, %v2269
    %2271 = vmatmul.bf16.gmra.mxu0 %v2191
    %v2272 = vpop.f32.mrf.mxu0
    %v2273 = vadd.f32 0.0, %v2272
    %v2274 = vpop.f32.mrf.mxu0
    %v2275 = vadd.f32 0.0, %v2274
    %2276 = vmatmul.bf16.gmra.mxu0 %v2192
    %v2277 = vpop.f32.mrf.mxu0
    %v2278 = vadd.f32 0.0, %v2277
    %v2279 = vpop.f32.mrf.mxu0
    %v2280 = vadd.f32 0.0, %v2279
    %2281 = vmatmul.bf16.gmra.mxu0 %v2193
    %v2282 = vpop.f32.mrf.mxu0
    %v2283 = vadd.f32 0.0, %v2282
    %v2284 = vpop.f32.mrf.mxu0
    %v2285 = vadd.f32 0.0, %v2284
    %2286 = vdwg.mxu0
    %s2287 = scalar_lea.vmem [#allocation2], 640
    %v2288 = vld [vmem:[%s2287] sm:$0xf]
    %v2289 = vld [vmem:[%s2287 + $0x4] sm:$0xf]
    %v2290 = vld [vmem:[%s2287 + $0x8] sm:$0xf]
    %v2291 = vld [vmem:[%s2287 + $0xc] sm:$0xf]
    %v2292 = vld [vmem:[%s2287 + $0x10] sm:$0xf]
    %v2293 = vld [vmem:[%s2287 + $0x14] sm:$0xf]
    %v2294 = vld [vmem:[%s2287 + $0x18] sm:$0xf]
    %v2295 = vld [vmem:[%s2287 + $0x1c] sm:$0xf]
    %v2296 = vld [vmem:[%s2287 + $0x20] sm:$0xf]
    %v2297 = vld [vmem:[%s2287 + $0x24] sm:$0xf]
    %v2298 = vld [vmem:[%s2287 + $0x28] sm:$0xf]
    %v2299 = vld [vmem:[%s2287 + $0x2c] sm:$0xf]
    %v2300 = vld [vmem:[%s2287 + $0x30] sm:$0xf]
    %v2301 = vld [vmem:[%s2287 + $0x34] sm:$0xf]
    %v2302 = vld [vmem:[%s2287 + $0x38] sm:$0xf]
    %v2303 = vld [vmem:[%s2287 + $0x3c] sm:$0xf]
    %v2320 = vunpack.c.l.b16 %v2288
    %v2321 = vunpack.c.l.b16 %v2289
    %v2322 = vunpack.c.l.b16 %v2290
    %v2323 = vunpack.c.l.b16 %v2291
    %v2324 = vunpack.c.l.b16 %v2292
    %v2325 = vunpack.c.l.b16 %v2293
    %v2326 = vunpack.c.l.b16 %v2294
    %v2327 = vunpack.c.l.b16 %v2295
    %v2328 = vunpack.c.l.b16 %v2296
    %v2329 = vunpack.c.l.b16 %v2297
    %v2330 = vunpack.c.l.b16 %v2298
    %v2331 = vunpack.c.l.b16 %v2299
    %v2332 = vunpack.c.l.b16 %v2300
    %v2333 = vunpack.c.l.b16 %v2301
    %v2334 = vunpack.c.l.b16 %v2302
    %v2335 = vunpack.c.l.b16 %v2303
    %v2336 = vpack.c.b16 %v2321, %v2320
    %v2337 = vpack.c.b16 %v2323, %v2322
    %v2338 = vpack.c.b16 %v2325, %v2324
    %v2339 = vpack.c.b16 %v2327, %v2326
    %v2340 = vpack.c.b16 %v2329, %v2328
    %v2341 = vpack.c.b16 %v2331, %v2330
    %v2342 = vpack.c.b16 %v2333, %v2332
    %v2343 = vpack.c.b16 %v2335, %v2334
    %2352 = vmatpush.bf16.msra.mxu0 %v2343
    %2353 = vmatpush.bf16.msra.mxu0 %v2342
    %2354 = vmatpush.bf16.msra.mxu0 %v2341
    %2355 = vmatpush.bf16.msra.mxu0 %v2340
    %2356 = vmatpush.bf16.msra.mxu0 %v2339
    %2357 = vmatpush.bf16.msra.mxu0 %v2338
    %2358 = vmatpush.bf16.msra.mxu0 %v2337
    %2359 = vmatpush.bf16.msra.mxu0 %v2336
    %2360 = vmatmul.bf16.gmra.mxu0 %v2190
    %v2361 = vpop.f32.mrf.mxu0
    %v2362 = vadd.f32 0.0, %v2361
    %v2363 = vpop.f32.mrf.mxu0
    %v2364 = vadd.f32 0.0, %v2363
    %2365 = vmatmul.bf16.gmra.mxu0 %v2191
    %v2366 = vpop.f32.mrf.mxu0
    %v2367 = vadd.f32 0.0, %v2366
    %v2368 = vpop.f32.mrf.mxu0
    %v2369 = vadd.f32 0.0, %v2368
    %2370 = vmatmul.bf16.gmra.mxu0 %v2192
    %v2371 = vpop.f32.mrf.mxu0
    %v2372 = vadd.f32 0.0, %v2371
    %v2373 = vpop.f32.mrf.mxu0
    %v2374 = vadd.f32 0.0, %v2373
    %2375 = vmatmul.bf16.gmra.mxu0 %v2193
    %v2376 = vpop.f32.mrf.mxu0
    %v2377 = vadd.f32 0.0, %v2376
    %v2378 = vpop.f32.mrf.mxu0
    %v2379 = vadd.f32 0.0, %v2378
    %2380 = vdwg.mxu0
    %s2381 = scalar_lea.vmem [#allocation2], 704
    %v2382 = vld [vmem:[%s2381] sm:$0xf]
    %v2383 = vld [vmem:[%s2381 + $0x4] sm:$0xf]
    %v2384 = vld [vmem:[%s2381 + $0x8] sm:$0xf]
    %v2385 = vld [vmem:[%s2381 + $0xc] sm:$0xf]
    %v2386 = vld [vmem:[%s2381 + $0x10] sm:$0xf]
    %v2387 = vld [vmem:[%s2381 + $0x14] sm:$0xf]
    %v2388 = vld [vmem:[%s2381 + $0x18] sm:$0xf]
    %v2389 = vld [vmem:[%s2381 + $0x1c] sm:$0xf]
    %v2390 = vld [vmem:[%s2381 + $0x20] sm:$0xf]
    %v2391 = vld [vmem:[%s2381 + $0x24] sm:$0xf]
    %v2392 = vld [vmem:[%s2381 + $0x28] sm:$0xf]
    %v2393 = vld [vmem:[%s2381 + $0x2c] sm:$0xf]
    %v2394 = vld [vmem:[%s2381 + $0x30] sm:$0xf]
    %v2395 = vld [vmem:[%s2381 + $0x34] sm:$0xf]
    %v2396 = vld [vmem:[%s2381 + $0x38] sm:$0xf]
    %v2397 = vld [vmem:[%s2381 + $0x3c] sm:$0xf]
    %v2414 = vunpack.c.l.b16 %v2382
    %v2415 = vunpack.c.l.b16 %v2383
    %v2416 = vunpack.c.l.b16 %v2384
    %v2417 = vunpack.c.l.b16 %v2385
    %v2418 = vunpack.c.l.b16 %v2386
    %v2419 = vunpack.c.l.b16 %v2387
    %v2420 = vunpack.c.l.b16 %v2388
    %v2421 = vunpack.c.l.b16 %v2389
    %v2422 = vunpack.c.l.b16 %v2390
    %v2423 = vunpack.c.l.b16 %v2391
    %v2424 = vunpack.c.l.b16 %v2392
    %v2425 = vunpack.c.l.b16 %v2393
    %v2426 = vunpack.c.l.b16 %v2394
    %v2427 = vunpack.c.l.b16 %v2395
    %v2428 = vunpack.c.l.b16 %v2396
    %v2429 = vunpack.c.l.b16 %v2397
    %v2430 = vpack.c.b16 %v2415, %v2414
    %v2431 = vpack.c.b16 %v2417, %v2416
    %v2432 = vpack.c.b16 %v2419, %v2418
    %v2433 = vpack.c.b16 %v2421, %v2420
    %v2434 = vpack.c.b16 %v2423, %v2422
    %v2435 = vpack.c.b16 %v2425, %v2424
    %v2436 = vpack.c.b16 %v2427, %v2426
    %v2437 = vpack.c.b16 %v2429, %v2428
    %2446 = vmatpush.bf16.msra.mxu0 %v2437
    %2447 = vmatpush.bf16.msra.mxu0 %v2436
    %2448 = vmatpush.bf16.msra.mxu0 %v2435
    %2449 = vmatpush.bf16.msra.mxu0 %v2434
    %2450 = vmatpush.bf16.msra.mxu0 %v2433
    %2451 = vmatpush.bf16.msra.mxu0 %v2432
    %2452 = vmatpush.bf16.msra.mxu0 %v2431
    %2453 = vmatpush.bf16.msra.mxu0 %v2430
    %2454 = vmatmul.bf16.gmra.mxu0 %v2190
    %v2455 = vpop.f32.mrf.mxu0
    %v2456 = vadd.f32 0.0, %v2455
    %v2457 = vpop.f32.mrf.mxu0
    %v2458 = vadd.f32 0.0, %v2457
    %2459 = vmatmul.bf16.gmra.mxu0 %v2191
    %v2460 = vpop.f32.mrf.mxu0
    %v2461 = vadd.f32 0.0, %v2460
    %v2462 = vpop.f32.mrf.mxu0
    %v2463 = vadd.f32 0.0, %v2462
    %2464 = vmatmul.bf16.gmra.mxu0 %v2192
    %v2465 = vpop.f32.mrf.mxu0
    %v2466 = vadd.f32 0.0, %v2465
    %v2467 = vpop.f32.mrf.mxu0
    %v2468 = vadd.f32 0.0, %v2467
    %2469 = vmatmul.bf16.gmra.mxu0 %v2193
    %v2470 = vpop.f32.mrf.mxu0
    %v2471 = vadd.f32 0.0, %v2470
    %v2472 = vpop.f32.mrf.mxu0
    %v2473 = vadd.f32 0.0, %v2472
    %2474 = vdwg.mxu0
    %v2483 = vrot.slane %v2268, 7
    %v2484 = vrot.slane %v2270, 7
    %v2485 = vsel %vm903, %v2483, %v2484
    %v2486 = vrot.slane %v2273, 7
    %v2487 = vsel %vm903, %v2484, %v2486
    %v2488 = vrot.slane %v2275, 7
    %v2489 = vsel %vm903, %v2486, %v2488
    %v2490 = vrot.slane %v2278, 7
    %v2491 = vsel %vm903, %v2488, %v2490
    %v2492 = vrot.slane %v2280, 7
    %v2493 = vsel %vm903, %v2490, %v2492
    %v2494 = vrot.slane %v2283, 7
    %v2495 = vsel %vm903, %v2492, %v2494
    %v2496 = vrot.slane %v2285, 7
    %v2497 = vsel %vm903, %v2494, %v2496
    %v2506 = vsel %vm903, 0.0, %v2483
    %v2507 = vadd.f32 %v2506, %v2362
    %v2508 = vadd.f32 %v2485, %v2364
    %v2509 = vadd.f32 %v2487, %v2367
    %v2510 = vadd.f32 %v2489, %v2369
    %v2511 = vadd.f32 %v2491, %v2372
    %v2512 = vadd.f32 %v2493, %v2374
    %v2513 = vadd.f32 %v2495, %v2377
    %v2514 = vadd.f32 %v2497, %v2379
    %v2523 = vrot.slane %v2456, 1
    %v2524 = vrot.slane %v2458, 1
    %v2525 = vsel %vm984, %v2523, %v2524
    %v2526 = vrot.slane %v2461, 1
    %v2527 = vsel %vm984, %v2524, %v2526
    %v2528 = vrot.slane %v2463, 1
    %v2529 = vsel %vm984, %v2526, %v2528
    %v2530 = vrot.slane %v2466, 1
    %v2531 = vsel %vm984, %v2528, %v2530
    %v2532 = vrot.slane %v2468, 1
    %v2533 = vsel %vm984, %v2530, %v2532
    %v2534 = vrot.slane %v2471, 1
    %v2535 = vsel %vm984, %v2532, %v2534
    %v2536 = vrot.slane %v2473, 1
    %v2537 = vsel %vm984, %v2534, %v2536
    %v2546 = vsel %vm984, %v2536, 0.0
    %v2547 = vadd.f32 %v2507, %v2525
    %v2548 = vadd.f32 %v2508, %v2527
    %v2549 = vadd.f32 %v2509, %v2529
    %v2550 = vadd.f32 %v2510, %v2531
    %v2551 = vadd.f32 %v2511, %v2533
    %v2552 = vadd.f32 %v2512, %v2535
    %v2553 = vadd.f32 %v2513, %v2537
    %v2554 = vadd.f32 %v2514, %v2546
    %v2555 = vld [vmem:[%s3 + $0x3] sm:$0x1]
    %v2556 = vperm.slane %v2555, 0
    %v2557 = vadd.f32 %v2547, %v2556
    %v2558 = vadd.f32 %v2548, %v2556
    %v2559 = vadd.f32 %v2549, %v2556
    %v2560 = vadd.f32 %v2550, %v2556
    %v2561 = vadd.f32 %v2551, %v2556
    %v2562 = vadd.f32 %v2552, %v2556
    %v2563 = vadd.f32 %v2553, %v2556
    %v2564 = vadd.f32 %v2554, %v2556
    %v2565 = vmax.f32 %v2557, 0.0
    %v2566 = vmax.f32 %v2558, 0.0
    %v2567 = vmax.f32 %v2559, 0.0
    %v2568 = vmax.f32 %v2560, 0.0
    %v2569 = vmax.f32 %v2561, 0.0
    %v2570 = vmax.f32 %v2562, 0.0
    %v2571 = vmax.f32 %v2563, 0.0
    %v2572 = vmax.f32 %v2564, 0.0
    %v2573 = vsel %vm298, %v2565, 0.0
    %v2574 = vsel %vm299, %v2566, 0.0
    %v2575 = vsel %vm300, %v2567, 0.0
    %v2576 = vsel %vm301, %v2568, 0.0
    %v2577 = vsel %vm302, %v2569, 0.0
    %v2578 = vsel %vm303, %v2570, 0.0
    %v2579 = vsel %vm304, %v2571, 0.0
    %v2580 = vsel %vm305, %v2572, 0.0
    %v2581 = vadd.f32 %v1787, %v2573
    %v2582 = vadd.f32 %v1788, %v2574
    %v2583 = vadd.f32 %v1789, %v2575
    %v2584 = vadd.f32 %v1790, %v2576
    %v2585 = vadd.f32 %v1791, %v2577
    %v2586 = vadd.f32 %v1792, %v2578
    %v2587 = vadd.f32 %v1793, %v2579
    %v2588 = vadd.f32 %v1794, %v2580
    %v2597 = vrot.slane %v2581, 1
    %v2598 = vrot.slane %v2582, 1
    %v2599 = vsel %vm984, %v2597, %v2598
    %v2600 = vrot.slane %v2583, 1
    %v2601 = vsel %vm984, %v2598, %v2600
    %v2602 = vrot.slane %v2584, 1
    %v2603 = vsel %vm984, %v2600, %v2602
    %v2604 = vrot.slane %v2585, 1
    %v2605 = vsel %vm984, %v2602, %v2604
    %v2606 = vrot.slane %v2586, 1
    %v2607 = vsel %vm984, %v2604, %v2606
    %v2608 = vrot.slane %v2587, 1
    %v2609 = vsel %vm984, %v2606, %v2608
    %v2610 = vrot.slane %v2588, 1
    %v2611 = vsel %vm984, %v2608, %v2610
    %v2620 = vsel %vm984, %v2610, 0.0
    %v2621 = vmax.f32 %v2581, %v2599
    %v2622 = vmax.f32 %v2582, %v2601
    %v2623 = vmax.f32 %v2583, %v2603
    %v2624 = vmax.f32 %v2584, %v2605
    %v2625 = vmax.f32 %v2585, %v2607
    %v2626 = vmax.f32 %v2586, %v2609
    %v2627 = vmax.f32 %v2587, %v2611
    %v2628 = vmax.f32 %v2588, %v2620
    %2629 = vst [vmem:[#allocation6] sm:$0xff] %v2621
    %2630 = vst [vmem:[#allocation6 + $0x8] sm:$0xff] %v2622
    %2631 = vst [vmem:[#allocation6 + $0x10] sm:$0xff] %v2623
    %2632 = vst [vmem:[#allocation6 + $0x18] sm:$0xff] %v2624
    %2633 = vst [vmem:[#allocation6 + $0x20] sm:$0xff] %v2625
    %2634 = vst [vmem:[#allocation6 + $0x28] sm:$0xff] %v2626
    %2635 = vst [vmem:[#allocation6 + $0x30] sm:$0xff] %v2627
    %2636 = vst [vmem:[#allocation6 + $0x38] sm:$0xff] %v2628
    %v2637 = vld [vmem:[#allocation6] ss:$2 sm:$0xff]
    %s2638 = scalar_lea.vmem [#allocation6], 16
    %v2639 = vld [vmem:[%s2638] ss:$2 sm:$0xff]
    %s2640 = scalar_lea.vmem [#allocation6], 32
    %v2641 = vld [vmem:[%s2640] ss:$2 sm:$0xff]
    %s2642 = scalar_lea.vmem [#allocation6], 48
    %v2643 = vld [vmem:[%s2642] ss:$2 sm:$0xff]
    %v2644 = vsel %vm310, %v2637, 0.0
    %v2645 = vsel %vm311, %v2639, 0.0
    %v2646 = vsel %vm312, %v2641, 0.0
    %v2647 = vsel %vm313, %v2643, 0.0
    %s2648 = sshll.u32 %s535, 4
    %2649 = dma.done %s118, %s2648
    %v2650 = vpack.c.bf16 %v2645, %v2644
    %v2651 = vpack.c.bf16 %v2647, %v2646
    %v2652 = vld [vmem:[%s117] sm:$0xf]
    %v2653 = vld [vmem:[%s117 + $0x4] sm:$0xf]
    %v2654 = vld [vmem:[%s117 + $0x8] sm:$0xf]
    %v2655 = vld [vmem:[%s117 + $0xc] sm:$0xf]
    %v2656 = vld [vmem:[%s117 + $0x10] sm:$0xf]
    %v2657 = vld [vmem:[%s117 + $0x14] sm:$0xf]
    %v2658 = vld [vmem:[%s117 + $0x18] sm:$0xf]
    %v2659 = vld [vmem:[%s117 + $0x1c] sm:$0xf]
    %v2660 = vld [vmem:[%s117 + $0x20] sm:$0xf]
    %v2661 = vld [vmem:[%s117 + $0x24] sm:$0xf]
    %v2662 = vld [vmem:[%s117 + $0x28] sm:$0xf]
    %v2663 = vld [vmem:[%s117 + $0x2c] sm:$0xf]
    %v2664 = vld [vmem:[%s117 + $0x30] sm:$0xf]
    %v2665 = vld [vmem:[%s117 + $0x34] sm:$0xf]
    %v2666 = vld [vmem:[%s117 + $0x38] sm:$0xf]
    %v2667 = vld [vmem:[%s117 + $0x3c] sm:$0xf]
    %v2684 = vunpack.c.l.b16 %v2652
    %v2685 = vunpack.c.l.b16 %v2653
    %v2686 = vunpack.c.l.b16 %v2654
    %v2687 = vunpack.c.l.b16 %v2655
    %v2688 = vunpack.c.l.b16 %v2656
    %v2689 = vunpack.c.l.b16 %v2657
    %v2690 = vunpack.c.l.b16 %v2658
    %v2691 = vunpack.c.l.b16 %v2659
    %v2692 = vunpack.c.l.b16 %v2660
    %v2693 = vunpack.c.l.b16 %v2661
    %v2694 = vunpack.c.l.b16 %v2662
    %v2695 = vunpack.c.l.b16 %v2663
    %v2696 = vunpack.c.l.b16 %v2664
    %v2697 = vunpack.c.l.b16 %v2665
    %v2698 = vunpack.c.l.b16 %v2666
    %v2699 = vunpack.c.l.b16 %v2667
    %v2700 = vpack.c.b16 %v2685, %v2684
    %v2701 = vpack.c.b16 %v2687, %v2686
    %v2702 = vpack.c.b16 %v2689, %v2688
    %v2703 = vpack.c.b16 %v2691, %v2690
    %v2704 = vpack.c.b16 %v2693, %v2692
    %v2705 = vpack.c.b16 %v2695, %v2694
    %v2706 = vpack.c.b16 %v2697, %v2696
    %v2707 = vpack.c.b16 %v2699, %v2698
    %2716 = vmatpush.bf16.msra.mxu0 %v2707
    %2717 = vmatpush.bf16.msra.mxu0 %v2706
    %2718 = vmatpush.bf16.msra.mxu0 %v2705
    %2719 = vmatpush.bf16.msra.mxu0 %v2704
    %2720 = vmatpush.bf16.msra.mxu0 %v2703
    %2721 = vmatpush.bf16.msra.mxu0 %v2702
    %2722 = vmatpush.bf16.msra.mxu0 %v2701
    %2723 = vmatpush.bf16.msra.mxu0 %v2700
    %2724 = vmatmul.bf16.gmra.mxu0 %v2650
    %v2725 = vpop.f32.mrf.mxu0
    %v2726 = vadd.f32 0.0, %v2725
    %v2727 = vpop.f32.mrf.mxu0
    %v2728 = vadd.f32 0.0, %v2727
    %2729 = vmatmul.bf16.gmra.mxu0 %v2651
    %v2730 = vpop.f32.mrf.mxu0
    %v2731 = vadd.f32 0.0, %v2730
    %v2732 = vpop.f32.mrf.mxu0
    %v2733 = vadd.f32 0.0, %v2732
    %2734 = vdwg.mxu0
    %s2735 = scalar_lea.vmem [#allocation2], 832
    %v2736 = vld [vmem:[%s2735] sm:$0xf]
    %v2737 = vld [vmem:[%s2735 + $0x4] sm:$0xf]
    %v2738 = vld [vmem:[%s2735 + $0x8] sm:$0xf]
    %v2739 = vld [vmem:[%s2735 + $0xc] sm:$0xf]
    %v2740 = vld [vmem:[%s2735 + $0x10] sm:$0xf]
    %v2741 = vld [vmem:[%s2735 + $0x14] sm:$0xf]
    %v2742 = vld [vmem:[%s2735 + $0x18] sm:$0xf]
    %v2743 = vld [vmem:[%s2735 + $0x1c] sm:$0xf]
    %v2744 = vld [vmem:[%s2735 + $0x20] sm:$0xf]
    %v2745 = vld [vmem:[%s2735 + $0x24] sm:$0xf]
    %v2746 = vld [vmem:[%s2735 + $0x28] sm:$0xf]
    %v2747 = vld [vmem:[%s2735 + $0x2c] sm:$0xf]
    %v2748 = vld [vmem:[%s2735 + $0x30] sm:$0xf]
    %v2749 = vld [vmem:[%s2735 + $0x34] sm:$0xf]
    %v2750 = vld [vmem:[%s2735 + $0x38] sm:$0xf]
    %v2751 = vld [vmem:[%s2735 + $0x3c] sm:$0xf]
    %v2768 = vunpack.c.l.b16 %v2736
    %v2769 = vunpack.c.l.b16 %v2737
    %v2770 = vunpack.c.l.b16 %v2738
    %v2771 = vunpack.c.l.b16 %v2739
    %v2772 = vunpack.c.l.b16 %v2740
    %v2773 = vunpack.c.l.b16 %v2741
    %v2774 = vunpack.c.l.b16 %v2742
    %v2775 = vunpack.c.l.b16 %v2743
    %v2776 = vunpack.c.l.b16 %v2744
    %v2777 = vunpack.c.l.b16 %v2745
    %v2778 = vunpack.c.l.b16 %v2746
    %v2779 = vunpack.c.l.b16 %v2747
    %v2780 = vunpack.c.l.b16 %v2748
    %v2781 = vunpack.c.l.b16 %v2749
    %v2782 = vunpack.c.l.b16 %v2750
    %v2783 = vunpack.c.l.b16 %v2751
    %v2784 = vpack.c.b16 %v2769, %v2768
    %v2785 = vpack.c.b16 %v2771, %v2770
    %v2786 = vpack.c.b16 %v2773, %v2772
    %v2787 = vpack.c.b16 %v2775, %v2774
    %v2788 = vpack.c.b16 %v2777, %v2776
    %v2789 = vpack.c.b16 %v2779, %v2778
    %v2790 = vpack.c.b16 %v2781, %v2780
    %v2791 = vpack.c.b16 %v2783, %v2782
    %2800 = vmatpush.bf16.msra.mxu0 %v2791
    %2801 = vmatpush.bf16.msra.mxu0 %v2790
    %2802 = vmatpush.bf16.msra.mxu0 %v2789
    %2803 = vmatpush.bf16.msra.mxu0 %v2788
    %2804 = vmatpush.bf16.msra.mxu0 %v2787
    %2805 = vmatpush.bf16.msra.mxu0 %v2786
    %2806 = vmatpush.bf16.msra.mxu0 %v2785
    %2807 = vmatpush.bf16.msra.mxu0 %v2784
    %2808 = vmatmul.bf16.gmra.mxu0 %v2650
    %v2809 = vpop.f32.mrf.mxu0
    %v2810 = vadd.f32 0.0, %v2809
    %v2811 = vpop.f32.mrf.mxu0
    %v2812 = vadd.f32 0.0, %v2811
    %2813 = vmatmul.bf16.gmra.mxu0 %v2651
    %v2814 = vpop.f32.mrf.mxu0
    %v2815 = vadd.f32 0.0, %v2814
    %v2816 = vpop.f32.mrf.mxu0
    %v2817 = vadd.f32 0.0, %v2816
    %2818 = vdwg.mxu0
    %s2819 = scalar_lea.vmem [#allocation2], 896
    %v2820 = vld [vmem:[%s2819] sm:$0xf]
    %v2821 = vld [vmem:[%s2819 + $0x4] sm:$0xf]
    %v2822 = vld [vmem:[%s2819 + $0x8] sm:$0xf]
    %v2823 = vld [vmem:[%s2819 + $0xc] sm:$0xf]
    %v2824 = vld [vmem:[%s2819 + $0x10] sm:$0xf]
    %v2825 = vld [vmem:[%s2819 + $0x14] sm:$0xf]
    %v2826 = vld [vmem:[%s2819 + $0x18] sm:$0xf]
    %v2827 = vld [vmem:[%s2819 + $0x1c] sm:$0xf]
    %v2828 = vld [vmem:[%s2819 + $0x20] sm:$0xf]
    %v2829 = vld [vmem:[%s2819 + $0x24] sm:$0xf]
    %v2830 = vld [vmem:[%s2819 + $0x28] sm:$0xf]
    %v2831 = vld [vmem:[%s2819 + $0x2c] sm:$0xf]
    %v2832 = vld [vmem:[%s2819 + $0x30] sm:$0xf]
    %v2833 = vld [vmem:[%s2819 + $0x34] sm:$0xf]
    %v2834 = vld [vmem:[%s2819 + $0x38] sm:$0xf]
    %v2835 = vld [vmem:[%s2819 + $0x3c] sm:$0xf]
    %v2852 = vunpack.c.l.b16 %v2820
    %v2853 = vunpack.c.l.b16 %v2821
    %v2854 = vunpack.c.l.b16 %v2822
    %v2855 = vunpack.c.l.b16 %v2823
    %v2856 = vunpack.c.l.b16 %v2824
    %v2857 = vunpack.c.l.b16 %v2825
    %v2858 = vunpack.c.l.b16 %v2826
    %v2859 = vunpack.c.l.b16 %v2827
    %v2860 = vunpack.c.l.b16 %v2828
    %v2861 = vunpack.c.l.b16 %v2829
    %v2862 = vunpack.c.l.b16 %v2830
    %v2863 = vunpack.c.l.b16 %v2831
    %v2864 = vunpack.c.l.b16 %v2832
    %v2865 = vunpack.c.l.b16 %v2833
    %v2866 = vunpack.c.l.b16 %v2834
    %v2867 = vunpack.c.l.b16 %v2835
    %v2868 = vpack.c.b16 %v2853, %v2852
    %v2869 = vpack.c.b16 %v2855, %v2854
    %v2870 = vpack.c.b16 %v2857, %v2856
    %v2871 = vpack.c.b16 %v2859, %v2858
    %v2872 = vpack.c.b16 %v2861, %v2860
    %v2873 = vpack.c.b16 %v2863, %v2862
    %v2874 = vpack.c.b16 %v2865, %v2864
    %v2875 = vpack.c.b16 %v2867, %v2866
    %2884 = vmatpush.bf16.msra.mxu0 %v2875
    %2885 = vmatpush.bf16.msra.mxu0 %v2874
    %2886 = vmatpush.bf16.msra.mxu0 %v2873
    %2887 = vmatpush.bf16.msra.mxu0 %v2872
    %2888 = vmatpush.bf16.msra.mxu0 %v2871
    %2889 = vmatpush.bf16.msra.mxu0 %v2870
    %2890 = vmatpush.bf16.msra.mxu0 %v2869
    %2891 = vmatpush.bf16.msra.mxu0 %v2868
    %2892 = vmatmul.bf16.gmra.mxu0 %v2650
    %v2893 = vpop.f32.mrf.mxu0
    %v2894 = vadd.f32 0.0, %v2893
    %v2895 = vpop.f32.mrf.mxu0
    %v2896 = vadd.f32 0.0, %v2895
    %2897 = vmatmul.bf16.gmra.mxu0 %v2651
    %v2898 = vpop.f32.mrf.mxu0
    %v2899 = vadd.f32 0.0, %v2898
    %v2900 = vpop.f32.mrf.mxu0
    %v2901 = vadd.f32 0.0, %v2900
    %2902 = vdwg.mxu0
    %v2907 = vrot.slane %v2726, 7
    %v2908 = vrot.slane %v2728, 7
    %v2909 = vsel %vm903, %v2907, %v2908
    %v2910 = vrot.slane %v2731, 7
    %v2911 = vsel %vm903, %v2908, %v2910
    %v2912 = vrot.slane %v2733, 7
    %v2913 = vsel %vm903, %v2910, %v2912
    %v2918 = vsel %vm903, 0.0, %v2907
    %v2919 = vadd.f32 %v2918, %v2810
    %v2920 = vadd.f32 %v2909, %v2812
    %v2921 = vadd.f32 %v2911, %v2815
    %v2922 = vadd.f32 %v2913, %v2817
    %v2927 = vrot.slane %v2894, 1
    %v2928 = vrot.slane %v2896, 1
    %v2929 = vsel %vm984, %v2927, %v2928
    %v2930 = vrot.slane %v2899, 1
    %v2931 = vsel %vm984, %v2928, %v2930
    %v2932 = vrot.slane %v2901, 1
    %v2933 = vsel %vm984, %v2930, %v2932
    %v2938 = vsel %vm984, %v2932, 0.0
    %v2939 = vadd.f32 %v2919, %v2929
    %v2940 = vadd.f32 %v2920, %v2931
    %v2941 = vadd.f32 %v2921, %v2933
    %v2942 = vadd.f32 %v2922, %v2938
    %v2943 = vld [vmem:[%s3 + $0x4] sm:$0x1]
    %v2944 = vperm.slane %v2943, 0
    %v2945 = vadd.f32 %v2939, %v2944
    %v2946 = vadd.f32 %v2940, %v2944
    %v2947 = vadd.f32 %v2941, %v2944
    %v2948 = vadd.f32 %v2942, %v2944
    %v2949 = vmax.f32 %v2945, 0.0
    %v2950 = vmax.f32 %v2946, 0.0
    %v2951 = vmax.f32 %v2947, 0.0
    %v2952 = vmax.f32 %v2948, 0.0
    %v2953 = vsel %vm310, %v2949, 0.0
    %v2954 = vsel %vm311, %v2950, 0.0
    %v2955 = vsel %vm312, %v2951, 0.0
    %v2956 = vsel %vm313, %v2952, 0.0
    %s2957 = sshll.u32 %s535, 4
    %2958 = dma.done %s134, %s2957
    %v2959 = vpack.c.bf16 %v2954, %v2953
    %v2960 = vpack.c.bf16 %v2956, %v2955
    %v2961 = vld [vmem:[%s133] sm:$0xf]
    %v2962 = vld [vmem:[%s133 + $0x4] sm:$0xf]
    %v2963 = vld [vmem:[%s133 + $0x8] sm:$0xf]
    %v2964 = vld [vmem:[%s133 + $0xc] sm:$0xf]
    %v2965 = vld [vmem:[%s133 + $0x10] sm:$0xf]
    %v2966 = vld [vmem:[%s133 + $0x14] sm:$0xf]
    %v2967 = vld [vmem:[%s133 + $0x18] sm:$0xf]
    %v2968 = vld [vmem:[%s133 + $0x1c] sm:$0xf]
    %v2969 = vld [vmem:[%s133 + $0x20] sm:$0xf]
    %v2970 = vld [vmem:[%s133 + $0x24] sm:$0xf]
    %v2971 = vld [vmem:[%s133 + $0x28] sm:$0xf]
    %v2972 = vld [vmem:[%s133 + $0x2c] sm:$0xf]
    %v2973 = vld [vmem:[%s133 + $0x30] sm:$0xf]
    %v2974 = vld [vmem:[%s133 + $0x34] sm:$0xf]
    %v2975 = vld [vmem:[%s133 + $0x38] sm:$0xf]
    %v2976 = vld [vmem:[%s133 + $0x3c] sm:$0xf]
    %v2993 = vunpack.c.l.b16 %v2961
    %v2994 = vunpack.c.l.b16 %v2962
    %v2995 = vunpack.c.l.b16 %v2963
    %v2996 = vunpack.c.l.b16 %v2964
    %v2997 = vunpack.c.l.b16 %v2965
    %v2998 = vunpack.c.l.b16 %v2966
    %v2999 = vunpack.c.l.b16 %v2967
    %v3000 = vunpack.c.l.b16 %v2968
    %v3001 = vunpack.c.l.b16 %v2969
    %v3002 = vunpack.c.l.b16 %v2970
    %v3003 = vunpack.c.l.b16 %v2971
    %v3004 = vunpack.c.l.b16 %v2972
    %v3005 = vunpack.c.l.b16 %v2973
    %v3006 = vunpack.c.l.b16 %v2974
    %v3007 = vunpack.c.l.b16 %v2975
    %v3008 = vunpack.c.l.b16 %v2976
    %v3009 = vpack.c.b16 %v2994, %v2993
    %v3010 = vpack.c.b16 %v2996, %v2995
    %v3011 = vpack.c.b16 %v2998, %v2997
    %v3012 = vpack.c.b16 %v3000, %v2999
    %v3013 = vpack.c.b16 %v3002, %v3001
    %v3014 = vpack.c.b16 %v3004, %v3003
    %v3015 = vpack.c.b16 %v3006, %v3005
    %v3016 = vpack.c.b16 %v3008, %v3007
    %3025 = vmatpush.bf16.msra.mxu0 %v3016
    %3026 = vmatpush.bf16.msra.mxu0 %v3015
    %3027 = vmatpush.bf16.msra.mxu0 %v3014
    %3028 = vmatpush.bf16.msra.mxu0 %v3013
    %3029 = vmatpush.bf16.msra.mxu0 %v3012
    %3030 = vmatpush.bf16.msra.mxu0 %v3011
    %3031 = vmatpush.bf16.msra.mxu0 %v3010
    %3032 = vmatpush.bf16.msra.mxu0 %v3009
    %3033 = vmatmul.bf16.gmra.mxu0 %v2959
    %v3034 = vpop.f32.mrf.mxu0
    %v3035 = vadd.f32 0.0, %v3034
    %v3036 = vpop.f32.mrf.mxu0
    %v3037 = vadd.f32 0.0, %v3036
    %3038 = vmatmul.bf16.gmra.mxu0 %v2960
    %v3039 = vpop.f32.mrf.mxu0
    %v3040 = vadd.f32 0.0, %v3039
    %v3041 = vpop.f32.mrf.mxu0
    %v3042 = vadd.f32 0.0, %v3041
    %3043 = vdwg.mxu0
    %s3044 = scalar_lea.vmem [#allocation2], 1024
    %v3045 = vld [vmem:[%s3044] sm:$0xf]
    %v3046 = vld [vmem:[%s3044 + $0x4] sm:$0xf]
    %v3047 = vld [vmem:[%s3044 + $0x8] sm:$0xf]
    %v3048 = vld [vmem:[%s3044 + $0xc] sm:$0xf]
    %v3049 = vld [vmem:[%s3044 + $0x10] sm:$0xf]
    %v3050 = vld [vmem:[%s3044 + $0x14] sm:$0xf]
    %v3051 = vld [vmem:[%s3044 + $0x18] sm:$0xf]
    %v3052 = vld [vmem:[%s3044 + $0x1c] sm:$0xf]
    %v3053 = vld [vmem:[%s3044 + $0x20] sm:$0xf]
    %v3054 = vld [vmem:[%s3044 + $0x24] sm:$0xf]
    %v3055 = vld [vmem:[%s3044 + $0x28] sm:$0xf]
    %v3056 = vld [vmem:[%s3044 + $0x2c] sm:$0xf]
    %v3057 = vld [vmem:[%s3044 + $0x30] sm:$0xf]
    %v3058 = vld [vmem:[%s3044 + $0x34] sm:$0xf]
    %v3059 = vld [vmem:[%s3044 + $0x38] sm:$0xf]
    %v3060 = vld [vmem:[%s3044 + $0x3c] sm:$0xf]
    %v3077 = vunpack.c.l.b16 %v3045
    %v3078 = vunpack.c.l.b16 %v3046
    %v3079 = vunpack.c.l.b16 %v3047
    %v3080 = vunpack.c.l.b16 %v3048
    %v3081 = vunpack.c.l.b16 %v3049
    %v3082 = vunpack.c.l.b16 %v3050
    %v3083 = vunpack.c.l.b16 %v3051
    %v3084 = vunpack.c.l.b16 %v3052
    %v3085 = vunpack.c.l.b16 %v3053
    %v3086 = vunpack.c.l.b16 %v3054
    %v3087 = vunpack.c.l.b16 %v3055
    %v3088 = vunpack.c.l.b16 %v3056
    %v3089 = vunpack.c.l.b16 %v3057
    %v3090 = vunpack.c.l.b16 %v3058
    %v3091 = vunpack.c.l.b16 %v3059
    %v3092 = vunpack.c.l.b16 %v3060
    %v3093 = vpack.c.b16 %v3078, %v3077
    %v3094 = vpack.c.b16 %v3080, %v3079
    %v3095 = vpack.c.b16 %v3082, %v3081
    %v3096 = vpack.c.b16 %v3084, %v3083
    %v3097 = vpack.c.b16 %v3086, %v3085
    %v3098 = vpack.c.b16 %v3088, %v3087
    %v3099 = vpack.c.b16 %v3090, %v3089
    %v3100 = vpack.c.b16 %v3092, %v3091
    %3109 = vmatpush.bf16.msra.mxu0 %v3100
    %3110 = vmatpush.bf16.msra.mxu0 %v3099
    %3111 = vmatpush.bf16.msra.mxu0 %v3098
    %3112 = vmatpush.bf16.msra.mxu0 %v3097
    %3113 = vmatpush.bf16.msra.mxu0 %v3096
    %3114 = vmatpush.bf16.msra.mxu0 %v3095
    %3115 = vmatpush.bf16.msra.mxu0 %v3094
    %3116 = vmatpush.bf16.msra.mxu0 %v3093
    %3117 = vmatmul.bf16.gmra.mxu0 %v2959
    %v3118 = vpop.f32.mrf.mxu0
    %v3119 = vadd.f32 0.0, %v3118
    %v3120 = vpop.f32.mrf.mxu0
    %v3121 = vadd.f32 0.0, %v3120
    %3122 = vmatmul.bf16.gmra.mxu0 %v2960
    %v3123 = vpop.f32.mrf.mxu0
    %v3124 = vadd.f32 0.0, %v3123
    %v3125 = vpop.f32.mrf.mxu0
    %v3126 = vadd.f32 0.0, %v3125
    %3127 = vdwg.mxu0
    %s3128 = scalar_lea.vmem [#allocation2], 1088
    %v3129 = vld [vmem:[%s3128] sm:$0xf]
    %v3130 = vld [vmem:[%s3128 + $0x4] sm:$0xf]
    %v3131 = vld [vmem:[%s3128 + $0x8] sm:$0xf]
    %v3132 = vld [vmem:[%s3128 + $0xc] sm:$0xf]
    %v3133 = vld [vmem:[%s3128 + $0x10] sm:$0xf]
    %v3134 = vld [vmem:[%s3128 + $0x14] sm:$0xf]
    %v3135 = vld [vmem:[%s3128 + $0x18] sm:$0xf]
    %v3136 = vld [vmem:[%s3128 + $0x1c] sm:$0xf]
    %v3137 = vld [vmem:[%s3128 + $0x20] sm:$0xf]
    %v3138 = vld [vmem:[%s3128 + $0x24] sm:$0xf]
    %v3139 = vld [vmem:[%s3128 + $0x28] sm:$0xf]
    %v3140 = vld [vmem:[%s3128 + $0x2c] sm:$0xf]
    %v3141 = vld [vmem:[%s3128 + $0x30] sm:$0xf]
    %v3142 = vld [vmem:[%s3128 + $0x34] sm:$0xf]
    %v3143 = vld [vmem:[%s3128 + $0x38] sm:$0xf]
    %v3144 = vld [vmem:[%s3128 + $0x3c] sm:$0xf]
    %v3161 = vunpack.c.l.b16 %v3129
    %v3162 = vunpack.c.l.b16 %v3130
    %v3163 = vunpack.c.l.b16 %v3131
    %v3164 = vunpack.c.l.b16 %v3132
    %v3165 = vunpack.c.l.b16 %v3133
    %v3166 = vunpack.c.l.b16 %v3134
    %v3167 = vunpack.c.l.b16 %v3135
    %v3168 = vunpack.c.l.b16 %v3136
    %v3169 = vunpack.c.l.b16 %v3137
    %v3170 = vunpack.c.l.b16 %v3138
    %v3171 = vunpack.c.l.b16 %v3139
    %v3172 = vunpack.c.l.b16 %v3140
    %v3173 = vunpack.c.l.b16 %v3141
    %v3174 = vunpack.c.l.b16 %v3142
    %v3175 = vunpack.c.l.b16 %v3143
    %v3176 = vunpack.c.l.b16 %v3144
    %v3177 = vpack.c.b16 %v3162, %v3161
    %v3178 = vpack.c.b16 %v3164, %v3163
    %v3179 = vpack.c.b16 %v3166, %v3165
    %v3180 = vpack.c.b16 %v3168, %v3167
    %v3181 = vpack.c.b16 %v3170, %v3169
    %v3182 = vpack.c.b16 %v3172, %v3171
    %v3183 = vpack.c.b16 %v3174, %v3173
    %v3184 = vpack.c.b16 %v3176, %v3175
    %3193 = vmatpush.bf16.msra.mxu0 %v3184
    %3194 = vmatpush.bf16.msra.mxu0 %v3183
    %3195 = vmatpush.bf16.msra.mxu0 %v3182
    %3196 = vmatpush.bf16.msra.mxu0 %v3181
    %3197 = vmatpush.bf16.msra.mxu0 %v3180
    %3198 = vmatpush.bf16.msra.mxu0 %v3179
    %3199 = vmatpush.bf16.msra.mxu0 %v3178
    %3200 = vmatpush.bf16.msra.mxu0 %v3177
    %3201 = vmatmul.bf16.gmra.mxu0 %v2959
    %v3202 = vpop.f32.mrf.mxu0
    %v3203 = vadd.f32 0.0, %v3202
    %v3204 = vpop.f32.mrf.mxu0
    %v3205 = vadd.f32 0.0, %v3204
    %3206 = vmatmul.bf16.gmra.mxu0 %v2960
    %v3207 = vpop.f32.mrf.mxu0
    %v3208 = vadd.f32 0.0, %v3207
    %v3209 = vpop.f32.mrf.mxu0
    %v3210 = vadd.f32 0.0, %v3209
    %3211 = vdwg.mxu0
    %v3216 = vrot.slane %v3035, 7
    %v3217 = vrot.slane %v3037, 7
    %v3218 = vsel %vm903, %v3216, %v3217
    %v3219 = vrot.slane %v3040, 7
    %v3220 = vsel %vm903, %v3217, %v3219
    %v3221 = vrot.slane %v3042, 7
    %v3222 = vsel %vm903, %v3219, %v3221
    %v3227 = vsel %vm903, 0.0, %v3216
    %v3228 = vadd.f32 %v3227, %v3119
    %v3229 = vadd.f32 %v3218, %v3121
    %v3230 = vadd.f32 %v3220, %v3124
    %v3231 = vadd.f32 %v3222, %v3126
    %v3236 = vrot.slane %v3203, 1
    %v3237 = vrot.slane %v3205, 1
    %v3238 = vsel %vm984, %v3236, %v3237
    %v3239 = vrot.slane %v3208, 1
    %v3240 = vsel %vm984, %v3237, %v3239
    %v3241 = vrot.slane %v3210, 1
    %v3242 = vsel %vm984, %v3239, %v3241
    %v3247 = vsel %vm984, %v3241, 0.0
    %v3248 = vadd.f32 %v3228, %v3238
    %v3249 = vadd.f32 %v3229, %v3240
    %v3250 = vadd.f32 %v3230, %v3242
    %v3251 = vadd.f32 %v3231, %v3247
    %v3252 = vld [vmem:[%s3 + $0x5] sm:$0x1]
    %v3253 = vperm.slane %v3252, 0
    %v3254 = vadd.f32 %v3248, %v3253
    %v3255 = vadd.f32 %v3249, %v3253
    %v3256 = vadd.f32 %v3250, %v3253
    %v3257 = vadd.f32 %v3251, %v3253
    %v3258 = vmax.f32 %v3254, 0.0
    %v3259 = vmax.f32 %v3255, 0.0
    %v3260 = vmax.f32 %v3256, 0.0
    %v3261 = vmax.f32 %v3257, 0.0
    %v3262 = vsel %vm310, %v3258, 0.0
    %v3263 = vsel %vm311, %v3259, 0.0
    %v3264 = vsel %vm312, %v3260, 0.0
    %v3265 = vsel %vm313, %v3261, 0.0
    %v3266 = vadd.f32 %v2644, %v3262
    %v3267 = vadd.f32 %v2645, %v3263
    %v3268 = vadd.f32 %v2646, %v3264
    %v3269 = vadd.f32 %v2647, %v3265
    %v3274 = vrot.slane %v3266, 1
    %v3275 = vrot.slane %v3267, 1
    %v3276 = vsel %vm984, %v3274, %v3275
    %v3277 = vrot.slane %v3268, 1
    %v3278 = vsel %vm984, %v3275, %v3277
    %v3279 = vrot.slane %v3269, 1
    %v3280 = vsel %vm984, %v3277, %v3279
    %v3285 = vsel %vm984, %v3279, 0.0
    %v3286 = vmax.f32 %v3266, %v3276
    %v3287 = vmax.f32 %v3267, %v3278
    %v3288 = vmax.f32 %v3268, %v3280
    %v3289 = vmax.f32 %v3269, %v3285
    %3290 = vst [vmem:[#allocation6] sm:$0xff] %v3286
    %3291 = vst [vmem:[#allocation6 + $0x8] sm:$0xff] %v3287
    %3292 = vst [vmem:[#allocation6 + $0x10] sm:$0xff] %v3288
    %3293 = vst [vmem:[#allocation6 + $0x18] sm:$0xff] %v3289
    %s3294 = sshll.u32 %s535, 4
    %3295 = dma.done %s150, %s3294
    %v3296 = vld [vmem:[%s3 + $0x6] sm:$0x1]
    %v3297 = vld [vmem:[#allocation6] ss:$8 sm:$0xf]
    %v3298 = vpack.c.bf16 %v3297, %v3297
    %v3299 = vld [vmem:[%s149] sm:$0xf]
    %v3300 = vld [vmem:[%s149 + $0x4] sm:$0xf]
    %v3301 = vld [vmem:[%s149 + $0x8] sm:$0xf]
    %v3302 = vld [vmem:[%s149 + $0xc] sm:$0xf]
    %v3303 = vld [vmem:[%s149 + $0x10] sm:$0xf]
    %v3304 = vld [vmem:[%s149 + $0x14] sm:$0xf]
    %v3305 = vld [vmem:[%s149 + $0x18] sm:$0xf]
    %v3306 = vld [vmem:[%s149 + $0x1c] sm:$0xf]
    %v3307 = vld [vmem:[%s149 + $0x20] sm:$0xf]
    %v3308 = vld [vmem:[%s149 + $0x24] sm:$0xf]
    %v3309 = vld [vmem:[%s149 + $0x28] sm:$0xf]
    %v3310 = vld [vmem:[%s149 + $0x2c] sm:$0xf]
    %v3311 = vld [vmem:[%s149 + $0x30] sm:$0xf]
    %v3312 = vld [vmem:[%s149 + $0x34] sm:$0xf]
    %v3313 = vld [vmem:[%s149 + $0x38] sm:$0xf]
    %v3314 = vld [vmem:[%s149 + $0x3c] sm:$0xf]
    %v3331 = vunpack.c.l.b16 %v3299
    %v3332 = vunpack.c.l.b16 %v3300
    %v3333 = vunpack.c.l.b16 %v3301
    %v3334 = vunpack.c.l.b16 %v3302
    %v3335 = vunpack.c.l.b16 %v3303
    %v3336 = vunpack.c.l.b16 %v3304
    %v3337 = vunpack.c.l.b16 %v3305
    %v3338 = vunpack.c.l.b16 %v3306
    %v3339 = vunpack.c.l.b16 %v3307
    %v3340 = vunpack.c.l.b16 %v3308
    %v3341 = vunpack.c.l.b16 %v3309
    %v3342 = vunpack.c.l.b16 %v3310
    %v3343 = vunpack.c.l.b16 %v3311
    %v3344 = vunpack.c.l.b16 %v3312
    %v3345 = vunpack.c.l.b16 %v3313
    %v3346 = vunpack.c.l.b16 %v3314
    %v3347 = vpack.c.b16 %v3332, %v3331
    %v3348 = vpack.c.b16 %v3334, %v3333
    %v3349 = vpack.c.b16 %v3336, %v3335
    %v3350 = vpack.c.b16 %v3338, %v3337
    %v3351 = vpack.c.b16 %v3340, %v3339
    %v3352 = vpack.c.b16 %v3342, %v3341
    %v3353 = vpack.c.b16 %v3344, %v3343
    %v3354 = vpack.c.b16 %v3346, %v3345
    %3363 = vmatpush.bf16.msra.mxu0 %v3354
    %3364 = vmatpush.bf16.msra.mxu0 %v3353
    %3365 = vmatpush.bf16.msra.mxu0 %v3352
    %3366 = vmatpush.bf16.msra.mxu0 %v3351
    %3367 = vmatpush.bf16.msra.mxu0 %v3350
    %3368 = vmatpush.bf16.msra.mxu0 %v3349
    %3369 = vmatpush.bf16.msra.mxu0 %v3348
    %3370 = vmatpush.bf16.msra.mxu0 %v3347
    %3371 = vmatmul.bf16.gmra.mxu0 %v3298
    %v3372 = vpop.f32.mrf.mxu0
    %v3373 = vadd.f32 0.0, %v3372
    %v3374 = vpop.f32.mrf.mxu0
    %3375 = vdwg.mxu0
    %v3376 = vperm.slane %v3296, 0
    %v3377 = vadd.f32 %v3376, %v3373
    %s3378 = scalar_lea.vmem [#allocation6], 2
    %v3379 = vld [vmem:[%s3378] ss:$8 sm:$0xf]
    %v3380 = vpack.c.bf16 %v3379, %v3379
    %s3381 = scalar_lea.vmem [#allocation2], 1216
    %v3382 = vld [vmem:[%s3381] sm:$0xf]
    %v3383 = vld [vmem:[%s3381 + $0x4] sm:$0xf]
    %v3384 = vld [vmem:[%s3381 + $0x8] sm:$0xf]
    %v3385 = vld [vmem:[%s3381 + $0xc] sm:$0xf]
    %v3386 = vld [vmem:[%s3381 + $0x10] sm:$0xf]
    %v3387 = vld [vmem:[%s3381 + $0x14] sm:$0xf]
    %v3388 = vld [vmem:[%s3381 + $0x18] sm:$0xf]
    %v3389 = vld [vmem:[%s3381 + $0x1c] sm:$0xf]
    %v3390 = vld [vmem:[%s3381 + $0x20] sm:$0xf]
    %v3391 = vld [vmem:[%s3381 + $0x24] sm:$0xf]
    %v3392 = vld [vmem:[%s3381 + $0x28] sm:$0xf]
    %v3393 = vld [vmem:[%s3381 + $0x2c] sm:$0xf]
    %v3394 = vld [vmem:[%s3381 + $0x30] sm:$0xf]
    %v3395 = vld [vmem:[%s3381 + $0x34] sm:$0xf]
    %v3396 = vld [vmem:[%s3381 + $0x38] sm:$0xf]
    %v3397 = vld [vmem:[%s3381 + $0x3c] sm:$0xf]
    %v3414 = vunpack.c.l.b16 %v3382
    %v3415 = vunpack.c.l.b16 %v3383
    %v3416 = vunpack.c.l.b16 %v3384
    %v3417 = vunpack.c.l.b16 %v3385
    %v3418 = vunpack.c.l.b16 %v3386
    %v3419 = vunpack.c.l.b16 %v3387
    %v3420 = vunpack.c.l.b16 %v3388
    %v3421 = vunpack.c.l.b16 %v3389
    %v3422 = vunpack.c.l.b16 %v3390
    %v3423 = vunpack.c.l.b16 %v3391
    %v3424 = vunpack.c.l.b16 %v3392
    %v3425 = vunpack.c.l.b16 %v3393
    %v3426 = vunpack.c.l.b16 %v3394
    %v3427 = vunpack.c.l.b16 %v3395
    %v3428 = vunpack.c.l.b16 %v3396
    %v3429 = vunpack.c.l.b16 %v3397
    %v3430 = vpack.c.b16 %v3415, %v3414
    %v3431 = vpack.c.b16 %v3417, %v3416
    %v3432 = vpack.c.b16 %v3419, %v3418
    %v3433 = vpack.c.b16 %v3421, %v3420
    %v3434 = vpack.c.b16 %v3423, %v3422
    %v3435 = vpack.c.b16 %v3425, %v3424
    %v3436 = vpack.c.b16 %v3427, %v3426
    %v3437 = vpack.c.b16 %v3429, %v3428
    %3446 = vmatpush.bf16.msra.mxu0 %v3437
    %3447 = vmatpush.bf16.msra.mxu0 %v3436
    %3448 = vmatpush.bf16.msra.mxu0 %v3435
    %3449 = vmatpush.bf16.msra.mxu0 %v3434
    %3450 = vmatpush.bf16.msra.mxu0 %v3433
    %3451 = vmatpush.bf16.msra.mxu0 %v3432
    %3452 = vmatpush.bf16.msra.mxu0 %v3431
    %3453 = vmatpush.bf16.msra.mxu0 %v3430
    %3454 = vmatmul.bf16.gmra.mxu0 %v3380
    %v3455 = vpop.f32.mrf.mxu0
    %v3456 = vadd.f32 0.0, %v3455
    %v3457 = vpop.f32.mrf.mxu0
    %3458 = vdwg.mxu0
    %v3459 = vadd.f32 %v3377, %v3456
    %s3460 = scalar_lea.vmem [#allocation6], 4
    %v3461 = vld [vmem:[%s3460] ss:$8 sm:$0xf]
    %v3462 = vpack.c.bf16 %v3461, %v3461
    %s3463 = scalar_lea.vmem [#allocation2], 1280
    %v3464 = vld [vmem:[%s3463] sm:$0xf]
    %v3465 = vld [vmem:[%s3463 + $0x4] sm:$0xf]
    %v3466 = vld [vmem:[%s3463 + $0x8] sm:$0xf]
    %v3467 = vld [vmem:[%s3463 + $0xc] sm:$0xf]
    %v3468 = vld [vmem:[%s3463 + $0x10] sm:$0xf]
    %v3469 = vld [vmem:[%s3463 + $0x14] sm:$0xf]
    %v3470 = vld [vmem:[%s3463 + $0x18] sm:$0xf]
    %v3471 = vld [vmem:[%s3463 + $0x1c] sm:$0xf]
    %v3472 = vld [vmem:[%s3463 + $0x20] sm:$0xf]
    %v3473 = vld [vmem:[%s3463 + $0x24] sm:$0xf]
    %v3474 = vld [vmem:[%s3463 + $0x28] sm:$0xf]
    %v3475 = vld [vmem:[%s3463 + $0x2c] sm:$0xf]
    %v3476 = vld [vmem:[%s3463 + $0x30] sm:$0xf]
    %v3477 = vld [vmem:[%s3463 + $0x34] sm:$0xf]
    %v3478 = vld [vmem:[%s3463 + $0x38] sm:$0xf]
    %v3479 = vld [vmem:[%s3463 + $0x3c] sm:$0xf]
    %v3496 = vunpack.c.l.b16 %v3464
    %v3497 = vunpack.c.l.b16 %v3465
    %v3498 = vunpack.c.l.b16 %v3466
    %v3499 = vunpack.c.l.b16 %v3467
    %v3500 = vunpack.c.l.b16 %v3468
    %v3501 = vunpack.c.l.b16 %v3469
    %v3502 = vunpack.c.l.b16 %v3470
    %v3503 = vunpack.c.l.b16 %v3471
    %v3504 = vunpack.c.l.b16 %v3472
    %v3505 = vunpack.c.l.b16 %v3473
    %v3506 = vunpack.c.l.b16 %v3474
    %v3507 = vunpack.c.l.b16 %v3475
    %v3508 = vunpack.c.l.b16 %v3476
    %v3509 = vunpack.c.l.b16 %v3477
    %v3510 = vunpack.c.l.b16 %v3478
    %v3511 = vunpack.c.l.b16 %v3479
    %v3512 = vpack.c.b16 %v3497, %v3496
    %v3513 = vpack.c.b16 %v3499, %v3498
    %v3514 = vpack.c.b16 %v3501, %v3500
    %v3515 = vpack.c.b16 %v3503, %v3502
    %v3516 = vpack.c.b16 %v3505, %v3504
    %v3517 = vpack.c.b16 %v3507, %v3506
    %v3518 = vpack.c.b16 %v3509, %v3508
    %v3519 = vpack.c.b16 %v3511, %v3510
    %3528 = vmatpush.bf16.msra.mxu0 %v3519
    %3529 = vmatpush.bf16.msra.mxu0 %v3518
    %3530 = vmatpush.bf16.msra.mxu0 %v3517
    %3531 = vmatpush.bf16.msra.mxu0 %v3516
    %3532 = vmatpush.bf16.msra.mxu0 %v3515
    %3533 = vmatpush.bf16.msra.mxu0 %v3514
    %3534 = vmatpush.bf16.msra.mxu0 %v3513
    %3535 = vmatpush.bf16.msra.mxu0 %v3512
    %3536 = vmatmul.bf16.gmra.mxu0 %v3462
    %v3537 = vpop.f32.mrf.mxu0
    %v3538 = vadd.f32 0.0, %v3537
    %v3539 = vpop.f32.mrf.mxu0
    %3540 = vdwg.mxu0
    %v3541 = vadd.f32 %v3459, %v3538
    %v3542 = vmax.f32 %v3541, 0.0
    %s3543 = smul.u32 4, 8
    %s3544 = smul.u32 %s3543, 4
    %s3545 = sshll.u32 %s3544, 4
    %3546 = dma.done %s164, %s3545
    %v3547 = vld [vmem:[%s1] sm:$0xf]
    %v3548 = vpack.c.bf16 %v3547, %v3547
    %v3549 = vld [vmem:[#allocation3] sm:$0xff]
    %v3550 = vld [vmem:[#allocation3 + $0x8] sm:$0xff]
    %v3551 = vld [vmem:[#allocation3 + $0x10] sm:$0xff]
    %v3552 = vld [vmem:[#allocation3 + $0x18] sm:$0xff]
    %v3553 = vld [vmem:[#allocation3 + $0x20] sm:$0xff]
    %v3554 = vld [vmem:[#allocation3 + $0x28] sm:$0xff]
    %v3555 = vld [vmem:[#allocation3 + $0x30] sm:$0xff]
    %v3556 = vld [vmem:[#allocation3 + $0x38] sm:$0xff]
    %v3557 = vld [vmem:[#allocation3 + $0x40] sm:$0xff]
    %v3558 = vld [vmem:[#allocation3 + $0x48] sm:$0xff]
    %v3559 = vld [vmem:[#allocation3 + $0x50] sm:$0xff]
    %v3560 = vld [vmem:[#allocation3 + $0x58] sm:$0xff]
    %v3561 = vld [vmem:[#allocation3 + $0x60] sm:$0xff]
    %v3562 = vld [vmem:[#allocation3 + $0x68] sm:$0xff]
    %v3563 = vld [vmem:[#allocation3 + $0x70] sm:$0xff]
    %v3564 = vld [vmem:[#allocation3 + $0x78] sm:$0xff]
    %v3565 = vld [vmem:[#allocation10] ss:$8 sm:$0xf]
    %v3567 = vperm.slane %v3565, 0
    %v3568 = vperm.slane %v3565, 1
    %v3569 = vperm.slane %v3565, 2
    %v3570 = vperm.slane %v3565, 3
    %v3591 = vunpack.c.l.b16 %v3549
    %v3592 = vunpack.c.h.b16 %v3549
    %v3593 = vunpack.c.l.b16 %v3550
    %v3594 = vunpack.c.h.b16 %v3550
    %v3595 = vunpack.c.l.b16 %v3551
    %v3596 = vunpack.c.h.b16 %v3551
    %v3597 = vunpack.c.l.b16 %v3552
    %v3598 = vunpack.c.h.b16 %v3552
    %v3599 = vunpack.c.l.b16 %v3553
    %v3600 = vunpack.c.h.b16 %v3553
    %v3601 = vunpack.c.l.b16 %v3554
    %v3602 = vunpack.c.h.b16 %v3554
    %v3603 = vunpack.c.l.b16 %v3555
    %v3604 = vunpack.c.h.b16 %v3555
    %v3605 = vunpack.c.l.b16 %v3556
    %v3606 = vunpack.c.h.b16 %v3556
    %v3607 = vunpack.c.l.b16 %v3557
    %v3608 = vunpack.c.h.b16 %v3557
    %v3609 = vunpack.c.l.b16 %v3558
    %v3610 = vunpack.c.h.b16 %v3558
    %v3611 = vunpack.c.l.b16 %v3559
    %v3612 = vunpack.c.h.b16 %v3559
    %v3613 = vunpack.c.l.b16 %v3560
    %v3614 = vunpack.c.h.b16 %v3560
    %v3615 = vunpack.c.l.b16 %v3561
    %v3616 = vunpack.c.h.b16 %v3561
    %v3617 = vunpack.c.l.b16 %v3562
    %v3618 = vunpack.c.h.b16 %v3562
    %v3619 = vunpack.c.l.b16 %v3563
    %v3620 = vunpack.c.h.b16 %v3563
    %v3621 = vunpack.c.l.b16 %v3564
    %v3622 = vunpack.c.h.b16 %v3564
    %v3623 = vpack.c.b16 %v3595, %v3591
    %v3624 = vpack.c.b16 %v3596, %v3592
    %v3625 = vpack.c.b16 %v3597, %v3593
    %v3626 = vpack.c.b16 %v3598, %v3594
    %v3627 = vpack.c.b16 %v3603, %v3599
    %v3628 = vpack.c.b16 %v3604, %v3600
    %v3629 = vpack.c.b16 %v3605, %v3601
    %v3630 = vpack.c.b16 %v3606, %v3602
    %v3631 = vpack.c.b16 %v3611, %v3607
    %v3632 = vpack.c.b16 %v3612, %v3608
    %v3633 = vpack.c.b16 %v3613, %v3609
    %v3634 = vpack.c.b16 %v3614, %v3610
    %v3635 = vpack.c.b16 %v3619, %v3615
    %v3636 = vpack.c.b16 %v3620, %v3616
    %v3637 = vpack.c.b16 %v3621, %v3617
    %v3638 = vpack.c.b16 %v3622, %v3618
    %vm3655 = vcmask 523264
    %v3657 = vsel %vm3655, %v3548, 0
    %3659 = vmatpush.bf16.msra.mxu0 0
    %3660 = vmatpush.bf16.msra.mxu0 0
    %3661 = vmatpush.bf16.msra.mxu0 0
    %3662 = vmatpush.bf16.msra.mxu0 0
    %3663 = vmatpush.bf16.msra.mxu0 %v3635
    %3664 = vmatpush.bf16.msra.mxu0 %v3631
    %3665 = vmatpush.bf16.msra.mxu0 %v3627
    %3666 = vmatpush.bf16.msra.mxu0 %v3623
    %3667 = vmatmul.bf16.gmra.mxu0 %v3657
    %v3668 = vpop.f32.mrf.mxu0
    %v3669 = vadd.f32 %v3567, %v3668
    %v3670 = vpop.f32.mrf.mxu0
    %3671 = vdwg.mxu0
    %3672 = vmatpush.bf16.msra.mxu0 0
    %3673 = vmatpush.bf16.msra.mxu0 0
    %3674 = vmatpush.bf16.msra.mxu0 0
    %3675 = vmatpush.bf16.msra.mxu0 0
    %3676 = vmatpush.bf16.msra.mxu0 %v3636
    %3677 = vmatpush.bf16.msra.mxu0 %v3632
    %3678 = vmatpush.bf16.msra.mxu0 %v3628
    %3679 = vmatpush.bf16.msra.mxu0 %v3624
    %3680 = vmatmul.bf16.gmra.mxu0 %v3657
    %v3681 = vpop.f32.mrf.mxu0
    %v3682 = vadd.f32 %v3568, %v3681
    %v3683 = vpop.f32.mrf.mxu0
    %3684 = vdwg.mxu0
    %3685 = vmatpush.bf16.msra.mxu0 0
    %3686 = vmatpush.bf16.msra.mxu0 0
    %3687 = vmatpush.bf16.msra.mxu0 0
    %3688 = vmatpush.bf16.msra.mxu0 0
    %3689 = vmatpush.bf16.msra.mxu0 %v3637
    %3690 = vmatpush.bf16.msra.mxu0 %v3633
    %3691 = vmatpush.bf16.msra.mxu0 %v3629
    %3692 = vmatpush.bf16.msra.mxu0 %v3625
    %3693 = vmatmul.bf16.gmra.mxu0 %v3657
    %v3694 = vpop.f32.mrf.mxu0
    %v3695 = vadd.f32 %v3569, %v3694
    %v3696 = vpop.f32.mrf.mxu0
    %3697 = vdwg.mxu0
    %3698 = vmatpush.bf16.msra.mxu0 0
    %3699 = vmatpush.bf16.msra.mxu0 0
    %3700 = vmatpush.bf16.msra.mxu0 0
    %3701 = vmatpush.bf16.msra.mxu0 0
    %3702 = vmatpush.bf16.msra.mxu0 %v3638
    %3703 = vmatpush.bf16.msra.mxu0 %v3634
    %3704 = vmatpush.bf16.msra.mxu0 %v3630
    %3705 = vmatpush.bf16.msra.mxu0 %v3626
    %3706 = vmatmul.bf16.gmra.mxu0 %v3657
    %v3707 = vpop.f32.mrf.mxu0
    %v3708 = vadd.f32 %v3570, %v3707
    %v3709 = vpop.f32.mrf.mxu0
    %3710 = vdwg.mxu0
    %v3711 = vmax.f32 %v3669, 0.0
    %v3712 = vmax.f32 %v3682, 0.0
    %v3713 = vmax.f32 %v3695, 0.0
    %v3714 = vmax.f32 %v3708, 0.0
    %s3715 = smul.u32 4, 64
    %s3716 = smul.u32 %s3715, 2
    %s3717 = sshll.u32 %s3716, 4
    %3718 = dma.done %s213, %s3717
    %v3719 = vpack.c.bf16 %v3711, %v3711
    %v3720 = vpack.c.bf16 %v3712, %v3712
    %v3721 = vpack.c.bf16 %v3713, %v3713
    %v3722 = vpack.c.bf16 %v3714, %v3714
    %v3723 = vld [vmem:[#allocation4] sm:$0xff]
    %v3724 = vld [vmem:[#allocation4 + $0x8] sm:$0xff]
    %v3725 = vld [vmem:[#allocation4 + $0x10] sm:$0xff]
    %v3726 = vld [vmem:[#allocation4 + $0x18] sm:$0xff]
    %v3727 = vld [vmem:[#allocation4 + $0x20] sm:$0xff]
    %v3728 = vld [vmem:[#allocation4 + $0x28] sm:$0xff]
    %v3729 = vld [vmem:[#allocation4 + $0x30] sm:$0xff]
    %v3730 = vld [vmem:[#allocation4 + $0x38] sm:$0xff]
    %v3731 = vld [vmem:[#allocation4 + $0x40] sm:$0xff]
    %v3732 = vld [vmem:[#allocation4 + $0x48] sm:$0xff]
    %v3733 = vld [vmem:[#allocation4 + $0x50] sm:$0xff]
    %v3734 = vld [vmem:[#allocation4 + $0x58] sm:$0xff]
    %v3735 = vld [vmem:[#allocation4 + $0x60] sm:$0xff]
    %v3736 = vld [vmem:[#allocation4 + $0x68] sm:$0xff]
    %v3737 = vld [vmem:[#allocation4 + $0x70] sm:$0xff]
    %v3738 = vld [vmem:[#allocation4 + $0x78] sm:$0xff]
    %v3739 = vld [vmem:[#allocation4 + $0x80] sm:$0xff]
    %v3740 = vld [vmem:[#allocation4 + $0x88] sm:$0xff]
    %v3741 = vld [vmem:[#allocation4 + $0x90] sm:$0xff]
    %v3742 = vld [vmem:[#allocation4 + $0x98] sm:$0xff]
    %v3743 = vld [vmem:[#allocation4 + $0xa0] sm:$0xff]
    %v3744 = vld [vmem:[#allocation4 + $0xa8] sm:$0xff]
    %v3745 = vld [vmem:[#allocation4 + $0xb0] sm:$0xff]
    %v3746 = vld [vmem:[#allocation4 + $0xb8] sm:$0xff]
    %v3747 = vld [vmem:[#allocation4 + $0xc0] sm:$0xff]
    %v3748 = vld [vmem:[#allocation4 + $0xc8] sm:$0xff]
    %v3749 = vld [vmem:[#allocation4 + $0xd0] sm:$0xff]
    %v3750 = vld [vmem:[#allocation4 + $0xd8] sm:$0xff]
    %v3751 = vld [vmem:[#allocation4 + $0xe0] sm:$0xff]
    %v3752 = vld [vmem:[#allocation4 + $0xe8] sm:$0xff]
    %v3753 = vld [vmem:[#allocation4 + $0xf0] sm:$0xff]
    %v3754 = vld [vmem:[#allocation4 + $0xf8] sm:$0xff]
    %v3755 = vld [vmem:[#allocation4 + $0x100] sm:$0xff]
    %v3756 = vld [vmem:[#allocation4 + $0x108] sm:$0xff]
    %v3757 = vld [vmem:[#allocation4 + $0x110] sm:$0xff]
    %v3758 = vld [vmem:[#allocation4 + $0x118] sm:$0xff]
    %v3759 = vld [vmem:[#allocation4 + $0x120] sm:$0xff]
    %v3760 = vld [vmem:[#allocation4 + $0x128] sm:$0xff]
    %v3761 = vld [vmem:[#allocation4 + $0x130] sm:$0xff]
    %v3762 = vld [vmem:[#allocation4 + $0x138] sm:$0xff]
    %v3763 = vld [vmem:[#allocation4 + $0x140] sm:$0xff]
    %v3764 = vld [vmem:[#allocation4 + $0x148] sm:$0xff]
    %v3765 = vld [vmem:[#allocation4 + $0x150] sm:$0xff]
    %v3766 = vld [vmem:[#allocation4 + $0x158] sm:$0xff]
    %v3767 = vld [vmem:[#allocation4 + $0x160] sm:$0xff]
    %v3768 = vld [vmem:[#allocation4 + $0x168] sm:$0xff]
    %v3769 = vld [vmem:[#allocation4 + $0x170] sm:$0xff]
    %v3770 = vld [vmem:[#allocation4 + $0x178] sm:$0xff]
    %v3771 = vld [vmem:[#allocation4 + $0x180] sm:$0xff]
    %v3772 = vld [vmem:[#allocation4 + $0x188] sm:$0xff]
    %v3773 = vld [vmem:[#allocation4 + $0x190] sm:$0xff]
    %v3774 = vld [vmem:[#allocation4 + $0x198] sm:$0xff]
    %v3775 = vld [vmem:[#allocation4 + $0x1a0] sm:$0xff]
    %v3776 = vld [vmem:[#allocation4 + $0x1a8] sm:$0xff]
    %v3777 = vld [vmem:[#allocation4 + $0x1b0] sm:$0xff]
    %v3778 = vld [vmem:[#allocation4 + $0x1b8] sm:$0xff]
    %v3779 = vld [vmem:[#allocation4 + $0x1c0] sm:$0xff]
    %v3780 = vld [vmem:[#allocation4 + $0x1c8] sm:$0xff]
    %v3781 = vld [vmem:[#allocation4 + $0x1d0] sm:$0xff]
    %v3782 = vld [vmem:[#allocation4 + $0x1d8] sm:$0xff]
    %v3783 = vld [vmem:[#allocation4 + $0x1e0] sm:$0xff]
    %v3784 = vld [vmem:[#allocation4 + $0x1e8] sm:$0xff]
    %v3785 = vld [vmem:[#allocation4 + $0x1f0] sm:$0xff]
    %v3786 = vld [vmem:[#allocation4 + $0x1f8] sm:$0xff]
    %s3787 = scalar_lea.vmem [#allocation10], 1
    %v3788 = vld [vmem:[%s3787] ss:$8 sm:$0x3]
    %v3790 = vperm.slane %v3788, 0
    %v3791 = vperm.slane %v3788, 1
    %v3858 = vunpack.c.l.b16 %v3723
    %v3859 = vunpack.c.h.b16 %v3723
    %v3860 = vunpack.c.l.b16 %v3724
    %v3861 = vunpack.c.h.b16 %v3724
    %v3862 = vunpack.c.l.b16 %v3725
    %v3863 = vunpack.c.h.b16 %v3725
    %v3864 = vunpack.c.l.b16 %v3726
    %v3865 = vunpack.c.h.b16 %v3726
    %v3866 = vunpack.c.l.b16 %v3727
    %v3867 = vunpack.c.h.b16 %v3727
    %v3868 = vunpack.c.l.b16 %v3728
    %v3869 = vunpack.c.h.b16 %v3728
    %v3870 = vunpack.c.l.b16 %v3729
    %v3871 = vunpack.c.h.b16 %v3729
    %v3872 = vunpack.c.l.b16 %v3730
    %v3873 = vunpack.c.h.b16 %v3730
    %v3874 = vunpack.c.l.b16 %v3731
    %v3875 = vunpack.c.h.b16 %v3731
    %v3876 = vunpack.c.l.b16 %v3732
    %v3877 = vunpack.c.h.b16 %v3732
    %v3878 = vunpack.c.l.b16 %v3733
    %v3879 = vunpack.c.h.b16 %v3733
    %v3880 = vunpack.c.l.b16 %v3734
    %v3881 = vunpack.c.h.b16 %v3734
    %v3882 = vunpack.c.l.b16 %v3735
    %v3883 = vunpack.c.h.b16 %v3735
    %v3884 = vunpack.c.l.b16 %v3736
    %v3885 = vunpack.c.h.b16 %v3736
    %v3886 = vunpack.c.l.b16 %v3737
    %v3887 = vunpack.c.h.b16 %v3737
    %v3888 = vunpack.c.l.b16 %v3738
    %v3889 = vunpack.c.h.b16 %v3738
    %v3890 = vunpack.c.l.b16 %v3739
    %v3891 = vunpack.c.h.b16 %v3739
    %v3892 = vunpack.c.l.b16 %v3740
    %v3893 = vunpack.c.h.b16 %v3740
    %v3894 = vunpack.c.l.b16 %v3741
    %v3895 = vunpack.c.h.b16 %v3741
    %v3896 = vunpack.c.l.b16 %v3742
    %v3897 = vunpack.c.h.b16 %v3742
    %v3898 = vunpack.c.l.b16 %v3743
    %v3899 = vunpack.c.h.b16 %v3743
    %v3900 = vunpack.c.l.b16 %v3744
    %v3901 = vunpack.c.h.b16 %v3744
    %v3902 = vunpack.c.l.b16 %v3745
    %v3903 = vunpack.c.h.b16 %v3745
    %v3904 = vunpack.c.l.b16 %v3746
    %v3905 = vunpack.c.h.b16 %v3746
    %v3906 = vunpack.c.l.b16 %v3747
    %v3907 = vunpack.c.h.b16 %v3747
    %v3908 = vunpack.c.l.b16 %v3748
    %v3909 = vunpack.c.h.b16 %v3748
    %v3910 = vunpack.c.l.b16 %v3749
    %v3911 = vunpack.c.h.b16 %v3749
    %v3912 = vunpack.c.l.b16 %v3750
    %v3913 = vunpack.c.h.b16 %v3750
    %v3914 = vunpack.c.l.b16 %v3751
    %v3915 = vunpack.c.h.b16 %v3751
    %v3916 = vunpack.c.l.b16 %v3752
    %v3917 = vunpack.c.h.b16 %v3752
    %v3918 = vunpack.c.l.b16 %v3753
    %v3919 = vunpack.c.h.b16 %v3753
    %v3920 = vunpack.c.l.b16 %v3754
    %v3921 = vunpack.c.h.b16 %v3754
    %v3922 = vunpack.c.l.b16 %v3755
    %v3923 = vunpack.c.h.b16 %v3755
    %v3924 = vunpack.c.l.b16 %v3756
    %v3925 = vunpack.c.h.b16 %v3756
    %v3926 = vunpack.c.l.b16 %v3757
    %v3927 = vunpack.c.h.b16 %v3757
    %v3928 = vunpack.c.l.b16 %v3758
    %v3929 = vunpack.c.h.b16 %v3758
    %v3930 = vunpack.c.l.b16 %v3759
    %v3931 = vunpack.c.h.b16 %v3759
    %v3932 = vunpack.c.l.b16 %v3760
    %v3933 = vunpack.c.h.b16 %v3760
    %v3934 = vunpack.c.l.b16 %v3761
    %v3935 = vunpack.c.h.b16 %v3761
    %v3936 = vunpack.c.l.b16 %v3762
    %v3937 = vunpack.c.h.b16 %v3762
    %v3938 = vunpack.c.l.b16 %v3763
    %v3939 = vunpack.c.h.b16 %v3763
    %v3940 = vunpack.c.l.b16 %v3764
    %v3941 = vunpack.c.h.b16 %v3764
    %v3942 = vunpack.c.l.b16 %v3765
    %v3943 = vunpack.c.h.b16 %v3765
    %v3944 = vunpack.c.l.b16 %v3766
    %v3945 = vunpack.c.h.b16 %v3766
    %v3946 = vunpack.c.l.b16 %v3767
    %v3947 = vunpack.c.h.b16 %v3767
    %v3948 = vunpack.c.l.b16 %v3768
    %v3949 = vunpack.c.h.b16 %v3768
    %v3950 = vunpack.c.l.b16 %v3769
    %v3951 = vunpack.c.h.b16 %v3769
    %v3952 = vunpack.c.l.b16 %v3770
    %v3953 = vunpack.c.h.b16 %v3770
    %v3954 = vunpack.c.l.b16 %v3771
    %v3955 = vunpack.c.h.b16 %v3771
    %v3956 = vunpack.c.l.b16 %v3772
    %v3957 = vunpack.c.h.b16 %v3772
    %v3958 = vunpack.c.l.b16 %v3773
    %v3959 = vunpack.c.h.b16 %v3773
    %v3960 = vunpack.c.l.b16 %v3774
    %v3961 = vunpack.c.h.b16 %v3774
    %v3962 = vunpack.c.l.b16 %v3775
    %v3963 = vunpack.c.h.b16 %v3775
    %v3964 = vunpack.c.l.b16 %v3776
    %v3965 = vunpack.c.h.b16 %v3776
    %v3966 = vunpack.c.l.b16 %v3777
    %v3967 = vunpack.c.h.b16 %v3777
    %v3968 = vunpack.c.l.b16 %v3778
    %v3969 = vunpack.c.h.b16 %v3778
    %v3970 = vunpack.c.l.b16 %v3779
    %v3971 = vunpack.c.h.b16 %v3779
    %v3972 = vunpack.c.l.b16 %v3780
    %v3973 = vunpack.c.h.b16 %v3780
    %v3974 = vunpack.c.l.b16 %v3781
    %v3975 = vunpack.c.h.b16 %v3781
    %v3976 = vunpack.c.l.b16 %v3782
    %v3977 = vunpack.c.h.b16 %v3782
    %v3978 = vunpack.c.l.b16 %v3783
    %v3979 = vunpack.c.h.b16 %v3783
    %v3980 = vunpack.c.l.b16 %v3784
    %v3981 = vunpack.c.h.b16 %v3784
    %v3982 = vunpack.c.l.b16 %v3785
    %v3983 = vunpack.c.h.b16 %v3785
    %v3984 = vunpack.c.l.b16 %v3786
    %v3985 = vunpack.c.h.b16 %v3786
    %v3986 = vpack.c.b16 %v3860, %v3858
    %v3987 = vpack.c.b16 %v3861, %v3859
    %v3988 = vpack.c.b16 %v3864, %v3862
    %v3989 = vpack.c.b16 %v3865, %v3863
    %v3990 = vpack.c.b16 %v3868, %v3866
    %v3991 = vpack.c.b16 %v3869, %v3867
    %v3992 = vpack.c.b16 %v3872, %v3870
    %v3993 = vpack.c.b16 %v3873, %v3871
    %v3994 = vpack.c.b16 %v3876, %v3874
    %v3995 = vpack.c.b16 %v3877, %v3875
    %v3996 = vpack.c.b16 %v3880, %v3878
    %v3997 = vpack.c.b16 %v3881, %v3879
    %v3998 = vpack.c.b16 %v3884, %v3882
    %v3999 = vpack.c.b16 %v3885, %v3883
    %v4000 = vpack.c.b16 %v3888, %v3886
    %v4001 = vpack.c.b16 %v3889, %v3887
    %v4002 = vpack.c.b16 %v3892, %v3890
    %v4003 = vpack.c.b16 %v3893, %v3891
    %v4004 = vpack.c.b16 %v3896, %v3894
    %v4005 = vpack.c.b16 %v3897, %v3895
    %v4006 = vpack.c.b16 %v3900, %v3898
    %v4007 = vpack.c.b16 %v3901, %v3899
    %v4008 = vpack.c.b16 %v3904, %v3902
    %v4009 = vpack.c.b16 %v3905, %v3903
    %v4010 = vpack.c.b16 %v3908, %v3906
    %v4011 = vpack.c.b16 %v3909, %v3907
    %v4012 = vpack.c.b16 %v3912, %v3910
    %v4013 = vpack.c.b16 %v3913, %v3911
    %v4014 = vpack.c.b16 %v3916, %v3914
    %v4015 = vpack.c.b16 %v3917, %v3915
    %v4016 = vpack.c.b16 %v3920, %v3918
    %v4017 = vpack.c.b16 %v3921, %v3919
    %v4018 = vpack.c.b16 %v3924, %v3922
    %v4019 = vpack.c.b16 %v3925, %v3923
    %v4020 = vpack.c.b16 %v3928, %v3926
    %v4021 = vpack.c.b16 %v3929, %v3927
    %v4022 = vpack.c.b16 %v3932, %v3930
    %v4023 = vpack.c.b16 %v3933, %v3931
    %v4024 = vpack.c.b16 %v3936, %v3934
    %v4025 = vpack.c.b16 %v3937, %v3935
    %v4026 = vpack.c.b16 %v3940, %v3938
    %v4027 = vpack.c.b16 %v3941, %v3939
    %v4028 = vpack.c.b16 %v3944, %v3942
    %v4029 = vpack.c.b16 %v3945, %v3943
    %v4030 = vpack.c.b16 %v3948, %v3946
    %v4031 = vpack.c.b16 %v3949, %v3947
    %v4032 = vpack.c.b16 %v3952, %v3950
    %v4033 = vpack.c.b16 %v3953, %v3951
    %v4034 = vpack.c.b16 %v3956, %v3954
    %v4035 = vpack.c.b16 %v3957, %v3955
    %v4036 = vpack.c.b16 %v3960, %v3958
    %v4037 = vpack.c.b16 %v3961, %v3959
    %v4038 = vpack.c.b16 %v3964, %v3962
    %v4039 = vpack.c.b16 %v3965, %v3963
    %v4040 = vpack.c.b16 %v3968, %v3966
    %v4041 = vpack.c.b16 %v3969, %v3967
    %v4042 = vpack.c.b16 %v3972, %v3970
    %v4043 = vpack.c.b16 %v3973, %v3971
    %v4044 = vpack.c.b16 %v3976, %v3974
    %v4045 = vpack.c.b16 %v3977, %v3975
    %v4046 = vpack.c.b16 %v3980, %v3978
    %v4047 = vpack.c.b16 %v3981, %v3979
    %v4048 = vpack.c.b16 %v3984, %v3982
    %v4049 = vpack.c.b16 %v3985, %v3983
    %4114 = vmatpush.bf16.msra.mxu0 %v4000
    %4115 = vmatpush.bf16.msra.mxu0 %v3998
    %4116 = vmatpush.bf16.msra.mxu0 %v3996
    %4117 = vmatpush.bf16.msra.mxu0 %v3994
    %4118 = vmatpush.bf16.msra.mxu0 %v3992
    %4119 = vmatpush.bf16.msra.mxu0 %v3990
    %4120 = vmatpush.bf16.msra.mxu0 %v3988
    %4121 = vmatpush.bf16.msra.mxu0 %v3986
    %4122 = vmatmul.bf16.gmra.mxu0 %v3719
    %v4123 = vpop.f32.mrf.mxu0
    %v4124 = vadd.f32 %v3790, %v4123
    %v4125 = vpop.f32.mrf.mxu0
    %4126 = vdwg.mxu0
    %4127 = vmatpush.bf16.msra.mxu0 %v4016
    %4128 = vmatpush.bf16.msra.mxu0 %v4014
    %4129 = vmatpush.bf16.msra.mxu0 %v4012
    %4130 = vmatpush.bf16.msra.mxu0 %v4010
    %4131 = vmatpush.bf16.msra.mxu0 %v4008
    %4132 = vmatpush.bf16.msra.mxu0 %v4006
    %4133 = vmatpush.bf16.msra.mxu0 %v4004
    %4134 = vmatpush.bf16.msra.mxu0 %v4002
    %4135 = vmatmul.bf16.gmra.mxu0 %v3720
    %v4136 = vpop.f32.mrf.mxu0
    %v4137 = vadd.f32 %v4124, %v4136
    %v4138 = vpop.f32.mrf.mxu0
    %4139 = vdwg.mxu0
    %4140 = vmatpush.bf16.msra.mxu0 %v4032
    %4141 = vmatpush.bf16.msra.mxu0 %v4030
    %4142 = vmatpush.bf16.msra.mxu0 %v4028
    %4143 = vmatpush.bf16.msra.mxu0 %v4026
    %4144 = vmatpush.bf16.msra.mxu0 %v4024
    %4145 = vmatpush.bf16.msra.mxu0 %v4022
    %4146 = vmatpush.bf16.msra.mxu0 %v4020
    %4147 = vmatpush.bf16.msra.mxu0 %v4018
    %4148 = vmatmul.bf16.gmra.mxu0 %v3721
    %v4149 = vpop.f32.mrf.mxu0
    %v4150 = vadd.f32 %v4137, %v4149
    %v4151 = vpop.f32.mrf.mxu0
    %4152 = vdwg.mxu0
    %4153 = vmatpush.bf16.msra.mxu0 %v4048
    %4154 = vmatpush.bf16.msra.mxu0 %v4046
    %4155 = vmatpush.bf16.msra.mxu0 %v4044
    %4156 = vmatpush.bf16.msra.mxu0 %v4042
    %4157 = vmatpush.bf16.msra.mxu0 %v4040
    %4158 = vmatpush.bf16.msra.mxu0 %v4038
    %4159 = vmatpush.bf16.msra.mxu0 %v4036
    %4160 = vmatpush.bf16.msra.mxu0 %v4034
    %4161 = vmatmul.bf16.gmra.mxu0 %v3722
    %v4162 = vpop.f32.mrf.mxu0
    %v4163 = vadd.f32 %v4150, %v4162
    %v4164 = vpop.f32.mrf.mxu0
    %4165 = vdwg.mxu0
    %4166 = vmatpush.bf16.msra.mxu0 %v4001
    %4167 = vmatpush.bf16.msra.mxu0 %v3999
    %4168 = vmatpush.bf16.msra.mxu0 %v3997
    %4169 = vmatpush.bf16.msra.mxu0 %v3995
    %4170 = vmatpush.bf16.msra.mxu0 %v3993
    %4171 = vmatpush.bf16.msra.mxu0 %v3991
    %4172 = vmatpush.bf16.msra.mxu0 %v3989
    %4173 = vmatpush.bf16.msra.mxu0 %v3987
    %4174 = vmatmul.bf16.gmra.mxu0 %v3719
    %v4175 = vpop.f32.mrf.mxu0
    %v4176 = vadd.f32 %v3791, %v4175
    %v4177 = vpop.f32.mrf.mxu0
    %4178 = vdwg.mxu0
    %4179 = vmatpush.bf16.msra.mxu0 %v4017
    %4180 = vmatpush.bf16.msra.mxu0 %v4015
    %4181 = vmatpush.bf16.msra.mxu0 %v4013
    %4182 = vmatpush.bf16.msra.mxu0 %v4011
    %4183 = vmatpush.bf16.msra.mxu0 %v4009
    %4184 = vmatpush.bf16.msra.mxu0 %v4007
    %4185 = vmatpush.bf16.msra.mxu0 %v4005
    %4186 = vmatpush.bf16.msra.mxu0 %v4003
    %4187 = vmatmul.bf16.gmra.mxu0 %v3720
    %v4188 = vpop.f32.mrf.mxu0
    %v4189 = vadd.f32 %v4176, %v4188
    %v4190 = vpop.f32.mrf.mxu0
    %4191 = vdwg.mxu0
    %4192 = vmatpush.bf16.msra.mxu0 %v4033
    %4193 = vmatpush.bf16.msra.mxu0 %v4031
    %4194 = vmatpush.bf16.msra.mxu0 %v4029
    %4195 = vmatpush.bf16.msra.mxu0 %v4027
    %4196 = vmatpush.bf16.msra.mxu0 %v4025
    %4197 = vmatpush.bf16.msra.mxu0 %v4023
    %4198 = vmatpush.bf16.msra.mxu0 %v4021
    %4199 = vmatpush.bf16.msra.mxu0 %v4019
    %4200 = vmatmul.bf16.gmra.mxu0 %v3721
    %v4201 = vpop.f32.mrf.mxu0
    %v4202 = vadd.f32 %v4189, %v4201
    %v4203 = vpop.f32.mrf.mxu0
    %4204 = vdwg.mxu0
    %4205 = vmatpush.bf16.msra.mxu0 %v4049
    %4206 = vmatpush.bf16.msra.mxu0 %v4047
    %4207 = vmatpush.bf16.msra.mxu0 %v4045
    %4208 = vmatpush.bf16.msra.mxu0 %v4043
    %4209 = vmatpush.bf16.msra.mxu0 %v4041
    %4210 = vmatpush.bf16.msra.mxu0 %v4039
    %4211 = vmatpush.bf16.msra.mxu0 %v4037
    %4212 = vmatpush.bf16.msra.mxu0 %v4035
    %4213 = vmatmul.bf16.gmra.mxu0 %v3722
    %v4214 = vpop.f32.mrf.mxu0
    %v4215 = vadd.f32 %v4202, %v4214
    %v4216 = vpop.f32.mrf.mxu0
    %4217 = vdwg.mxu0
    %v4218 = vmax.f32 %v4163, 0.0
    %v4219 = vmax.f32 %v4215, 0.0
    %s4220 = smul.u32 4, 48
    %s4221 = smul.u32 %s4220, 1
    %s4222 = sshll.u32 %s4221, 4
    %4223 = dma.done %s227, %s4222
    %v4224 = vpack.c.bf16 %v3542, %v3542
    %v4225 = vld [vmem:[#allocation5] sm:$0xf]
    %v4226 = vld [vmem:[#allocation5 + $0x4] sm:$0xf]
    %v4227 = vld [vmem:[#allocation5 + $0x8] sm:$0xf]
    %v4228 = vld [vmem:[#allocation5 + $0xc] sm:$0xf]
    %v4229 = vld [vmem:[#allocation5 + $0x10] sm:$0xf]
    %v4230 = vld [vmem:[#allocation5 + $0x14] sm:$0xf]
    %v4231 = vld [vmem:[#allocation5 + $0x18] sm:$0xf]
    %v4232 = vld [vmem:[#allocation5 + $0x1c] sm:$0xf]
    %v4233 = vld [vmem:[#allocation5 + $0x20] sm:$0xf]
    %v4234 = vld [vmem:[#allocation5 + $0x24] sm:$0xf]
    %v4235 = vld [vmem:[#allocation5 + $0x28] sm:$0xf]
    %v4236 = vld [vmem:[#allocation5 + $0x2c] sm:$0xf]
    %v4237 = vld [vmem:[#allocation5 + $0x30] sm:$0xf]
    %v4238 = vld [vmem:[#allocation5 + $0x34] sm:$0xf]
    %v4239 = vld [vmem:[#allocation5 + $0x38] sm:$0xf]
    %v4240 = vld [vmem:[#allocation5 + $0x3c] sm:$0xf]
    %v4241 = vpack.c.bf16 %v4218, %v4218
    %v4242 = vpack.c.bf16 %v4219, %v4219
    %v4243 = vld [vmem:[#allocation5 + $0x40] sm:$0xf]
    %v4244 = vld [vmem:[#allocation5 + $0x44] sm:$0xf]
    %v4245 = vld [vmem:[#allocation5 + $0x48] sm:$0xf]
    %v4246 = vld [vmem:[#allocation5 + $0x4c] sm:$0xf]
    %v4247 = vld [vmem:[#allocation5 + $0x50] sm:$0xf]
    %v4248 = vld [vmem:[#allocation5 + $0x54] sm:$0xf]
    %v4249 = vld [vmem:[#allocation5 + $0x58] sm:$0xf]
    %v4250 = vld [vmem:[#allocation5 + $0x5c] sm:$0xf]
    %v4251 = vld [vmem:[#allocation5 + $0x60] sm:$0xf]
    %v4252 = vld [vmem:[#allocation5 + $0x64] sm:$0xf]
    %v4253 = vld [vmem:[#allocation5 + $0x68] sm:$0xf]
    %v4254 = vld [vmem:[#allocation5 + $0x6c] sm:$0xf]
    %v4255 = vld [vmem:[#allocation5 + $0x70] sm:$0xf]
    %v4256 = vld [vmem:[#allocation5 + $0x74] sm:$0xf]
    %v4257 = vld [vmem:[#allocation5 + $0x78] sm:$0xf]
    %v4258 = vld [vmem:[#allocation5 + $0x7c] sm:$0xf]
    %v4259 = vld [vmem:[#allocation5 + $0x80] sm:$0xf]
    %v4260 = vld [vmem:[#allocation5 + $0x84] sm:$0xf]
    %v4261 = vld [vmem:[#allocation5 + $0x88] sm:$0xf]
    %v4262 = vld [vmem:[#allocation5 + $0x8c] sm:$0xf]
    %v4263 = vld [vmem:[#allocation5 + $0x90] sm:$0xf]
    %v4264 = vld [vmem:[#allocation5 + $0x94] sm:$0xf]
    %v4265 = vld [vmem:[#allocation5 + $0x98] sm:$0xf]
    %v4266 = vld [vmem:[#allocation5 + $0x9c] sm:$0xf]
    %v4267 = vld [vmem:[#allocation5 + $0xa0] sm:$0xf]
    %v4268 = vld [vmem:[#allocation5 + $0xa4] sm:$0xf]
    %v4269 = vld [vmem:[#allocation5 + $0xa8] sm:$0xf]
    %v4270 = vld [vmem:[#allocation5 + $0xac] sm:$0xf]
    %v4271 = vld [vmem:[#allocation5 + $0xb0] sm:$0xf]
    %v4272 = vld [vmem:[#allocation5 + $0xb4] sm:$0xf]
    %v4273 = vld [vmem:[#allocation5 + $0xb8] sm:$0xf]
    %v4274 = vld [vmem:[#allocation5 + $0xbc] sm:$0xf]
    %v4307 = vunpack.c.l.b16 %v4243
    %v4308 = vunpack.c.l.b16 %v4244
    %v4309 = vunpack.c.l.b16 %v4245
    %v4310 = vunpack.c.l.b16 %v4246
    %v4311 = vunpack.c.l.b16 %v4247
    %v4312 = vunpack.c.l.b16 %v4248
    %v4313 = vunpack.c.l.b16 %v4249
    %v4314 = vunpack.c.l.b16 %v4250
    %v4315 = vunpack.c.l.b16 %v4251
    %v4316 = vunpack.c.l.b16 %v4252
    %v4317 = vunpack.c.l.b16 %v4253
    %v4318 = vunpack.c.l.b16 %v4254
    %v4319 = vunpack.c.l.b16 %v4255
    %v4320 = vunpack.c.l.b16 %v4256
    %v4321 = vunpack.c.l.b16 %v4257
    %v4322 = vunpack.c.l.b16 %v4258
    %v4323 = vunpack.c.l.b16 %v4259
    %v4324 = vunpack.c.l.b16 %v4260
    %v4325 = vunpack.c.l.b16 %v4261
    %v4326 = vunpack.c.l.b16 %v4262
    %v4327 = vunpack.c.l.b16 %v4263
    %v4328 = vunpack.c.l.b16 %v4264
    %v4329 = vunpack.c.l.b16 %v4265
    %v4330 = vunpack.c.l.b16 %v4266
    %v4331 = vunpack.c.l.b16 %v4267
    %v4332 = vunpack.c.l.b16 %v4268
    %v4333 = vunpack.c.l.b16 %v4269
    %v4334 = vunpack.c.l.b16 %v4270
    %v4335 = vunpack.c.l.b16 %v4271
    %v4336 = vunpack.c.l.b16 %v4272
    %v4337 = vunpack.c.l.b16 %v4273
    %v4338 = vunpack.c.l.b16 %v4274
    %v4339 = vpack.c.b16 %v4308, %v4307
    %v4340 = vpack.c.b16 %v4310, %v4309
    %v4341 = vpack.c.b16 %v4312, %v4311
    %v4342 = vpack.c.b16 %v4314, %v4313
    %v4343 = vpack.c.b16 %v4316, %v4315
    %v4344 = vpack.c.b16 %v4318, %v4317
    %v4345 = vpack.c.b16 %v4320, %v4319
    %v4346 = vpack.c.b16 %v4322, %v4321
    %v4347 = vpack.c.b16 %v4324, %v4323
    %v4348 = vpack.c.b16 %v4326, %v4325
    %v4349 = vpack.c.b16 %v4328, %v4327
    %v4350 = vpack.c.b16 %v4330, %v4329
    %v4351 = vpack.c.b16 %v4332, %v4331
    %v4352 = vpack.c.b16 %v4334, %v4333
    %v4353 = vpack.c.b16 %v4336, %v4335
    %v4354 = vpack.c.b16 %v4338, %v4337
    %4371 = vmatpush.bf16.msra.mxu0 %v4346
    %4372 = vmatpush.bf16.msra.mxu0 %v4345
    %4373 = vmatpush.bf16.msra.mxu0 %v4344
    %4374 = vmatpush.bf16.msra.mxu0 %v4343
    %4375 = vmatpush.bf16.msra.mxu0 %v4342
    %4376 = vmatpush.bf16.msra.mxu0 %v4341
    %4377 = vmatpush.bf16.msra.mxu0 %v4340
    %4378 = vmatpush.bf16.msra.mxu0 %v4339
    %4379 = vmatmul.bf16.gmra.mxu0 %v4241
    %v4380 = vpop.f32.mrf.mxu0
    %v4381 = vadd.f32 0.0, %v4380
    %v4382 = vpop.f32.mrf.mxu0
    %4383 = vdwg.mxu0
    %4384 = vmatpush.bf16.msra.mxu0 %v4354
    %4385 = vmatpush.bf16.msra.mxu0 %v4353
    %4386 = vmatpush.bf16.msra.mxu0 %v4352
    %4387 = vmatpush.bf16.msra.mxu0 %v4351
    %4388 = vmatpush.bf16.msra.mxu0 %v4350
    %4389 = vmatpush.bf16.msra.mxu0 %v4349
    %4390 = vmatpush.bf16.msra.mxu0 %v4348
    %4391 = vmatpush.bf16.msra.mxu0 %v4347
    %4392 = vmatmul.bf16.gmra.mxu0 %v4242
    %v4393 = vpop.f32.mrf.mxu0
    %v4394 = vadd.f32 %v4381, %v4393
    %v4395 = vpop.f32.mrf.mxu0
    %4396 = vdwg.mxu0
    %v4413 = vunpack.c.l.b16 %v4225
    %v4414 = vunpack.c.l.b16 %v4226
    %v4415 = vunpack.c.l.b16 %v4227
    %v4416 = vunpack.c.l.b16 %v4228
    %v4417 = vunpack.c.l.b16 %v4229
    %v4418 = vunpack.c.l.b16 %v4230
    %v4419 = vunpack.c.l.b16 %v4231
    %v4420 = vunpack.c.l.b16 %v4232
    %v4421 = vunpack.c.l.b16 %v4233
    %v4422 = vunpack.c.l.b16 %v4234
    %v4423 = vunpack.c.l.b16 %v4235
    %v4424 = vunpack.c.l.b16 %v4236
    %v4425 = vunpack.c.l.b16 %v4237
    %v4426 = vunpack.c.l.b16 %v4238
    %v4427 = vunpack.c.l.b16 %v4239
    %v4428 = vunpack.c.l.b16 %v4240
    %v4429 = vpack.c.b16 %v4414, %v4413
    %v4430 = vpack.c.b16 %v4416, %v4415
    %v4431 = vpack.c.b16 %v4418, %v4417
    %v4432 = vpack.c.b16 %v4420, %v4419
    %v4433 = vpack.c.b16 %v4422, %v4421
    %v4434 = vpack.c.b16 %v4424, %v4423
    %v4435 = vpack.c.b16 %v4426, %v4425
    %v4436 = vpack.c.b16 %v4428, %v4427
    %4445 = vmatpush.bf16.msra.mxu0 %v4436
    %4446 = vmatpush.bf16.msra.mxu0 %v4435
    %4447 = vmatpush.bf16.msra.mxu0 %v4434
    %4448 = vmatpush.bf16.msra.mxu0 %v4433
    %4449 = vmatpush.bf16.msra.mxu0 %v4432
    %4450 = vmatpush.bf16.msra.mxu0 %v4431
    %4451 = vmatpush.bf16.msra.mxu0 %v4430
    %4452 = vmatpush.bf16.msra.mxu0 %v4429
    %4453 = vmatmul.bf16.gmra.mxu0 %v4224
    %v4454 = vpop.f32.mrf.mxu0
    %v4455 = vadd.f32 %v4394, %v4454
    %v4456 = vpop.f32.mrf.mxu0
    %4457 = vdwg.mxu0
    %v4458 = vld [vmem:[#allocation10 + $0x2] ss:$0 sm:$0xff]
    %v4459 = vadd.f32 %v4455, %v4458
    %v4460 = vmax.f32 %v4459, 0.0
    %v4461 = vld [vmem:[#allocation10 + $0x3] ss:$0 sm:$0xff]
    %v4462 = vmul.f32 %v4460, %v4461
    %vm4463 = vcmask 1043456
    %v4464 = vsel %vm4463, %v4462, 0.0
    %4465 = vadd.xlane.f32.xlu0 %v4464
    %v4466 = vpop.xlane.xlu0 %4465
    %v4467 = vld [vmem:[#allocation10 + $0x4] ss:$0 sm:$0xff]
    %v4468 = vadd.f32 %v4466, %v4467
    %v4469 = vand.u32 2147483647, %v4468
    %v4470 = vsub.f32 0.0, %v4469
    %v4471 = vmul.f32 %v4470, 1.442695
    %v4472 = vpow.pop %v4471
    %vm4473 = vcmp.ge.f32.partialorder %v4468, 0.0
    %v4474 = vsel %vm4473, 1.0, %v4472
    %v4475 = vadd.f32 %v4472, 1.0
    %v4476 = vrcp.pop %v4475
    %v4477 = vmul.f32 %v4475, %v4476
    %v4478 = vsub.f32 1.0, %v4477
    %v4479 = vmul.f32 %v4476, %v4478
    %v4480 = vadd.f32 %v4476, %v4479
    %vm4481 = vweird.f32 %v4475
    %vm4482 = vweird.f32 %v4476
    %vm4483 = vmor %vm4481, %vm4482
    %v4484 = vsel %vm4483, %v4476, %v4480
    %v4485 = vand.u32 2147483647, %v4475
    %vm4486 = vcmp.eq.f32.partialorder %v4485, 8.507059e+37
    %v4487 = vand.u32 %v4475, 2147483648
    %v4488 = vor.u32 1.1754944e-38, %v4487
    %v4489 = vsel %vm4486, %v4488, %v4484
    %v4490 = vmul.f32 %v4474, %v4489
    %4492 = vset.pattern.permute.xlu0 0
    %4493 = vperm.xlu0 %4492, %v4468
    %v4494 = vpop.permute.xlu0 %4493
    %4497 = vset.pattern.permute.xlu0 0
    %4498 = vperm.xlu0 %4497, %v4490
    %v4499 = vpop.permute.xlu0 %4498
    %v4500 = vrot.slane %v4499, 4
    %v4502 = vsel %vm4463, %v4494, %v4500
    %4503 = vst [vmem:[%s9] sm:$0xff] %v4502
    // Predicated region
    $region85: #{binary_classifier_forward.1} parent=1 // pred_check
      _
    $region86: #{binary_classifier_forward.1} parent=1 // pred_check_branch
      %4505 = sbr.rel (0) target = $region88
    $region87: #{binary_classifier_forward.1} parent=1 // pred_region
      _
    $region88: #{binary_classifier_forward.1} parent=1 // pred_fallthru
      _
    // Predicated region
    $region89: #{binary_classifier_forward.1} parent=1 // pred_check
      _
    $region90: #{binary_classifier_forward.1} parent=1 // pred_check_branch
      %4507 = sbr.rel (0) target = $region92
    $region91: #{binary_classifier_forward.1} parent=1 // pred_region
      _
    $region92: #{binary_classifier_forward.1} parent=1 // pred_fallthru
      _
    %4508 = vsyncpa [#allocation9], 1
    %4509 = vsyncpa [#allocation11], 1
  %4510 = vsyncmov [#allocation7]
  %s4511 = vpop.sfrf %4510
  %p4512 = scmp.eq.s32.totalorder %s4511, 0
  %p4513 = pneg %p4512
  %4515 = shalt.err (%p4513)
  %s4516 = scalar_lea.sflag [#allocation7], 1
  %4517 = vsyncmov %s4516
  %s4518 = vpop.sfrf %4517
  %p4519 = scmp.eq.s32.totalorder %s4518, 0
  %p4520 = pneg %p4519
  %4522 = shalt.err (%p4520)
  %s4523 = scalar_lea.sflag [#allocation7], 2
  %4524 = vsyncmov %s4523
  %s4525 = vpop.sfrf %4524
  %p4526 = scmp.eq.s32.totalorder %s4525, 0
  %p4527 = pneg %p4526
  %4529 = shalt.err (%p4527)
  %s4530 = scalar_lea.sflag [#allocation7], 3
  %4531 = vsyncmov %s4530
  %s4532 = vpop.sfrf %4531
  %p4533 = scmp.eq.s32.totalorder %s4532, 0
  %p4534 = pneg %p4533
  %4536 = shalt.err (%p4534)
  %s4537 = scalar_lea.sflag [#allocation7], 4
  %4538 = vsyncmov %s4537
  %s4539 = vpop.sfrf %4538
  %p4540 = scmp.eq.s32.totalorder %s4539, 0
  %p4541 = pneg %p4540
  %4543 = shalt.err (%p4541)
  %s4544 = scalar_lea.sflag [#allocation7], 5
  %4545 = vsyncmov %s4544
  %s4546 = vpop.sfrf %4545
  %p4547 = scmp.eq.s32.totalorder %s4546, 0
  %p4548 = pneg %p4547
  %4550 = shalt.err (%p4548)
  %s4551 = scalar_lea.sflag [#allocation7], 6
  %4552 = vsyncmov %s4551
  %s4553 = vpop.sfrf %4552
  %p4554 = scmp.eq.s32.totalorder %s4553, 0
  %p4555 = pneg %p4554
  %4557 = shalt.err (%p4555)
  %s4558 = scalar_lea.sflag [#allocation7], 7
  %4559 = vsyncmov %s4558
  %s4560 = vpop.sfrf %4559
  %p4561 = scmp.eq.s32.totalorder %s4560, 0
  %p4562 = pneg %p4561
  %4564 = shalt.err (%p4562)
  %s4565 = scalar_lea.sflag [#allocation7], 8
  %4566 = vsyncmov %s4565
  %s4567 = vpop.sfrf %4566
  %p4568 = scmp.eq.s32.totalorder %s4567, 0
  %p4569 = pneg %p4568
  %4571 = shalt.err (%p4569)
  %s4572 = scalar_lea.sflag [#allocation7], 9
  %4573 = vsyncmov %s4572
  %s4574 = vpop.sfrf %4573
  %p4575 = scmp.eq.s32.totalorder %s4574, 0
  %p4576 = pneg %p4575
  %4578 = shalt.err (%p4576)

</llo_original>
